<compile_context>
chip_gen: v7x
topology: tpu7x:2x2x1
jax: 0.10.0
libtpu: 0.0.40
codegen_flags: <defaults>
</compile_context>

<pallas_src>
import jax
import jax.numpy as jnp
import numpy as np
from jax.experimental import pallas as pl
from jax.experimental.pallas import tpu as pltpu


# ----------------------------------------------------------------------------
# Fused Pallas kernel: conv3x3(+bias,ReLU) -> feature map, avg-pool -> linear
# ----------------------------------------------------------------------------
def _joiner_fused_kernel(x_ref, cw_ref, cb_ref, hw_ref, hb_ref,
                         feat_ref, logits_ref):
    """One grid step == one stacked image.

    x_ref:      (1, H+2, W+2, Cin)  padded NHWC image (bf16 storage)
    cw_ref:     (9, Cin, Cf)        fused conv weights, tap-major (f32)
    cb_ref:     (1, Cf)             fused conv bias (f32)
    hw_ref:     (Cf, L)             block-diagonal fused head weight (f32)
    hb_ref:     (1, L)              fused head bias (f32)
    feat_ref:   (1, H*W, Cf)        ReLU conv features, rows ordered (h, w)
    logits_ref: (1, 1, L)           per-image head outputs
    """
    _, HW, Cf = feat_ref.shape
    _, Hp, Wp, Cin = x_ref.shape
    H, W = Hp - 2, Wp - 2

    # Load the whole padded image once; upcast the bf16 storage to f32 for a
    # robust layout (channels stay on lanes).
    x = x_ref[0].astype(jnp.float32)                       # (H+2, W+2, Cin)

    # 3x3 conv as 9 shifted matmuls accumulated in f32 (no HBM im2col).
    acc = jnp.zeros((HW, Cf), jnp.float32)
    for kh in range(3):
        for kw in range(3):
            xs = x[kh:kh + H, kw:kw + W, :].reshape(HW, Cin)
            acc = acc + jnp.dot(xs, cw_ref[kh * 3 + kw],
                                preferred_element_type=jnp.float32)

    acc = jnp.maximum(acc + cb_ref[...], 0.0)              # bias + ReLU (f32)
    feat_ref[0] = acc.astype(feat_ref.dtype)

    # Head fused into the epilogue: global average pool + block-diag linear.
    pooled = jnp.sum(acc, axis=0, keepdims=True) * (1.0 / HW)      # (1, Cf)
    logits = jnp.dot(pooled, hw_ref[...],
                     preferred_element_type=jnp.float32) + hb_ref[...]
    logits_ref[0] = logits.astype(logits_ref.dtype)


def joiner_fused_pallas(x_pad, conv_w9, conv_b, head_w, head_b, *, out_dtype):
    """x_pad: (NB, H+2, W+2, Cin). Returns (feat (NB,H*W,Cf), logits (NB,1,L))."""
    NB, Hp, Wp, Cin = x_pad.shape
    H, W = Hp - 2, Wp - 2
    Cf = conv_w9.shape[-1]
    L = head_w.shape[-1]

    feat, logits = pl.pallas_call(
        _joiner_fused_kernel,
        out_shape=(
            jax.ShapeDtypeStruct((NB, H * W, Cf), out_dtype),
            jax.ShapeDtypeStruct((NB, 1, L), jnp.float32),
        ),
        grid=(NB,),
        in_specs=[
            pl.BlockSpec((1, Hp, Wp, Cin), lambda b: (b, 0, 0, 0)),
            pl.BlockSpec((9, Cin, Cf), lambda b: (0, 0, 0)),
            pl.BlockSpec((1, Cf), lambda b: (0, 0)),
            pl.BlockSpec((Cf, L), lambda b: (0, 0)),
            pl.BlockSpec((1, L), lambda b: (0, 0)),
        ],
        out_specs=(
            pl.BlockSpec((1, H * W, Cf), lambda b: (b, 0, 0)),
            pl.BlockSpec((1, 1, L), lambda b: (b, 0, 0)),
        ),
        compiler_params=pltpu.CompilerParams(
            dimension_semantics=("parallel",)),
    )(x_pad, conv_w9, conv_b, head_w, head_b)
    return feat, logits


# ----------------------------------------------------------------------------
# Joiner (mirrors the PyTorch module's forward semantics)
# ----------------------------------------------------------------------------
class MultiInputSepDecIndepJoinerPallas:
    """JAX/Pallas port of MultiInputSepDecIndepJoiner.

    backbone_params: dict key -> (conv_w [3,3,Cin,Ck], conv_b [Ck])
    head_params:     dict key -> (lin_w [Ck, ncls_k],  lin_b [ncls_k])
    Keys of head_params must equal keys of backbone_params (as in PyTorch).
    """

    def __init__(self, backbone_params, head_params,
                 storage_dtype=jnp.bfloat16):
        assert set(backbone_params.keys()) == set(head_params.keys())
        self.keys = list(backbone_params.keys())
        self.storage_dtype = storage_dtype

        # --- Fuse the per-key conv branches along Cout (read input once). ---
        conv_ws = [backbone_params[k][0] for k in self.keys]   # (3,3,Cin,Ck)
        conv_bs = [backbone_params[k][1] for k in self.keys]
        self.couts = [int(w.shape[-1]) for w in conv_ws]
        w_fused = jnp.concatenate(conv_ws, axis=-1)             # (3,3,Cin,Cf)
        _, _, cin, cf = w_fused.shape
        self.cin, self.cf = int(cin), int(cf)
        # Tap-major layout (9, Cin, Cf): matches the kernel's (kh,kw) loop.
        self.conv_w9 = w_fused.reshape(9, cin, cf).astype(jnp.float32)
        self.conv_b = jnp.concatenate(conv_bs, axis=0).reshape(1, cf)
        self.conv_b = self.conv_b.astype(jnp.float32)

        # --- Fuse the heads into one block-diagonal linear. -----------------
        head_ws = [head_params[k][0] for k in self.keys]        # (Ck, ncls_k)
        head_bs = [head_params[k][1] for k in self.keys]
        for j, k in enumerate(self.keys):
            assert head_ws[j].shape[0] == self.couts[j], (
                "head input dim must match backbone Cout for key %s" % k)
        self.nclss = [int(w.shape[-1]) for w in head_ws]
        L = sum(self.nclss)
        hw = jnp.zeros((cf, L), jnp.float32)
        r = c = 0
        for w in head_ws:
            hw = hw.at[r:r + w.shape[0], c:c + w.shape[1]].set(
                w.astype(jnp.float32))
            r += w.shape[0]
            c += w.shape[1]
        self.head_w = hw
        self.head_b = jnp.concatenate(head_bs, axis=0).reshape(1, L)
        self.head_b = self.head_b.astype(jnp.float32)

    def __call__(self, input_list, input_name='input', cond=()):
        n_inputs = len(input_list)
        xs = []
        for i, x in enumerate(input_list):
            xin = x[input_name]
            if len(cond) > 0:
                # channel concat, NCHW dim=1 (matches torch.concat(..., dim=1))
                xin = jnp.concatenate([xin, cond[i]], axis=1)
            xs.append(xin)
        N = xs[0].shape[0]
        x_all = jnp.concatenate(xs, axis=0)          # (n_inputs*N, Cin, H, W)
        out_dtype = x_all.dtype

        # NCHW -> NHWC once (channels onto lanes), 1-pixel halo pad, bf16
        # storage for the HBM read.  All math stays f32 inside the kernel.
        x_nhwc = jnp.transpose(x_all, (0, 2, 3, 1))
        x_pad = jnp.pad(x_nhwc, ((0, 0), (1, 1), (1, 1), (0, 0)))
        x_pad = x_pad.astype(self.storage_dtype)

        NB, Hp, Wp, _ = x_pad.shape
        H, W = Hp - 2, Wp - 2
        feat, logits = joiner_fused_pallas(
            x_pad, self.conv_w9, self.conv_b, self.head_w, self.head_b,
            out_dtype=out_dtype)
        feat = feat.reshape(NB, H, W, self.cf)        # NHWC, fused channels
        logits = logits.reshape(NB, -1)

        # Channel / class offsets of each key inside the fused tensors.
        c_offs = [0]
        for c in self.couts:
            c_offs.append(c_offs[-1] + c)
        l_offs = [0]
        for l in self.nclss:
            l_offs.append(l_offs[-1] + l)

        outs = []
        for i in range(n_inputs):
            fi = feat[i * N:(i + 1) * N]              # (N, H, W, Cf)
            li = logits[i * N:(i + 1) * N]            # (N, L)
            out = {}
            for j, k in enumerate(self.keys):
                fk = fi[..., c_offs[j]:c_offs[j + 1]]
                # PyTorch-facing layout is NCHW -> transpose only at the edge.
                out['feat_%s' % k] = jnp.transpose(fk, (0, 3, 1, 2))
            for j, k in enumerate(self.keys):
                out['logits_%s' % k] = li[:, l_offs[j]:l_offs[j + 1]].astype(out_dtype)
            outs.append(out)
        return outs, [inp[input_name] for inp in input_list]


# ----------------------------------------------------------------------------
# Pure-JAX reference (for a numerical sanity check of the fused kernel)
# ----------------------------------------------------------------------------
def _reference_forward(x_all_nchw, backbone_params, head_params, keys,
                       storage_dtype):
    x = jnp.transpose(x_all_nchw, (0, 2, 3, 1))
    x = x.astype(storage_dtype).astype(jnp.float32)    # same bf16 rounding
    feats, logits = {}, {}
    for k in keys:
        w, b = backbone_params[k]
        f = jax.lax.conv_general_dilated(
            x, w.astype(jnp.float32), window_strides=(1, 1), padding='SAME',
            dimension_numbers=('NHWC', 'HWIO', 'NHWC'))
        f = jnp.maximum(f + b.astype(jnp.float32), 0.0)
        feats[k] = f
        hw, hb = head_params[k]
        pooled = jnp.mean(f, axis=(1, 2))
        logits[k] = pooled @ hw.astype(jnp.float32) + hb.astype(jnp.float32)
    return feats, logits


# ----------------------------------------------------------------------------
# Demo
# ----------------------------------------------------------------------------
if __name__ == "__main__":
    # batch=2, input channels=2, cond channels=2 (Cin total 4), spatial 16x16,
    # backbone Cout=32 per key (fused 64), num_classes=8 per key.
    N, C_IN, C_COND, H, W = 2, 2, 2, 16, 16
    CIN_TOTAL = C_IN + C_COND
    COUT, NCLS = 32, 8
    DTYPE = jnp.float32

    key = jax.random.PRNGKey(0)
    keys = jax.random.split(key, 16)

    # Deterministic synthetic parameters (not loaded from a checkpoint).
    backbone_params = {
        'low': (0.1 * jax.random.normal(keys[0], (3, 3, CIN_TOTAL, COUT), DTYPE),
                0.01 * jax.random.normal(keys[1], (COUT,), DTYPE)),
        'high': (0.1 * jax.random.normal(keys[2], (3, 3, CIN_TOTAL, COUT), DTYPE),
                 0.01 * jax.random.normal(keys[3], (COUT,), DTYPE)),
    }
    head_params = {
        'low': (0.1 * jax.random.normal(keys[4], (COUT, NCLS), DTYPE),
                0.01 * jax.random.normal(keys[5], (NCLS,), DTYPE)),
        'high': (0.1 * jax.random.normal(keys[6], (COUT, NCLS), DTYPE),
                 0.01 * jax.random.normal(keys[7], (NCLS,), DTYPE)),
    }

    joiner = MultiInputSepDecIndepJoinerPallas(backbone_params, head_params)

    # Two augmented inputs + matching conditioning tensors (NCHW).
    input_list = [
        {'input': jax.random.normal(keys[8], (N, C_IN, H, W), DTYPE)},
        {'input': jax.random.normal(keys[9], (N, C_IN, H, W), DTYPE)},
    ]
    cond = [
        jax.random.normal(keys[10], (N, C_COND, H, W), DTYPE),
        jax.random.normal(keys[11], (N, C_COND, H, W), DTYPE),
    ]

    outs, raw_inputs = joiner(input_list, input_name='input', cond=cond)

    for leaf in jax.tree_util.tree_leaves((outs, raw_inputs)):
        jax.block_until_ready(leaf)

    # Shape / key sanity checks.
    assert len(outs) == 2 and len(raw_inputs) == 2
    for o in outs:
        assert o['feat_low'].shape == (N, COUT, H, W)
        assert o['feat_high'].shape == (N, COUT, H, W)
        assert o['logits_low'].shape == (N, NCLS)
        assert o['logits_high'].shape == (N, NCLS)

    # Numerical check against a plain-JAX reference (same bf16-rounded input).
    x_all = jnp.concatenate(
        [jnp.concatenate([input_list[i]['input'], cond[i]], axis=1)
         for i in range(2)], axis=0)
    ref_feats, ref_logits = _reference_forward(
        x_all, backbone_params, head_params, ['low', 'high'], jnp.bfloat16)
    for i in range(2):
        for k in ['low', 'high']:
            rf = jnp.transpose(ref_feats[k][i * N:(i + 1) * N], (0, 3, 1, 2))
            np.testing.assert_allclose(
                np.asarray(outs[i]['feat_%s' % k]), np.asarray(rf),
                rtol=2e-3, atol=2e-3)
            np.testing.assert_allclose(
                np.asarray(outs[i]['logits_%s' % k]),
                np.asarray(ref_logits[k][i * N:(i + 1) * N]),
                rtol=2e-3, atol=2e-3)

    print("KERNEL_OK")
</pallas_src>

<mosaic_0001>
module attributes {stable_mosaic.version = 11 : i64} {
  func.func @_joiner_fused_kernel(%arg0: i32, %arg1: memref<1x18x18x4xbf16, #tpu.memory_space<vmem>>, %arg2: memref<9x4x64xf32, #tpu.memory_space<vmem>>, %arg3: memref<1x64xf32, #tpu.memory_space<vmem>>, %arg4: memref<64x16xf32, #tpu.memory_space<vmem>>, %arg5: memref<1x16xf32, #tpu.memory_space<vmem>>, %arg6: memref<1x256x64xf32, #tpu.memory_space<vmem>>, %arg7: memref<1x1x16xf32, #tpu.memory_space<vmem>>) attributes {dimension_semantics = [#tpu.dimension_semantics<parallel>], iteration_bounds = array<i64: 4>, scalar_prefetch = 0 : i64, scratch_operands = 0 : i64, tpu.core_type = #tpu.core_type<tc>, window_params = [{transform_indices = @transform_0, window_bounds = array<i64: 1, 18, 18, 4>}, {pipeline_mode = #tpu.pipeline_mode<synchronous>, transform_indices = @transform_1, window_bounds = array<i64: 9, 4, 64>}, {pipeline_mode = #tpu.pipeline_mode<synchronous>, transform_indices = @transform_2, window_bounds = array<i64: 1, 64>}, {pipeline_mode = #tpu.pipeline_mode<synchronous>, transform_indices = @transform_3, window_bounds = array<i64: 64, 16>}, {pipeline_mode = #tpu.pipeline_mode<synchronous>, transform_indices = @transform_4, window_bounds = array<i64: 1, 16>}, {transform_indices = @transform_5, window_bounds = array<i64: 1, 256, 64>}, {transform_indices = @transform_6, window_bounds = array<i64: 1, 1, 16>}]} {
    %c0 = arith.constant 0 : index
    %c0_0 = arith.constant 0 : index
    %c0_1 = arith.constant 0 : index
    %c0_2 = arith.constant 0 : index
    %0 = vector.load %arg1[%c0, %c0_0, %c0_1, %c0_2] : memref<1x18x18x4xbf16, #tpu.memory_space<vmem>>, vector<1x18x18x4xbf16>
    %1 = vector.shape_cast %0 : vector<1x18x18x4xbf16> to vector<18x18x4xbf16>
    %2 = arith.extf %1 : vector<18x18x4xbf16> to vector<18x18x4xf32>
    %cst = arith.constant 0.000000e+00 : f32
    %3 = vector.broadcast %cst : f32 to vector<256x64xf32>
    %4 = vector.extract_strided_slice %2 {offsets = [0, 0, 0], sizes = [16, 16, 4], strides = [1, 1, 1]} : vector<18x18x4xf32> to vector<16x16x4xf32>
    %5 = vector.shape_cast %4 : vector<16x16x4xf32> to vector<256x4xf32>
    %c0_3 = arith.constant 0 : index
    %c0_4 = arith.constant 0 : index
    %c0_5 = arith.constant 0 : index
    %6 = vector.load %arg2[%c0_3, %c0_4, %c0_5] : memref<9x4x64xf32, #tpu.memory_space<vmem>>, vector<1x4x64xf32>
    %7 = vector.shape_cast %6 : vector<1x4x64xf32> to vector<4x64xf32>
    %cst_6 = arith.constant dense<0.000000e+00> : vector<256x64xf32>
    %8 = tpu.matmul %5, %7, %cst_6 {dimension_numbers = #tpu.dot_dimension_numbers<[1], [0], [0], [1], [0, 0, 1, 1], [], []>} : vector<256x4xf32>, vector<4x64xf32>, vector<256x64xf32> -> vector<256x64xf32>
    %9 = arith.addf %3, %8 : vector<256x64xf32>
    %10 = vector.extract_strided_slice %2 {offsets = [0, 1, 0], sizes = [16, 16, 4], strides = [1, 1, 1]} : vector<18x18x4xf32> to vector<16x16x4xf32>
    %11 = vector.shape_cast %10 : vector<16x16x4xf32> to vector<256x4xf32>
    %c1 = arith.constant 1 : index
    %c0_7 = arith.constant 0 : index
    %c0_8 = arith.constant 0 : index
    %12 = vector.load %arg2[%c1, %c0_7, %c0_8] : memref<9x4x64xf32, #tpu.memory_space<vmem>>, vector<1x4x64xf32>
    %13 = vector.shape_cast %12 : vector<1x4x64xf32> to vector<4x64xf32>
    %cst_9 = arith.constant dense<0.000000e+00> : vector<256x64xf32>
    %14 = tpu.matmul %11, %13, %cst_9 {dimension_numbers = #tpu.dot_dimension_numbers<[1], [0], [0], [1], [0, 0, 1, 1], [], []>} : vector<256x4xf32>, vector<4x64xf32>, vector<256x64xf32> -> vector<256x64xf32>
    %15 = arith.addf %9, %14 : vector<256x64xf32>
    %16 = vector.extract_strided_slice %2 {offsets = [0, 2, 0], sizes = [16, 16, 4], strides = [1, 1, 1]} : vector<18x18x4xf32> to vector<16x16x4xf32>
    %17 = vector.shape_cast %16 : vector<16x16x4xf32> to vector<256x4xf32>
    %c2 = arith.constant 2 : index
    %c0_10 = arith.constant 0 : index
    %c0_11 = arith.constant 0 : index
    %18 = vector.load %arg2[%c2, %c0_10, %c0_11] : memref<9x4x64xf32, #tpu.memory_space<vmem>>, vector<1x4x64xf32>
    %19 = vector.shape_cast %18 : vector<1x4x64xf32> to vector<4x64xf32>
    %cst_12 = arith.constant dense<0.000000e+00> : vector<256x64xf32>
    %20 = tpu.matmul %17, %19, %cst_12 {dimension_numbers = #tpu.dot_dimension_numbers<[1], [0], [0], [1], [0, 0, 1, 1], [], []>} : vector<256x4xf32>, vector<4x64xf32>, vector<256x64xf32> -> vector<256x64xf32>
    %21 = arith.addf %15, %20 : vector<256x64xf32>
    %22 = vector.extract_strided_slice %2 {offsets = [1, 0, 0], sizes = [16, 16, 4], strides = [1, 1, 1]} : vector<18x18x4xf32> to vector<16x16x4xf32>
    %23 = vector.shape_cast %22 : vector<16x16x4xf32> to vector<256x4xf32>
    %c3 = arith.constant 3 : index
    %c0_13 = arith.constant 0 : index
    %c0_14 = arith.constant 0 : index
    %24 = vector.load %arg2[%c3, %c0_13, %c0_14] : memref<9x4x64xf32, #tpu.memory_space<vmem>>, vector<1x4x64xf32>
    %25 = vector.shape_cast %24 : vector<1x4x64xf32> to vector<4x64xf32>
    %cst_15 = arith.constant dense<0.000000e+00> : vector<256x64xf32>
    %26 = tpu.matmul %23, %25, %cst_15 {dimension_numbers = #tpu.dot_dimension_numbers<[1], [0], [0], [1], [0, 0, 1, 1], [], []>} : vector<256x4xf32>, vector<4x64xf32>, vector<256x64xf32> -> vector<256x64xf32>
    %27 = arith.addf %21, %26 : vector<256x64xf32>
    %28 = vector.extract_strided_slice %2 {offsets = [1, 1, 0], sizes = [16, 16, 4], strides = [1, 1, 1]} : vector<18x18x4xf32> to vector<16x16x4xf32>
    %29 = vector.shape_cast %28 : vector<16x16x4xf32> to vector<256x4xf32>
    %c4 = arith.constant 4 : index
    %c0_16 = arith.constant 0 : index
    %c0_17 = arith.constant 0 : index
    %30 = vector.load %arg2[%c4, %c0_16, %c0_17] : memref<9x4x64xf32, #tpu.memory_space<vmem>>, vector<1x4x64xf32>
    %31 = vector.shape_cast %30 : vector<1x4x64xf32> to vector<4x64xf32>
    %cst_18 = arith.constant dense<0.000000e+00> : vector<256x64xf32>
    %32 = tpu.matmul %29, %31, %cst_18 {dimension_numbers = #tpu.dot_dimension_numbers<[1], [0], [0], [1], [0, 0, 1, 1], [], []>} : vector<256x4xf32>, vector<4x64xf32>, vector<256x64xf32> -> vector<256x64xf32>
    %33 = arith.addf %27, %32 : vector<256x64xf32>
    %34 = vector.extract_strided_slice %2 {offsets = [1, 2, 0], sizes = [16, 16, 4], strides = [1, 1, 1]} : vector<18x18x4xf32> to vector<16x16x4xf32>
    %35 = vector.shape_cast %34 : vector<16x16x4xf32> to vector<256x4xf32>
    %c5 = arith.constant 5 : index
    %c0_19 = arith.constant 0 : index
    %c0_20 = arith.constant 0 : index
    %36 = vector.load %arg2[%c5, %c0_19, %c0_20] : memref<9x4x64xf32, #tpu.memory_space<vmem>>, vector<1x4x64xf32>
    %37 = vector.shape_cast %36 : vector<1x4x64xf32> to vector<4x64xf32>
    %cst_21 = arith.constant dense<0.000000e+00> : vector<256x64xf32>
    %38 = tpu.matmul %35, %37, %cst_21 {dimension_numbers = #tpu.dot_dimension_numbers<[1], [0], [0], [1], [0, 0, 1, 1], [], []>} : vector<256x4xf32>, vector<4x64xf32>, vector<256x64xf32> -> vector<256x64xf32>
    %39 = arith.addf %33, %38 : vector<256x64xf32>
    %40 = vector.extract_strided_slice %2 {offsets = [2, 0, 0], sizes = [16, 16, 4], strides = [1, 1, 1]} : vector<18x18x4xf32> to vector<16x16x4xf32>
    %41 = vector.shape_cast %40 : vector<16x16x4xf32> to vector<256x4xf32>
    %c6 = arith.constant 6 : index
    %c0_22 = arith.constant 0 : index
    %c0_23 = arith.constant 0 : index
    %42 = vector.load %arg2[%c6, %c0_22, %c0_23] : memref<9x4x64xf32, #tpu.memory_space<vmem>>, vector<1x4x64xf32>
    %43 = vector.shape_cast %42 : vector<1x4x64xf32> to vector<4x64xf32>
    %cst_24 = arith.constant dense<0.000000e+00> : vector<256x64xf32>
    %44 = tpu.matmul %41, %43, %cst_24 {dimension_numbers = #tpu.dot_dimension_numbers<[1], [0], [0], [1], [0, 0, 1, 1], [], []>} : vector<256x4xf32>, vector<4x64xf32>, vector<256x64xf32> -> vector<256x64xf32>
    %45 = arith.addf %39, %44 : vector<256x64xf32>
    %46 = vector.extract_strided_slice %2 {offsets = [2, 1, 0], sizes = [16, 16, 4], strides = [1, 1, 1]} : vector<18x18x4xf32> to vector<16x16x4xf32>
    %47 = vector.shape_cast %46 : vector<16x16x4xf32> to vector<256x4xf32>
    %c7 = arith.constant 7 : index
    %c0_25 = arith.constant 0 : index
    %c0_26 = arith.constant 0 : index
    %48 = vector.load %arg2[%c7, %c0_25, %c0_26] : memref<9x4x64xf32, #tpu.memory_space<vmem>>, vector<1x4x64xf32>
    %49 = vector.shape_cast %48 : vector<1x4x64xf32> to vector<4x64xf32>
    %cst_27 = arith.constant dense<0.000000e+00> : vector<256x64xf32>
    %50 = tpu.matmul %47, %49, %cst_27 {dimension_numbers = #tpu.dot_dimension_numbers<[1], [0], [0], [1], [0, 0, 1, 1], [], []>} : vector<256x4xf32>, vector<4x64xf32>, vector<256x64xf32> -> vector<256x64xf32>
    %51 = arith.addf %45, %50 : vector<256x64xf32>
    %52 = vector.extract_strided_slice %2 {offsets = [2, 2, 0], sizes = [16, 16, 4], strides = [1, 1, 1]} : vector<18x18x4xf32> to vector<16x16x4xf32>
    %53 = vector.shape_cast %52 : vector<16x16x4xf32> to vector<256x4xf32>
    %c8 = arith.constant 8 : index
    %c0_28 = arith.constant 0 : index
    %c0_29 = arith.constant 0 : index
    %54 = vector.load %arg2[%c8, %c0_28, %c0_29] : memref<9x4x64xf32, #tpu.memory_space<vmem>>, vector<1x4x64xf32>
    %55 = vector.shape_cast %54 : vector<1x4x64xf32> to vector<4x64xf32>
    %cst_30 = arith.constant dense<0.000000e+00> : vector<256x64xf32>
    %56 = tpu.matmul %53, %55, %cst_30 {dimension_numbers = #tpu.dot_dimension_numbers<[1], [0], [0], [1], [0, 0, 1, 1], [], []>} : vector<256x4xf32>, vector<4x64xf32>, vector<256x64xf32> -> vector<256x64xf32>
    %57 = arith.addf %51, %56 : vector<256x64xf32>
    %c0_31 = arith.constant 0 : index
    %c0_32 = arith.constant 0 : index
    %58 = vector.load %arg3[%c0_31, %c0_32] : memref<1x64xf32, #tpu.memory_space<vmem>>, vector<1x64xf32>
    %59 = vector.broadcast %58 : vector<1x64xf32> to vector<256x64xf32>
    %60 = arith.addf %57, %59 : vector<256x64xf32>
    %cst_33 = arith.constant 0.000000e+00 : f32
    %61 = vector.broadcast %cst_33 : f32 to vector<256x64xf32>
    %62 = arith.maximumf %60, %61 : vector<256x64xf32>
    %c0_34 = arith.constant 0 : index
    %c0_35 = arith.constant 0 : index
    %c0_36 = arith.constant 0 : index
    %63 = vector.load %arg6[%c0_34, %c0_35, %c0_36] : memref<1x256x64xf32, #tpu.memory_space<vmem>>, vector<1x256x64xf32>
    %64 = vector.shape_cast %63 : vector<1x256x64xf32> to vector<256x64xf32>
    %65 = vector.shape_cast %62 : vector<256x64xf32> to vector<1x256x64xf32>
    tpu.vector_store %arg6[%c0_34, %c0_35, %c0_36], %65 {strides = array<i32>} : memref<1x256x64xf32, #tpu.memory_space<vmem>>, vector<1x256x64xf32>,
    %cst_37 = arith.constant dense<0.000000e+00> : vector<64xf32>
    %66 = vector.multi_reduction <add>, %62, %cst_37 [0] : vector<256x64xf32> to vector<64xf32>
    %67 = vector.shape_cast %66 : vector<64xf32> to vector<1x64xf32>
    %cst_38 = arith.constant 3.906250e-03 : f32
    %68 = vector.broadcast %cst_38 : f32 to vector<1x64xf32>
    %69 = arith.mulf %67, %68 : vector<1x64xf32>
    %c0_39 = arith.constant 0 : index
    %c0_40 = arith.constant 0 : index
    %70 = vector.load %arg4[%c0_39, %c0_40] : memref<64x16xf32, #tpu.memory_space<vmem>>, vector<64x16xf32>
    %cst_41 = arith.constant dense<0.000000e+00> : vector<1x16xf32>
    %71 = tpu.matmul %69, %70, %cst_41 {dimension_numbers = #tpu.dot_dimension_numbers<[1], [0], [0], [1], [0, 0, 1, 1], [], []>} : vector<1x64xf32>, vector<64x16xf32>, vector<1x16xf32> -> vector<1x16xf32>
    %c0_42 = arith.constant 0 : index
    %c0_43 = arith.constant 0 : index
    %72 = vector.load %arg5[%c0_42, %c0_43] : memref<1x16xf32, #tpu.memory_space<vmem>>, vector<1x16xf32>
    %73 = arith.addf %71, %72 : vector<1x16xf32>
    %c0_44 = arith.constant 0 : index
    %c0_45 = arith.constant 0 : index
    %c0_46 = arith.constant 0 : index
    %74 = vector.load %arg7[%c0_44, %c0_45, %c0_46] : memref<1x1x16xf32, #tpu.memory_space<vmem>>, vector<1x1x16xf32>
    %75 = vector.shape_cast %74 : vector<1x1x16xf32> to vector<1x16xf32>
    %76 = vector.shape_cast %73 : vector<1x16xf32> to vector<1x1x16xf32>
    tpu.vector_store %arg7[%c0_44, %c0_45, %c0_46], %76 {strides = array<i32>} : memref<1x1x16xf32, #tpu.memory_space<vmem>>, vector<1x1x16xf32>,
    return
  }
  func.func @transform_0(%arg0: i32) -> (i32, i32, i32, i32) {
    %c0_i32 = arith.constant 0 : i32
    %c0_i32_0 = arith.constant 0 : i32
    %c0_i32_1 = arith.constant 0 : i32
    %c0_i32_2 = arith.constant 0 : i32
    return %arg0, %c0_i32, %c0_i32_0, %c0_i32_1 : i32, i32, i32, i32
  }
  func.func @transform_1(%arg0: i32) -> (i32, i32, i32) {
    %c0_i32 = arith.constant 0 : i32
    %c0_i32_0 = arith.constant 0 : i32
    %c0_i32_1 = arith.constant 0 : i32
    %c0_i32_2 = arith.constant 0 : i32
    return %c0_i32, %c0_i32_0, %c0_i32_1 : i32, i32, i32
  }
  func.func @transform_2(%arg0: i32) -> (i32, i32) {
    %c0_i32 = arith.constant 0 : i32
    %c0_i32_0 = arith.constant 0 : i32
    %c0_i32_1 = arith.constant 0 : i32
    return %c0_i32, %c0_i32_0 : i32, i32
  }
  func.func @transform_3(%arg0: i32) -> (i32, i32) {
    %c0_i32 = arith.constant 0 : i32
    %c0_i32_0 = arith.constant 0 : i32
    %c0_i32_1 = arith.constant 0 : i32
    return %c0_i32, %c0_i32_0 : i32, i32
  }
  func.func @transform_4(%arg0: i32) -> (i32, i32) {
    %c0_i32 = arith.constant 0 : i32
    %c0_i32_0 = arith.constant 0 : i32
    %c0_i32_1 = arith.constant 0 : i32
    return %c0_i32, %c0_i32_0 : i32, i32
  }
  func.func @transform_5(%arg0: i32) -> (i32, i32, i32) {
    %c0_i32 = arith.constant 0 : i32
    %c0_i32_0 = arith.constant 0 : i32
    %c0_i32_1 = arith.constant 0 : i32
    return %arg0, %c0_i32, %c0_i32_0 : i32, i32, i32
  }
  func.func @transform_6(%arg0: i32) -> (i32, i32, i32) {
    %c0_i32 = arith.constant 0 : i32
    %c0_i32_0 = arith.constant 0 : i32
    %c0_i32_1 = arith.constant 0 : i32
    return %arg0, %c0_i32, %c0_i32_0 : i32, i32, i32
  }
}

</mosaic_0001>

<llo_original>
// kernel: tpu_custom_call.1
$region0: #{tpu_custom_call.1}
  #allocation0 [shape = 'u32[]', space=smem, size = 0x4, offset = 0x4, fixed_abs, tag = 'smem constant byte address 0x4 - core index']
  #allocation1 [shape = 'u32[144,128]{1,0:T(1,128)}', space=vmem, size = 0x12000, scoped, tag = 'internal scratch']
  %s0 = inlined_call_operand.vmem [shape: bf16[4,18,18,4], index: 0, kind: input, shape index: {}]
  %s1 = inlined_call_operand.vmem [shape: f32[9,4,64], index: 1, kind: input, shape index: {}]
  %s2 = inlined_call_operand.vmem [shape: f32[1,64], index: 2, kind: input, shape index: {}]
  %s3 = inlined_call_operand.vmem [shape: f32[64,16], index: 3, kind: input, shape index: {}]
  %s4 = inlined_call_operand.vmem [shape: f32[1,16], index: 4, kind: input, shape index: {}]
  %s5 = inlined_call_operand.vmem [shape: f32[4,256,64], index: 5, kind: output, shape index: {0}]
  %s6 = inlined_call_operand.hbm [shape: f32[4,1,16], index: 6, kind: output, shape index: {1}]
  %7 = xla_tuple %s5, %s6
  %s8 = sld [smem:[#allocation0]]
  $region61: #{tpu_custom_call.1} parent=0
    _
  %s10 = ssub.s32 1, %s8
  %s11 = scalar_select 0, %s10, %s8
  $region1: #{tpu_custom_call.1} parent=0
    #allocation2 [shape = 'u8[1024]{0}', space=vmem, size = 0x400, scoped, tag = 'output window, operand 1']
    #allocation3 [shape = 's32[2]{0}', space=sflag, size = 0x8, scoped, tag = 'scoped memory for tpu_custom_call.1']
    %12 = vsyncpa [#allocation3], 0
    %s13 = scalar_lea.sflag [#allocation3], 1
    %14 = vsyncpa %s13, 0
    loop: start=0, step=1, limit=6
    $region2: #{tpu_custom_call.1} parent=1 // loop_pre_header
      _
    $region3: #{tpu_custom_call.1} parent=1 // loop_header
      %s16 = sphi 0, %s20
      %p17 = scmp.ge.s32.totalorder %s16, 6
      %s26 = sphi 0, %s28
      %s29 = sphi 0, %s26
      %s30 = sphi 0, %s29
      %s46 = sphi 0, %s30
      %s50 = sphi 0, %s50
      %s52 = sphi 0, %s50
      %s53 = sphi 0, %s52
      %s67 = sphi 0, %s53
      %s71 = sphi 0, %s71
      %s73 = sphi 0, %s71
      %s74 = sphi 0, %s73
      %s88 = sphi 0, %s74
      %s92 = sphi 0, %s92
      %s94 = sphi 0, %s92
      %s95 = sphi 0, %s94
      %s109 = sphi 0, %s95
      %s113 = sphi 0, %s113
      %s115 = sphi 0, %s113
      %s116 = sphi 0, %s115
      %s130 = sphi 0, %s116
      %s136 = sphi 0, %s138
      %s139 = sphi 0, %s136
      %s140 = sphi 0, %s139
      %s156 = sphi 0, %s140
      %s162 = sphi 0, %s164
      %s165 = sphi 0, %s162
      %s166 = sphi 0, %s165
      %s182 = sphi 0, %s166
    $region4: #{tpu_custom_call.1} parent=1 // loop_header_branch
      %19 = sbr.rel (%p17) target = $region8
    $region5: #{tpu_custom_call.1} parent=1 // loop_body
      %s21 = ssub.s32 %s16, 1
      %s22 = ssub.s32 %s16, 2
      %s23 = sadd.s32 %s16, 1
      %s24 = ssub.s32 %s16, %s23
      %p25 = scmp.eq.s32.totalorder %s24, 0
      %s27 = sadd.s32 %s26, 1
      %s28 = scalar_select %p25, %s26, %s27
      %p31 = pneg %p25
      %p32 = scmp.eq.s32.totalorder %s16, 3
      %p33 = por %p31, %p32
      %p34 = scmp.ne.s32.totalorder %s26, %s29
      %p35 = scmp.eq.s32.totalorder %s16, 0
      %p36 = por %p34, %p35
      %p37 = scmp.ne.s32.totalorder %s26, %s29
      %p38 = scmp.eq.s32.totalorder %s21, 3
      %p39 = por %p37, %p38
      %p40 = scmp.ne.s32.totalorder %s29, %s30
      %p41 = scmp.eq.s32.totalorder %s21, 0
      %p42 = por %p40, %p41
      %p43 = scmp.ne.s32.totalorder %s29, %s30
      %p44 = scmp.eq.s32.totalorder %s22, 3
      %p45 = por %p43, %p44
      %p47 = scmp.ne.s32.totalorder %s30, %s46
      %p48 = scmp.eq.s32.totalorder %s22, 0
      %p49 = por %p47, %p48
      %s51 = sadd.s32 %s50, 1
      %p54 = scmp.eq.s32.totalorder %s16, 3
      %p55 = scmp.ne.s32.totalorder %s50, %s52
      %p56 = scmp.eq.s32.totalorder %s16, 0
      %p57 = por %p55, %p56
      %p58 = scmp.ne.s32.totalorder %s50, %s52
      %p59 = scmp.eq.s32.totalorder %s21, 3
      %p60 = por %p58, %p59
      %p61 = scmp.ne.s32.totalorder %s52, %s53
      %p62 = scmp.eq.s32.totalorder %s21, 0
      %p63 = por %p61, %p62
      %p64 = scmp.ne.s32.totalorder %s52, %s53
      %p65 = scmp.eq.s32.totalorder %s22, 3
      %p66 = por %p64, %p65
      %p68 = scmp.ne.s32.totalorder %s53, %s67
      %p69 = scmp.eq.s32.totalorder %s22, 0
      %p70 = por %p68, %p69
      %s72 = sadd.s32 %s71, 1
      %p75 = scmp.eq.s32.totalorder %s16, 3
      %p76 = scmp.ne.s32.totalorder %s71, %s73
      %p77 = scmp.eq.s32.totalorder %s16, 0
      %p78 = por %p76, %p77
      %p79 = scmp.ne.s32.totalorder %s71, %s73
      %p80 = scmp.eq.s32.totalorder %s21, 3
      %p81 = por %p79, %p80
      %p82 = scmp.ne.s32.totalorder %s73, %s74
      %p83 = scmp.eq.s32.totalorder %s21, 0
      %p84 = por %p82, %p83
      %p85 = scmp.ne.s32.totalorder %s73, %s74
      %p86 = scmp.eq.s32.totalorder %s22, 3
      %p87 = por %p85, %p86
      %p89 = scmp.ne.s32.totalorder %s74, %s88
      %p90 = scmp.eq.s32.totalorder %s22, 0
      %p91 = por %p89, %p90
      %s93 = sadd.s32 %s92, 1
      %p96 = scmp.eq.s32.totalorder %s16, 3
      %p97 = scmp.ne.s32.totalorder %s92, %s94
      %p98 = scmp.eq.s32.totalorder %s16, 0
      %p99 = por %p97, %p98
      %p100 = scmp.ne.s32.totalorder %s92, %s94
      %p101 = scmp.eq.s32.totalorder %s21, 3
      %p102 = por %p100, %p101
      %p103 = scmp.ne.s32.totalorder %s94, %s95
      %p104 = scmp.eq.s32.totalorder %s21, 0
      %p105 = por %p103, %p104
      %p106 = scmp.ne.s32.totalorder %s94, %s95
      %p107 = scmp.eq.s32.totalorder %s22, 3
      %p108 = por %p106, %p107
      %p110 = scmp.ne.s32.totalorder %s95, %s109
      %p111 = scmp.eq.s32.totalorder %s22, 0
      %p112 = por %p110, %p111
      %s114 = sadd.s32 %s113, 1
      %p117 = scmp.eq.s32.totalorder %s16, 3
      %p118 = scmp.ne.s32.totalorder %s113, %s115
      %p119 = scmp.eq.s32.totalorder %s16, 0
      %p120 = por %p118, %p119
      %p121 = scmp.ne.s32.totalorder %s113, %s115
      %p122 = scmp.eq.s32.totalorder %s21, 3
      %p123 = por %p121, %p122
      %p124 = scmp.ne.s32.totalorder %s115, %s116
      %p125 = scmp.eq.s32.totalorder %s21, 0
      %p126 = por %p124, %p125
      %p127 = scmp.ne.s32.totalorder %s115, %s116
      %p128 = scmp.eq.s32.totalorder %s22, 3
      %p129 = por %p127, %p128
      %p131 = scmp.ne.s32.totalorder %s116, %s130
      %p132 = scmp.eq.s32.totalorder %s22, 0
      %p133 = por %p131, %p132
      %s134 = ssub.s32 %s16, %s23
      %p135 = scmp.eq.s32.totalorder %s134, 0
      %s137 = sadd.s32 %s136, 1
      %s138 = scalar_select %p135, %s136, %s137
      %p141 = pneg %p135
      %p142 = scmp.eq.s32.totalorder %s16, 3
      %p143 = por %p141, %p142
      %p144 = scmp.ne.s32.totalorder %s136, %s139
      %p145 = scmp.eq.s32.totalorder %s16, 0
      %p146 = por %p144, %p145
      %p147 = scmp.ne.s32.totalorder %s136, %s139
      %p148 = scmp.eq.s32.totalorder %s21, 3
      %p149 = por %p147, %p148
      %p150 = scmp.ne.s32.totalorder %s139, %s140
      %p151 = scmp.eq.s32.totalorder %s21, 0
      %p152 = por %p150, %p151
      %p153 = scmp.ne.s32.totalorder %s139, %s140
      %p154 = scmp.eq.s32.totalorder %s22, 3
      %p155 = por %p153, %p154
      %p157 = scmp.ne.s32.totalorder %s140, %s156
      %p158 = scmp.eq.s32.totalorder %s22, 0
      %p159 = por %p157, %p158
      %s160 = ssub.s32 %s16, %s23
      %p161 = scmp.eq.s32.totalorder %s160, 0
      %s163 = sadd.s32 %s162, 1
      %s164 = scalar_select %p161, %s162, %s163
      %p167 = pneg %p161
      %p168 = scmp.eq.s32.totalorder %s16, 3
      %p169 = por %p167, %p168
      %p170 = scmp.ne.s32.totalorder %s162, %s165
      %p171 = scmp.eq.s32.totalorder %s16, 0
      %p172 = por %p170, %p171
      %p173 = scmp.ne.s32.totalorder %s162, %s165
      %p174 = scmp.eq.s32.totalorder %s21, 3
      %p175 = por %p173, %p174
      %p176 = scmp.ne.s32.totalorder %s165, %s166
      %p177 = scmp.eq.s32.totalorder %s21, 0
      %p178 = por %p176, %p177
      %p179 = scmp.ne.s32.totalorder %s165, %s166
      %p180 = scmp.eq.s32.totalorder %s22, 3
      %p181 = por %p179, %p180
      %p183 = scmp.ne.s32.totalorder %s166, %s182
      %p184 = scmp.eq.s32.totalorder %s22, 0
      %p185 = por %p183, %p184
      %p186 = scmp.le.s32.totalorder 1, %s16
      %p187 = scmp.lt.s32.totalorder %s16, 5
      %p188 = pnand %p186, %p187
      %p189 = pneg %p188
      // Predicated region
      $region9: #{tpu_custom_call.1} parent=5 // pred_check
        _
      $region10: #{tpu_custom_call.1} parent=5 // pred_check_branch
        %191 = sbr.rel (%p188) target = $region12
      $region11: #{tpu_custom_call.1} parent=5 // pred_region
        %s192 = ssub.s32 %s16, 1
        // Predicated region
        $region13: #{tpu_custom_call.1} parent=11 // pred_check
          %p193 = pneg %p63
        $region14: #{tpu_custom_call.1} parent=11 // pred_check_branch
          %195 = sbr.rel (%p193) target = $region16
        $region15: #{tpu_custom_call.1} parent=11 // pred_region
          _
        $region16: #{tpu_custom_call.1} parent=11 // pred_fallthru
          _
        // Predicated region
        $region17: #{tpu_custom_call.1} parent=11 // pred_check
          %p196 = pneg %p84
        $region18: #{tpu_custom_call.1} parent=11 // pred_check_branch
          %198 = sbr.rel (%p196) target = $region20
        $region19: #{tpu_custom_call.1} parent=11 // pred_region
          _
        $region20: #{tpu_custom_call.1} parent=11 // pred_fallthru
          _
        // Predicated region
        $region21: #{tpu_custom_call.1} parent=11 // pred_check
          %p199 = pneg %p105
        $region22: #{tpu_custom_call.1} parent=11 // pred_check_branch
          %201 = sbr.rel (%p199) target = $region24
        $region23: #{tpu_custom_call.1} parent=11 // pred_region
          _
        $region24: #{tpu_custom_call.1} parent=11 // pred_fallthru
          _
        // Predicated region
        $region25: #{tpu_custom_call.1} parent=11 // pred_check
          %p202 = pneg %p126
        $region26: #{tpu_custom_call.1} parent=11 // pred_check_branch
          %204 = sbr.rel (%p202) target = $region28
        $region27: #{tpu_custom_call.1} parent=11 // pred_region
          _
        $region28: #{tpu_custom_call.1} parent=11 // pred_fallthru
          _
      $region12: #{tpu_custom_call.1} parent=5 // pred_fallthru
        _
      %p205 = scmp.lt.s32.totalorder %s16, 4
      // Predicated region
      $region29: #{tpu_custom_call.1} parent=5 // pred_check
        %p206 = pneg %p205
      $region30: #{tpu_custom_call.1} parent=5 // pred_check_branch
        %208 = sbr.rel (%p206) target = $region32
      $region31: #{tpu_custom_call.1} parent=5 // pred_region
        // Predicated region
        $region33: #{tpu_custom_call.1} parent=31 // pred_check
          %p209 = pneg %p36
        $region34: #{tpu_custom_call.1} parent=31 // pred_check_branch
          %211 = sbr.rel (%p209) target = $region36
        $region35: #{tpu_custom_call.1} parent=31 // pred_region
          %p212 = scmp.lt.s32.totalorder %s16, 3
          %s213 = scalar_select %p212, %s16, 3
          %s214 = smul.addr %s213, 54
          %s215 = smul.addr %s214, 4
          %s216 = scalar_lea.vmem %s0, %s215
        $region36: #{tpu_custom_call.1} parent=31 // pred_fallthru
          _
      $region32: #{tpu_custom_call.1} parent=5 // pred_fallthru
        _
      %p217 = scmp.le.s32.totalorder 1, %s16
      %p218 = scmp.lt.s32.totalorder %s16, 5
      %p219 = pnand %p217, %p218
      %p220 = pneg %p219
      // Predicated region
      $region37: #{tpu_custom_call.1} parent=5 // pred_check
        _
      $region38: #{tpu_custom_call.1} parent=5 // pred_check_branch
        %222 = sbr.rel (%p219) target = $region40
      $region39: #{tpu_custom_call.1} parent=5 // pred_region
        %s223 = ssub.s32 %s16, 1
        %p224 = scmp.lt.s32.totalorder %s21, 3
        %s225 = scalar_select %p224, %s21, 3
        %s226 = smul.addr %s225, 54
        %s227 = smul.addr %s226, 4
        %s228 = scalar_lea.vmem %s0, %s227
        %p229 = pneg %p42
        %p230 = pneg %p39
        %p231 = pneg %p63
        %p232 = pneg %p60
        %p233 = pneg %p84
        %p234 = pneg %p81
        %p235 = pneg %p105
        %p236 = pneg %p102
        %p237 = pneg %p126
        %p238 = pneg %p123
        %p239 = pneg %p152
        %p240 = pneg %p149
        %p241 = scmp.lt.s32.totalorder %s21, 3
        %s242 = scalar_select %p241, %s21, 3
        %s243 = smul.addr %s242, 32
        %s244 = smul.addr %s243, 8
        %s245 = scalar_lea.vmem %s5, %s244
        %p246 = pneg %p178
        %p247 = pneg %p175
        %s248 = sand.u32 %s165, 1
        %s249 = scalar_lea.sflag [#allocation3], %s248
        %s250 = sand.u32 %s165, 1
        %s251 = scalar_lea.vmem [#allocation2], %s250
        %p252 = scmp.lt.s32.totalorder %s21, 3
        %s253 = scalar_select %p252, %s21, 3
        %s254 = smul.addr %s253, 54
        %s255 = smul.addr %s254, 4
        %s256 = scalar_lea.vmem %s0, %s255
        %p257 = scmp.lt.s32.totalorder %s21, 3
        %s258 = scalar_select %p257, %s21, 3
        %s259 = smul.addr %s258, 32
        %s260 = smul.addr %s259, 8
        %s261 = scalar_lea.vmem %s5, %s260
        %v262 = vld [vmem:[%s256] sm:$0xf]
        %v263 = vld [vmem:[%s256 + $0x4] sm:$0xf]
        %v264 = vld [vmem:[%s256 + $0x8] sm:$0x1]
        %v265 = vld [vmem:[%s256 + $0xc] sm:$0xf]
        %v266 = vld [vmem:[%s256 + $0x10] sm:$0xf]
        %v267 = vld [vmem:[%s256 + $0x14] sm:$0x1]
        %v268 = vld [vmem:[%s256 + $0x18] sm:$0xf]
        %v269 = vld [vmem:[%s256 + $0x1c] sm:$0xf]
        %v270 = vld [vmem:[%s256 + $0x20] sm:$0x1]
        %v271 = vld [vmem:[%s256 + $0x24] sm:$0xf]
        %v272 = vld [vmem:[%s256 + $0x28] sm:$0xf]
        %v273 = vld [vmem:[%s256 + $0x2c] sm:$0x1]
        %v274 = vld [vmem:[%s256 + $0x30] sm:$0xf]
        %v275 = vld [vmem:[%s256 + $0x34] sm:$0xf]
        %v276 = vld [vmem:[%s256 + $0x38] sm:$0x1]
        %v277 = vld [vmem:[%s256 + $0x3c] sm:$0xf]
        %v278 = vld [vmem:[%s256 + $0x40] sm:$0xf]
        %v279 = vld [vmem:[%s256 + $0x44] sm:$0x1]
        %v280 = vld [vmem:[%s256 + $0x48] sm:$0xf]
        %v281 = vld [vmem:[%s256 + $0x4c] sm:$0xf]
        %v282 = vld [vmem:[%s256 + $0x50] sm:$0x1]
        %v283 = vld [vmem:[%s256 + $0x54] sm:$0xf]
        %v284 = vld [vmem:[%s256 + $0x58] sm:$0xf]
        %v285 = vld [vmem:[%s256 + $0x5c] sm:$0x1]
        %v286 = vld [vmem:[%s256 + $0x60] sm:$0xf]
        %v287 = vld [vmem:[%s256 + $0x64] sm:$0xf]
        %v288 = vld [vmem:[%s256 + $0x68] sm:$0x1]
        %v289 = vld [vmem:[%s256 + $0x6c] sm:$0xf]
        %v290 = vld [vmem:[%s256 + $0x70] sm:$0xf]
        %v291 = vld [vmem:[%s256 + $0x74] sm:$0x1]
        %v292 = vld [vmem:[%s256 + $0x78] sm:$0xf]
        %v293 = vld [vmem:[%s256 + $0x7c] sm:$0xf]
        %v294 = vld [vmem:[%s256 + $0x80] sm:$0x1]
        %v295 = vld [vmem:[%s256 + $0x84] sm:$0xf]
        %v296 = vld [vmem:[%s256 + $0x88] sm:$0xf]
        %v297 = vld [vmem:[%s256 + $0x8c] sm:$0x1]
        %v298 = vld [vmem:[%s256 + $0x90] sm:$0xf]
        %v299 = vld [vmem:[%s256 + $0x94] sm:$0xf]
        %v300 = vld [vmem:[%s256 + $0x98] sm:$0x1]
        %v301 = vld [vmem:[%s256 + $0x9c] sm:$0xf]
        %v302 = vld [vmem:[%s256 + $0xa0] sm:$0xf]
        %v303 = vld [vmem:[%s256 + $0xa4] sm:$0x1]
        %v304 = vld [vmem:[%s256 + $0xa8] sm:$0xf]
        %v305 = vld [vmem:[%s256 + $0xac] sm:$0xf]
        %v306 = vld [vmem:[%s256 + $0xb0] sm:$0x1]
        %v307 = vld [vmem:[%s256 + $0xb4] sm:$0xf]
        %v308 = vld [vmem:[%s256 + $0xb8] sm:$0xf]
        %v309 = vld [vmem:[%s256 + $0xbc] sm:$0x1]
        %v310 = vld [vmem:[%s256 + $0xc0] sm:$0xf]
        %v311 = vld [vmem:[%s256 + $0xc4] sm:$0xf]
        %v312 = vld [vmem:[%s256 + $0xc8] sm:$0x1]
        %v313 = vld [vmem:[%s256 + $0xcc] sm:$0xf]
        %v314 = vld [vmem:[%s256 + $0xd0] sm:$0xf]
        %v315 = vld [vmem:[%s256 + $0xd4] sm:$0x1]
        %v316 = vunpack.c.l.bf16 %v262
        %v317 = vunpack.c.l.bf16 %v263
        %v318 = vunpack.c.l.bf16 %v264
        %v319 = vunpack.c.l.bf16 %v265
        %v320 = vunpack.c.l.bf16 %v266
        %v321 = vunpack.c.l.bf16 %v267
        %v322 = vunpack.c.l.bf16 %v268
        %v323 = vunpack.c.l.bf16 %v269
        %v324 = vunpack.c.l.bf16 %v270
        %v325 = vunpack.c.l.bf16 %v271
        %v326 = vunpack.c.l.bf16 %v272
        %v327 = vunpack.c.l.bf16 %v273
        %v328 = vunpack.c.l.bf16 %v274
        %v329 = vunpack.c.l.bf16 %v275
        %v330 = vunpack.c.l.bf16 %v276
        %v331 = vunpack.c.l.bf16 %v277
        %v332 = vunpack.c.l.bf16 %v278
        %v333 = vunpack.c.l.bf16 %v279
        %v334 = vunpack.c.l.bf16 %v280
        %v335 = vunpack.c.l.bf16 %v281
        %v336 = vunpack.c.l.bf16 %v282
        %v337 = vunpack.c.l.bf16 %v283
        %v338 = vunpack.c.l.bf16 %v284
        %v339 = vunpack.c.l.bf16 %v285
        %v340 = vunpack.c.l.bf16 %v286
        %v341 = vunpack.c.l.bf16 %v287
        %v342 = vunpack.c.l.bf16 %v288
        %v343 = vunpack.c.l.bf16 %v289
        %v344 = vunpack.c.l.bf16 %v290
        %v345 = vunpack.c.l.bf16 %v291
        %v346 = vunpack.c.l.bf16 %v292
        %v347 = vunpack.c.l.bf16 %v293
        %v348 = vunpack.c.l.bf16 %v294
        %v349 = vunpack.c.l.bf16 %v295
        %v350 = vunpack.c.l.bf16 %v296
        %v351 = vunpack.c.l.bf16 %v297
        %v352 = vunpack.c.l.bf16 %v298
        %v353 = vunpack.c.l.bf16 %v299
        %v354 = vunpack.c.l.bf16 %v300
        %v355 = vunpack.c.l.bf16 %v301
        %v356 = vunpack.c.l.bf16 %v302
        %v357 = vunpack.c.l.bf16 %v303
        %v358 = vunpack.c.l.bf16 %v304
        %v359 = vunpack.c.l.bf16 %v305
        %v360 = vunpack.c.l.bf16 %v306
        %v361 = vunpack.c.l.bf16 %v307
        %v362 = vunpack.c.l.bf16 %v308
        %v363 = vunpack.c.l.bf16 %v309
        %v364 = vunpack.c.l.bf16 %v310
        %v365 = vunpack.c.l.bf16 %v311
        %v366 = vunpack.c.l.bf16 %v312
        %v367 = vunpack.c.l.bf16 %v313
        %v368 = vunpack.c.l.bf16 %v314
        %v369 = vunpack.c.l.bf16 %v315
        %v370 = vld [vmem:[%s1] sm:$0xf]
        %vm419 = vcmask 1046528
        %v420 = vrot.slane %v316, 1
        %v421 = vrot.slane %v317, 1
        %v422 = vsel %vm419, %v420, %v421
        %v423 = vrot.slane %v318, 1
        %v424 = vsel %vm419, %v421, %v423
        %v425 = vrot.slane %v319, 1
        %v426 = vrot.slane %v320, 1
        %v427 = vsel %vm419, %v425, %v426
        %v428 = vrot.slane %v321, 1
        %v429 = vsel %vm419, %v426, %v428
        %v430 = vrot.slane %v322, 1
        %v431 = vrot.slane %v323, 1
        %v432 = vsel %vm419, %v430, %v431
        %v433 = vrot.slane %v324, 1
        %v434 = vsel %vm419, %v431, %v433
        %v435 = vrot.slane %v325, 1
        %v436 = vrot.slane %v326, 1
        %v437 = vsel %vm419, %v435, %v436
        %v438 = vrot.slane %v327, 1
        %v439 = vsel %vm419, %v436, %v438
        %v440 = vrot.slane %v328, 1
        %v441 = vrot.slane %v329, 1
        %v442 = vsel %vm419, %v440, %v441
        %v443 = vrot.slane %v330, 1
        %v444 = vsel %vm419, %v441, %v443
        %v445 = vrot.slane %v331, 1
        %v446 = vrot.slane %v332, 1
        %v447 = vsel %vm419, %v445, %v446
        %v448 = vrot.slane %v333, 1
        %v449 = vsel %vm419, %v446, %v448
        %v450 = vrot.slane %v334, 1
        %v451 = vrot.slane %v335, 1
        %v452 = vsel %vm419, %v450, %v451
        %v453 = vrot.slane %v336, 1
        %v454 = vsel %vm419, %v451, %v453
        %v455 = vrot.slane %v337, 1
        %v456 = vrot.slane %v338, 1
        %v457 = vsel %vm419, %v455, %v456
        %v458 = vrot.slane %v339, 1
        %v459 = vsel %vm419, %v456, %v458
        %v460 = vrot.slane %v340, 1
        %v461 = vrot.slane %v341, 1
        %v462 = vsel %vm419, %v460, %v461
        %v463 = vrot.slane %v342, 1
        %v464 = vsel %vm419, %v461, %v463
        %v465 = vrot.slane %v343, 1
        %v466 = vrot.slane %v344, 1
        %v467 = vsel %vm419, %v465, %v466
        %v468 = vrot.slane %v345, 1
        %v469 = vsel %vm419, %v466, %v468
        %v470 = vrot.slane %v346, 1
        %v471 = vrot.slane %v347, 1
        %v472 = vsel %vm419, %v470, %v471
        %v473 = vrot.slane %v348, 1
        %v474 = vsel %vm419, %v471, %v473
        %v475 = vrot.slane %v349, 1
        %v476 = vrot.slane %v350, 1
        %v477 = vsel %vm419, %v475, %v476
        %v478 = vrot.slane %v351, 1
        %v479 = vsel %vm419, %v476, %v478
        %v480 = vrot.slane %v352, 1
        %v481 = vrot.slane %v353, 1
        %v482 = vsel %vm419, %v480, %v481
        %v483 = vrot.slane %v354, 1
        %v484 = vsel %vm419, %v481, %v483
        %v485 = vrot.slane %v355, 1
        %v486 = vrot.slane %v356, 1
        %v487 = vsel %vm419, %v485, %v486
        %v488 = vrot.slane %v357, 1
        %v489 = vsel %vm419, %v486, %v488
        %v490 = vrot.slane %v358, 1
        %v491 = vrot.slane %v359, 1
        %v492 = vsel %vm419, %v490, %v491
        %v493 = vrot.slane %v360, 1
        %v494 = vsel %vm419, %v491, %v493
        %v495 = vrot.slane %v361, 1
        %v496 = vrot.slane %v362, 1
        %v497 = vsel %vm419, %v495, %v496
        %v498 = vrot.slane %v363, 1
        %v499 = vsel %vm419, %v496, %v498
        %s500 = scalar_lea.vmem %s1, 4
        %v501 = vld [vmem:[%s500] sm:$0xf]
        %vm502 = vcmask 31744
        %v503 = vsel %vm502, %v422, 0
        %v505 = vsel %vm502, %v424, 0
        %v507 = vsel %vm502, %v427, 0
        %v509 = vsel %vm502, %v429, 0
        %v511 = vsel %vm502, %v432, 0
        %v513 = vsel %vm502, %v434, 0
        %v515 = vsel %vm502, %v437, 0
        %v517 = vsel %vm502, %v439, 0
        %v519 = vsel %vm502, %v442, 0
        %v521 = vsel %vm502, %v444, 0
        %v523 = vsel %vm502, %v447, 0
        %v525 = vsel %vm502, %v449, 0
        %v527 = vsel %vm502, %v452, 0
        %v529 = vsel %vm502, %v454, 0
        %v531 = vsel %vm502, %v457, 0
        %v533 = vsel %vm502, %v459, 0
        %v535 = vsel %vm502, %v462, 0
        %v537 = vsel %vm502, %v464, 0
        %v539 = vsel %vm502, %v467, 0
        %v541 = vsel %vm502, %v469, 0
        %v543 = vsel %vm502, %v472, 0
        %v545 = vsel %vm502, %v474, 0
        %v547 = vsel %vm502, %v477, 0
        %v549 = vsel %vm502, %v479, 0
        %v551 = vsel %vm502, %v482, 0
        %v553 = vsel %vm502, %v484, 0
        %v555 = vsel %vm502, %v487, 0
        %v557 = vsel %vm502, %v489, 0
        %v559 = vsel %vm502, %v492, 0
        %v561 = vsel %vm502, %v494, 0
        %v563 = vsel %vm502, %v497, 0
        %v565 = vsel %vm502, %v499, 0
        %vm567 = vcmask 1043456
        %v569 = vsel %vm567, %v501, 0
        %571 = vmatprep.subr.mxu0 0.0
        %572 = vmatpush1.msra.mxu0 %v569
        %573 = vmatprep.subr.mxu0 0.0
        %574 = vmatpush1.msra.mxu0 0.0
        %575 = vmatprep.subr.mxu0 0.0
        %576 = vmatpush1.msra.mxu0 0.0
        %577 = vmatprep.subr.mxu0 0.0
        %578 = vmatpush1.msra.mxu0 0.0
        %579 = vmatprep.subr.mxu0 0.0
        %580 = vmatpush1.msra.mxu0 0.0
        %581 = vmatprep.subr.mxu0 0.0
        %582 = vmatpush1.msra.mxu0 0.0
        %583 = vmatprep.subr.mxu0 0.0
        %584 = vmatpush1.msra.mxu0 0.0
        %585 = vmatprep.subr.mxu0 0.0
        %586 = vmatpush1.msra.mxu0 0.0
        %587 = vmatprep.subr.mxu0 0.0
        %588 = vmatpush1.msra.mxu0 0.0
        %589 = vmatprep.subr.mxu0 0.0
        %590 = vmatpush1.msra.mxu0 0.0
        %591 = vmatprep.subr.mxu0 0.0
        %592 = vmatpush1.msra.mxu0 0.0
        %593 = vmatprep.subr.mxu0 0.0
        %594 = vmatpush1.msra.mxu0 0.0
        %595 = vmatprep.subr.mxu0 0.0
        %596 = vmatpush1.msra.mxu0 0.0
        %597 = vmatprep.subr.mxu0 0.0
        %598 = vmatpush1.msra.mxu0 0.0
        %599 = vmatprep.subr.mxu0 0.0
        %600 = vmatpush1.msra.mxu0 0.0
        %601 = vmatprep.subr.mxu0 0.0
        %602 = vmatpush1.msra.mxu0 0.0
        %603 = vmatprep.subr.mxu0 0.0
        %604 = vmatpush1.msra.mxu0 0.0
        %605 = vmatprep.subr.mxu0 0.0
        %606 = vmatpush1.msra.mxu0 0.0
        %607 = vmatprep.subr.mxu0 0.0
        %608 = vmatpush1.msra.mxu0 0.0
        %609 = vmatprep.subr.mxu0 0.0
        %610 = vmatpush1.msra.mxu0 0.0
        %611 = vmatprep.subr.mxu0 0.0
        %612 = vmatpush1.msra.mxu0 0.0
        %613 = vmatprep.subr.mxu0 0.0
        %614 = vmatpush1.msra.mxu0 0.0
        %615 = vmatprep.subr.mxu0 0.0
        %616 = vmatpush1.msra.mxu0 0.0
        %617 = vmatprep.subr.mxu0 0.0
        %618 = vmatpush1.msra.mxu0 0.0
        %619 = vmatprep.subr.mxu0 0.0
        %620 = vmatpush1.msra.mxu0 0.0
        %621 = vmatprep.subr.mxu0 0.0
        %622 = vmatpush1.msra.mxu0 0.0
        %623 = vmatprep.subr.mxu0 0.0
        %624 = vmatpush1.msra.mxu0 0.0
        %625 = vmatprep.subr.mxu0 0.0
        %626 = vmatpush1.msra.mxu0 0.0
        %627 = vmatprep.subr.mxu0 0.0
        %628 = vmatpush1.msra.mxu0 0.0
        %629 = vmatprep.subr.mxu0 0.0
        %630 = vmatpush1.msra.mxu0 0.0
        %631 = vmatprep.subr.mxu0 0.0
        %632 = vmatpush1.msra.mxu0 0.0
        %633 = vmatprep.subr.mxu0 0.0
        %634 = vmatpush1.msra.mxu0 0.0
        %635 = vmatprep.mubr.f32.mxu0 0.0
        %636 = vmatmul.mubr.f32.gmra.mrb[0].mxu0 %v503
        %v637 = vpop.f32.mrb[0].mxu0
        %v638 = vadd.f32 0.0, %v637
        %v639 = vpop.f32.mrb[0].mxu0
        %640 = vmatprep.mubr.f32.mxu0 0.0
        %641 = vmatmul.mubr.f32.gmra.mrb[0].mxu0 %v505
        %v642 = vpop.f32.mrb[0].mxu0
        %v643 = vadd.f32 0.0, %v642
        %v644 = vpop.f32.mrb[0].mxu0
        %645 = vmatprep.mubr.f32.mxu0 0.0
        %646 = vmatmul.mubr.f32.gmra.mrb[0].mxu0 %v507
        %v647 = vpop.f32.mrb[0].mxu0
        %v648 = vadd.f32 0.0, %v647
        %v649 = vpop.f32.mrb[0].mxu0
        %650 = vmatprep.mubr.f32.mxu0 0.0
        %651 = vmatmul.mubr.f32.gmra.mrb[0].mxu0 %v509
        %v652 = vpop.f32.mrb[0].mxu0
        %v653 = vadd.f32 0.0, %v652
        %v654 = vpop.f32.mrb[0].mxu0
        %655 = vmatprep.mubr.f32.mxu0 0.0
        %656 = vmatmul.mubr.f32.gmra.mrb[0].mxu0 %v511
        %v657 = vpop.f32.mrb[0].mxu0
        %v658 = vadd.f32 0.0, %v657
        %v659 = vpop.f32.mrb[0].mxu0
        %660 = vmatprep.mubr.f32.mxu0 0.0
        %661 = vmatmul.mubr.f32.gmra.mrb[0].mxu0 %v513
        %v662 = vpop.f32.mrb[0].mxu0
        %v663 = vadd.f32 0.0, %v662
        %v664 = vpop.f32.mrb[0].mxu0
        %665 = vmatprep.mubr.f32.mxu0 0.0
        %666 = vmatmul.mubr.f32.gmra.mrb[0].mxu0 %v515
        %v667 = vpop.f32.mrb[0].mxu0
        %v668 = vadd.f32 0.0, %v667
        %v669 = vpop.f32.mrb[0].mxu0
        %670 = vmatprep.mubr.f32.mxu0 0.0
        %671 = vmatmul.mubr.f32.gmra.mrb[0].mxu0 %v517
        %v672 = vpop.f32.mrb[0].mxu0
        %v673 = vadd.f32 0.0, %v672
        %v674 = vpop.f32.mrb[0].mxu0
        %675 = vmatprep.mubr.f32.mxu0 0.0
        %676 = vmatmul.mubr.f32.gmra.mrb[0].mxu0 %v519
        %v677 = vpop.f32.mrb[0].mxu0
        %v678 = vadd.f32 0.0, %v677
        %v679 = vpop.f32.mrb[0].mxu0
        %680 = vmatprep.mubr.f32.mxu0 0.0
        %681 = vmatmul.mubr.f32.gmra.mrb[0].mxu0 %v521
        %v682 = vpop.f32.mrb[0].mxu0
        %v683 = vadd.f32 0.0, %v682
        %v684 = vpop.f32.mrb[0].mxu0
        %685 = vmatprep.mubr.f32.mxu0 0.0
        %686 = vmatmul.mubr.f32.gmra.mrb[0].mxu0 %v523
        %v687 = vpop.f32.mrb[0].mxu0
        %v688 = vadd.f32 0.0, %v687
        %v689 = vpop.f32.mrb[0].mxu0
        %690 = vmatprep.mubr.f32.mxu0 0.0
        %691 = vmatmul.mubr.f32.gmra.mrb[0].mxu0 %v525
        %v692 = vpop.f32.mrb[0].mxu0
        %v693 = vadd.f32 0.0, %v692
        %v694 = vpop.f32.mrb[0].mxu0
        %695 = vmatprep.mubr.f32.mxu0 0.0
        %696 = vmatmul.mubr.f32.gmra.mrb[0].mxu0 %v527
        %v697 = vpop.f32.mrb[0].mxu0
        %v698 = vadd.f32 0.0, %v697
        %v699 = vpop.f32.mrb[0].mxu0
        %700 = vmatprep.mubr.f32.mxu0 0.0
        %701 = vmatmul.mubr.f32.gmra.mrb[0].mxu0 %v529
        %v702 = vpop.f32.mrb[0].mxu0
        %v703 = vadd.f32 0.0, %v702
        %v704 = vpop.f32.mrb[0].mxu0
        %705 = vmatprep.mubr.f32.mxu0 0.0
        %706 = vmatmul.mubr.f32.gmra.mrb[0].mxu0 %v531
        %v707 = vpop.f32.mrb[0].mxu0
        %v708 = vadd.f32 0.0, %v707
        %v709 = vpop.f32.mrb[0].mxu0
        %710 = vmatprep.mubr.f32.mxu0 0.0
        %711 = vmatmul.mubr.f32.gmra.mrb[0].mxu0 %v533
        %v712 = vpop.f32.mrb[0].mxu0
        %v713 = vadd.f32 0.0, %v712
        %v714 = vpop.f32.mrb[0].mxu0
        %715 = vmatprep.mubr.f32.mxu0 0.0
        %716 = vmatmul.mubr.f32.gmra.mrb[0].mxu0 %v535
        %v717 = vpop.f32.mrb[0].mxu0
        %v718 = vadd.f32 0.0, %v717
        %v719 = vpop.f32.mrb[0].mxu0
        %720 = vmatprep.mubr.f32.mxu0 0.0
        %721 = vmatmul.mubr.f32.gmra.mrb[0].mxu0 %v537
        %v722 = vpop.f32.mrb[0].mxu0
        %v723 = vadd.f32 0.0, %v722
        %v724 = vpop.f32.mrb[0].mxu0
        %725 = vmatprep.mubr.f32.mxu0 0.0
        %726 = vmatmul.mubr.f32.gmra.mrb[0].mxu0 %v539
        %v727 = vpop.f32.mrb[0].mxu0
        %v728 = vadd.f32 0.0, %v727
        %v729 = vpop.f32.mrb[0].mxu0
        %730 = vmatprep.mubr.f32.mxu0 0.0
        %731 = vmatmul.mubr.f32.gmra.mrb[0].mxu0 %v541
        %v732 = vpop.f32.mrb[0].mxu0
        %v733 = vadd.f32 0.0, %v732
        %v734 = vpop.f32.mrb[0].mxu0
        %735 = vmatprep.mubr.f32.mxu0 0.0
        %736 = vmatmul.mubr.f32.gmra.mrb[0].mxu0 %v543
        %v737 = vpop.f32.mrb[0].mxu0
        %v738 = vadd.f32 0.0, %v737
        %v739 = vpop.f32.mrb[0].mxu0
        %740 = vmatprep.mubr.f32.mxu0 0.0
        %741 = vmatmul.mubr.f32.gmra.mrb[0].mxu0 %v545
        %v742 = vpop.f32.mrb[0].mxu0
        %v743 = vadd.f32 0.0, %v742
        %v744 = vpop.f32.mrb[0].mxu0
        %745 = vmatprep.mubr.f32.mxu0 0.0
        %746 = vmatmul.mubr.f32.gmra.mrb[0].mxu0 %v547
        %v747 = vpop.f32.mrb[0].mxu0
        %v748 = vadd.f32 0.0, %v747
        %v749 = vpop.f32.mrb[0].mxu0
        %750 = vmatprep.mubr.f32.mxu0 0.0
        %751 = vmatmul.mubr.f32.gmra.mrb[0].mxu0 %v549
        %v752 = vpop.f32.mrb[0].mxu0
        %v753 = vadd.f32 0.0, %v752
        %v754 = vpop.f32.mrb[0].mxu0
        %755 = vmatprep.mubr.f32.mxu0 0.0
        %756 = vmatmul.mubr.f32.gmra.mrb[0].mxu0 %v551
        %v757 = vpop.f32.mrb[0].mxu0
        %v758 = vadd.f32 0.0, %v757
        %v759 = vpop.f32.mrb[0].mxu0
        %760 = vmatprep.mubr.f32.mxu0 0.0
        %761 = vmatmul.mubr.f32.gmra.mrb[0].mxu0 %v553
        %v762 = vpop.f32.mrb[0].mxu0
        %v763 = vadd.f32 0.0, %v762
        %v764 = vpop.f32.mrb[0].mxu0
        %765 = vmatprep.mubr.f32.mxu0 0.0
        %766 = vmatmul.mubr.f32.gmra.mrb[0].mxu0 %v555
        %v767 = vpop.f32.mrb[0].mxu0
        %v768 = vadd.f32 0.0, %v767
        %v769 = vpop.f32.mrb[0].mxu0
        %770 = vmatprep.mubr.f32.mxu0 0.0
        %771 = vmatmul.mubr.f32.gmra.mrb[0].mxu0 %v557
        %v772 = vpop.f32.mrb[0].mxu0
        %v773 = vadd.f32 0.0, %v772
        %v774 = vpop.f32.mrb[0].mxu0
        %775 = vmatprep.mubr.f32.mxu0 0.0
        %776 = vmatmul.mubr.f32.gmra.mrb[0].mxu0 %v559
        %v777 = vpop.f32.mrb[0].mxu0
        %v778 = vadd.f32 0.0, %v777
        %v779 = vpop.f32.mrb[0].mxu0
        %780 = vmatprep.mubr.f32.mxu0 0.0
        %781 = vmatmul.mubr.f32.gmra.mrb[0].mxu0 %v561
        %v782 = vpop.f32.mrb[0].mxu0
        %v783 = vadd.f32 0.0, %v782
        %v784 = vpop.f32.mrb[0].mxu0
        %785 = vmatprep.mubr.f32.mxu0 0.0
        %786 = vmatmul.mubr.f32.gmra.mrb[0].mxu0 %v563
        %v787 = vpop.f32.mrb[0].mxu0
        %v788 = vadd.f32 0.0, %v787
        %v789 = vpop.f32.mrb[0].mxu0
        %790 = vmatprep.mubr.f32.mxu0 0.0
        %791 = vmatmul.mubr.f32.gmra.mrb[0].mxu0 %v565
        %v792 = vpop.f32.mrb[0].mxu0
        %v793 = vadd.f32 0.0, %v792
        %v794 = vpop.f32.mrb[0].mxu0
        %795 = vdwg.mxu0
        %v796 = vsel %vm502, %v316, 0
        %v798 = vsel %vm502, %v317, 0
        %v800 = vsel %vm502, %v319, 0
        %v802 = vsel %vm502, %v320, 0
        %v804 = vsel %vm502, %v322, 0
        %v806 = vsel %vm502, %v323, 0
        %v808 = vsel %vm502, %v325, 0
        %v810 = vsel %vm502, %v326, 0
        %v812 = vsel %vm502, %v328, 0
        %v814 = vsel %vm502, %v329, 0
        %v816 = vsel %vm502, %v331, 0
        %v818 = vsel %vm502, %v332, 0
        %v820 = vsel %vm502, %v334, 0
        %v822 = vsel %vm502, %v335, 0
        %v824 = vsel %vm502, %v337, 0
        %v826 = vsel %vm502, %v338, 0
        %v828 = vsel %vm502, %v340, 0
        %v830 = vsel %vm502, %v341, 0
        %v832 = vsel %vm502, %v343, 0
        %v834 = vsel %vm502, %v344, 0
        %v836 = vsel %vm502, %v346, 0
        %v838 = vsel %vm502, %v347, 0
        %v840 = vsel %vm502, %v349, 0
        %v842 = vsel %vm502, %v350, 0
        %v844 = vsel %vm502, %v352, 0
        %v846 = vsel %vm502, %v353, 0
        %v848 = vsel %vm502, %v355, 0
        %v850 = vsel %vm502, %v356, 0
        %v852 = vsel %vm502, %v358, 0
        %v854 = vsel %vm502, %v359, 0
        %v856 = vsel %vm502, %v361, 0
        %v858 = vsel %vm502, %v362, 0
        %v861 = vsel %vm567, %v370, 0
        %863 = vmatprep.subr.mxu0 0.0
        %864 = vmatpush1.msra.mxu0 %v861
        %865 = vmatprep.subr.mxu0 0.0
        %866 = vmatpush1.msra.mxu0 0.0
        %867 = vmatprep.subr.mxu0 0.0
        %868 = vmatpush1.msra.mxu0 0.0
        %869 = vmatprep.subr.mxu0 0.0
        %870 = vmatpush1.msra.mxu0 0.0
        %871 = vmatprep.subr.mxu0 0.0
        %872 = vmatpush1.msra.mxu0 0.0
        %873 = vmatprep.subr.mxu0 0.0
        %874 = vmatpush1.msra.mxu0 0.0
        %875 = vmatprep.subr.mxu0 0.0
        %876 = vmatpush1.msra.mxu0 0.0
        %877 = vmatprep.subr.mxu0 0.0
        %878 = vmatpush1.msra.mxu0 0.0
        %879 = vmatprep.subr.mxu0 0.0
        %880 = vmatpush1.msra.mxu0 0.0
        %881 = vmatprep.subr.mxu0 0.0
        %882 = vmatpush1.msra.mxu0 0.0
        %883 = vmatprep.subr.mxu0 0.0
        %884 = vmatpush1.msra.mxu0 0.0
        %885 = vmatprep.subr.mxu0 0.0
        %886 = vmatpush1.msra.mxu0 0.0
        %887 = vmatprep.subr.mxu0 0.0
        %888 = vmatpush1.msra.mxu0 0.0
        %889 = vmatprep.subr.mxu0 0.0
        %890 = vmatpush1.msra.mxu0 0.0
        %891 = vmatprep.subr.mxu0 0.0
        %892 = vmatpush1.msra.mxu0 0.0
        %893 = vmatprep.subr.mxu0 0.0
        %894 = vmatpush1.msra.mxu0 0.0
        %895 = vmatprep.subr.mxu0 0.0
        %896 = vmatpush1.msra.mxu0 0.0
        %897 = vmatprep.subr.mxu0 0.0
        %898 = vmatpush1.msra.mxu0 0.0
        %899 = vmatprep.subr.mxu0 0.0
        %900 = vmatpush1.msra.mxu0 0.0
        %901 = vmatprep.subr.mxu0 0.0
        %902 = vmatpush1.msra.mxu0 0.0
        %903 = vmatprep.subr.mxu0 0.0
        %904 = vmatpush1.msra.mxu0 0.0
        %905 = vmatprep.subr.mxu0 0.0
        %906 = vmatpush1.msra.mxu0 0.0
        %907 = vmatprep.subr.mxu0 0.0
        %908 = vmatpush1.msra.mxu0 0.0
        %909 = vmatprep.subr.mxu0 0.0
        %910 = vmatpush1.msra.mxu0 0.0
        %911 = vmatprep.subr.mxu0 0.0
        %912 = vmatpush1.msra.mxu0 0.0
        %913 = vmatprep.subr.mxu0 0.0
        %914 = vmatpush1.msra.mxu0 0.0
        %915 = vmatprep.subr.mxu0 0.0
        %916 = vmatpush1.msra.mxu0 0.0
        %917 = vmatprep.subr.mxu0 0.0
        %918 = vmatpush1.msra.mxu0 0.0
        %919 = vmatprep.subr.mxu0 0.0
        %920 = vmatpush1.msra.mxu0 0.0
        %921 = vmatprep.subr.mxu0 0.0
        %922 = vmatpush1.msra.mxu0 0.0
        %923 = vmatprep.subr.mxu0 0.0
        %924 = vmatpush1.msra.mxu0 0.0
        %925 = vmatprep.subr.mxu0 0.0
        %926 = vmatpush1.msra.mxu0 0.0
        %927 = vmatprep.mubr.f32.mxu0 0.0
        %928 = vmatmul.mubr.f32.gmra.mrb[0].mxu0 %v796
        %v929 = vpop.f32.mrb[0].mxu0
        %v930 = vadd.f32 %v638, %v929
        %v931 = vpop.f32.mrb[0].mxu0
        %932 = vmatprep.mubr.f32.mxu0 0.0
        %933 = vmatmul.mubr.f32.gmra.mrb[0].mxu0 %v798
        %v934 = vpop.f32.mrb[0].mxu0
        %v935 = vadd.f32 %v643, %v934
        %v936 = vpop.f32.mrb[0].mxu0
        %937 = vmatprep.mubr.f32.mxu0 0.0
        %938 = vmatmul.mubr.f32.gmra.mrb[0].mxu0 %v800
        %v939 = vpop.f32.mrb[0].mxu0
        %v940 = vadd.f32 %v648, %v939
        %v941 = vpop.f32.mrb[0].mxu0
        %942 = vmatprep.mubr.f32.mxu0 0.0
        %943 = vmatmul.mubr.f32.gmra.mrb[0].mxu0 %v802
        %v944 = vpop.f32.mrb[0].mxu0
        %v945 = vadd.f32 %v653, %v944
        %v946 = vpop.f32.mrb[0].mxu0
        %947 = vmatprep.mubr.f32.mxu0 0.0
        %948 = vmatmul.mubr.f32.gmra.mrb[0].mxu0 %v804
        %v949 = vpop.f32.mrb[0].mxu0
        %v950 = vadd.f32 %v658, %v949
        %v951 = vpop.f32.mrb[0].mxu0
        %952 = vmatprep.mubr.f32.mxu0 0.0
        %953 = vmatmul.mubr.f32.gmra.mrb[0].mxu0 %v806
        %v954 = vpop.f32.mrb[0].mxu0
        %v955 = vadd.f32 %v663, %v954
        %v956 = vpop.f32.mrb[0].mxu0
        %957 = vmatprep.mubr.f32.mxu0 0.0
        %958 = vmatmul.mubr.f32.gmra.mrb[0].mxu0 %v808
        %v959 = vpop.f32.mrb[0].mxu0
        %v960 = vadd.f32 %v668, %v959
        %v961 = vpop.f32.mrb[0].mxu0
        %962 = vmatprep.mubr.f32.mxu0 0.0
        %963 = vmatmul.mubr.f32.gmra.mrb[0].mxu0 %v810
        %v964 = vpop.f32.mrb[0].mxu0
        %v965 = vadd.f32 %v673, %v964
        %v966 = vpop.f32.mrb[0].mxu0
        %967 = vmatprep.mubr.f32.mxu0 0.0
        %968 = vmatmul.mubr.f32.gmra.mrb[0].mxu0 %v812
        %v969 = vpop.f32.mrb[0].mxu0
        %v970 = vadd.f32 %v678, %v969
        %v971 = vpop.f32.mrb[0].mxu0
        %972 = vmatprep.mubr.f32.mxu0 0.0
        %973 = vmatmul.mubr.f32.gmra.mrb[0].mxu0 %v814
        %v974 = vpop.f32.mrb[0].mxu0
        %v975 = vadd.f32 %v683, %v974
        %v976 = vpop.f32.mrb[0].mxu0
        %977 = vmatprep.mubr.f32.mxu0 0.0
        %978 = vmatmul.mubr.f32.gmra.mrb[0].mxu0 %v816
        %v979 = vpop.f32.mrb[0].mxu0
        %v980 = vadd.f32 %v688, %v979
        %v981 = vpop.f32.mrb[0].mxu0
        %982 = vmatprep.mubr.f32.mxu0 0.0
        %983 = vmatmul.mubr.f32.gmra.mrb[0].mxu0 %v818
        %v984 = vpop.f32.mrb[0].mxu0
        %v985 = vadd.f32 %v693, %v984
        %v986 = vpop.f32.mrb[0].mxu0
        %987 = vmatprep.mubr.f32.mxu0 0.0
        %988 = vmatmul.mubr.f32.gmra.mrb[0].mxu0 %v820
        %v989 = vpop.f32.mrb[0].mxu0
        %v990 = vadd.f32 %v698, %v989
        %v991 = vpop.f32.mrb[0].mxu0
        %992 = vmatprep.mubr.f32.mxu0 0.0
        %993 = vmatmul.mubr.f32.gmra.mrb[0].mxu0 %v822
        %v994 = vpop.f32.mrb[0].mxu0
        %v995 = vadd.f32 %v703, %v994
        %v996 = vpop.f32.mrb[0].mxu0
        %997 = vmatprep.mubr.f32.mxu0 0.0
        %998 = vmatmul.mubr.f32.gmra.mrb[0].mxu0 %v824
        %v999 = vpop.f32.mrb[0].mxu0
        %v1000 = vadd.f32 %v708, %v999
        %v1001 = vpop.f32.mrb[0].mxu0
        %1002 = vmatprep.mubr.f32.mxu0 0.0
        %1003 = vmatmul.mubr.f32.gmra.mrb[0].mxu0 %v826
        %v1004 = vpop.f32.mrb[0].mxu0
        %v1005 = vadd.f32 %v713, %v1004
        %v1006 = vpop.f32.mrb[0].mxu0
        %1007 = vmatprep.mubr.f32.mxu0 0.0
        %1008 = vmatmul.mubr.f32.gmra.mrb[0].mxu0 %v828
        %v1009 = vpop.f32.mrb[0].mxu0
        %v1010 = vadd.f32 %v718, %v1009
        %v1011 = vpop.f32.mrb[0].mxu0
        %1012 = vmatprep.mubr.f32.mxu0 0.0
        %1013 = vmatmul.mubr.f32.gmra.mrb[0].mxu0 %v830
        %v1014 = vpop.f32.mrb[0].mxu0
        %v1015 = vadd.f32 %v723, %v1014
        %v1016 = vpop.f32.mrb[0].mxu0
        %1017 = vmatprep.mubr.f32.mxu0 0.0
        %1018 = vmatmul.mubr.f32.gmra.mrb[0].mxu0 %v832
        %v1019 = vpop.f32.mrb[0].mxu0
        %v1020 = vadd.f32 %v728, %v1019
        %v1021 = vpop.f32.mrb[0].mxu0
        %1022 = vmatprep.mubr.f32.mxu0 0.0
        %1023 = vmatmul.mubr.f32.gmra.mrb[0].mxu0 %v834
        %v1024 = vpop.f32.mrb[0].mxu0
        %v1025 = vadd.f32 %v733, %v1024
        %v1026 = vpop.f32.mrb[0].mxu0
        %1027 = vmatprep.mubr.f32.mxu0 0.0
        %1028 = vmatmul.mubr.f32.gmra.mrb[0].mxu0 %v836
        %v1029 = vpop.f32.mrb[0].mxu0
        %v1030 = vadd.f32 %v738, %v1029
        %v1031 = vpop.f32.mrb[0].mxu0
        %1032 = vmatprep.mubr.f32.mxu0 0.0
        %1033 = vmatmul.mubr.f32.gmra.mrb[0].mxu0 %v838
        %v1034 = vpop.f32.mrb[0].mxu0
        %v1035 = vadd.f32 %v743, %v1034
        %v1036 = vpop.f32.mrb[0].mxu0
        %1037 = vmatprep.mubr.f32.mxu0 0.0
        %1038 = vmatmul.mubr.f32.gmra.mrb[0].mxu0 %v840
        %v1039 = vpop.f32.mrb[0].mxu0
        %v1040 = vadd.f32 %v748, %v1039
        %v1041 = vpop.f32.mrb[0].mxu0
        %1042 = vmatprep.mubr.f32.mxu0 0.0
        %1043 = vmatmul.mubr.f32.gmra.mrb[0].mxu0 %v842
        %v1044 = vpop.f32.mrb[0].mxu0
        %v1045 = vadd.f32 %v753, %v1044
        %v1046 = vpop.f32.mrb[0].mxu0
        %1047 = vmatprep.mubr.f32.mxu0 0.0
        %1048 = vmatmul.mubr.f32.gmra.mrb[0].mxu0 %v844
        %v1049 = vpop.f32.mrb[0].mxu0
        %v1050 = vadd.f32 %v758, %v1049
        %v1051 = vpop.f32.mrb[0].mxu0
        %1052 = vmatprep.mubr.f32.mxu0 0.0
        %1053 = vmatmul.mubr.f32.gmra.mrb[0].mxu0 %v846
        %v1054 = vpop.f32.mrb[0].mxu0
        %v1055 = vadd.f32 %v763, %v1054
        %v1056 = vpop.f32.mrb[0].mxu0
        %1057 = vmatprep.mubr.f32.mxu0 0.0
        %1058 = vmatmul.mubr.f32.gmra.mrb[0].mxu0 %v848
        %v1059 = vpop.f32.mrb[0].mxu0
        %v1060 = vadd.f32 %v768, %v1059
        %v1061 = vpop.f32.mrb[0].mxu0
        %1062 = vmatprep.mubr.f32.mxu0 0.0
        %1063 = vmatmul.mubr.f32.gmra.mrb[0].mxu0 %v850
        %v1064 = vpop.f32.mrb[0].mxu0
        %v1065 = vadd.f32 %v773, %v1064
        %v1066 = vpop.f32.mrb[0].mxu0
        %1067 = vmatprep.mubr.f32.mxu0 0.0
        %1068 = vmatmul.mubr.f32.gmra.mrb[0].mxu0 %v852
        %v1069 = vpop.f32.mrb[0].mxu0
        %v1070 = vadd.f32 %v778, %v1069
        %v1071 = vpop.f32.mrb[0].mxu0
        %1072 = vmatprep.mubr.f32.mxu0 0.0
        %1073 = vmatmul.mubr.f32.gmra.mrb[0].mxu0 %v854
        %v1074 = vpop.f32.mrb[0].mxu0
        %v1075 = vadd.f32 %v783, %v1074
        %v1076 = vpop.f32.mrb[0].mxu0
        %1077 = vmatprep.mubr.f32.mxu0 0.0
        %1078 = vmatmul.mubr.f32.gmra.mrb[0].mxu0 %v856
        %v1079 = vpop.f32.mrb[0].mxu0
        %v1080 = vadd.f32 %v788, %v1079
        %v1081 = vpop.f32.mrb[0].mxu0
        %1082 = vmatprep.mubr.f32.mxu0 0.0
        %1083 = vmatmul.mubr.f32.gmra.mrb[0].mxu0 %v858
        %v1084 = vpop.f32.mrb[0].mxu0
        %v1085 = vadd.f32 %v793, %v1084
        %v1086 = vpop.f32.mrb[0].mxu0
        %1087 = vdwg.mxu0
        %vm1088 = vcmask 1045504
        %v1089 = vrot.slane %v316, 2
        %v1090 = vrot.slane %v317, 2
        %v1091 = vsel %vm1088, %v1089, %v1090
        %v1092 = vrot.slane %v318, 2
        %v1093 = vsel %vm1088, %v1090, %v1092
        %v1094 = vrot.slane %v319, 2
        %v1095 = vrot.slane %v320, 2
        %v1096 = vsel %vm1088, %v1094, %v1095
        %v1097 = vrot.slane %v321, 2
        %v1098 = vsel %vm1088, %v1095, %v1097
        %v1099 = vrot.slane %v322, 2
        %v1100 = vrot.slane %v323, 2
        %v1101 = vsel %vm1088, %v1099, %v1100
        %v1102 = vrot.slane %v324, 2
        %v1103 = vsel %vm1088, %v1100, %v1102
        %v1104 = vrot.slane %v325, 2
        %v1105 = vrot.slane %v326, 2
        %v1106 = vsel %vm1088, %v1104, %v1105
        %v1107 = vrot.slane %v327, 2
        %v1108 = vsel %vm1088, %v1105, %v1107
        %v1109 = vrot.slane %v328, 2
        %v1110 = vrot.slane %v329, 2
        %v1111 = vsel %vm1088, %v1109, %v1110
        %v1112 = vrot.slane %v330, 2
        %v1113 = vsel %vm1088, %v1110, %v1112
        %v1114 = vrot.slane %v331, 2
        %v1115 = vrot.slane %v332, 2
        %v1116 = vsel %vm1088, %v1114, %v1115
        %v1117 = vrot.slane %v333, 2
        %v1118 = vsel %vm1088, %v1115, %v1117
        %v1119 = vrot.slane %v334, 2
        %v1120 = vrot.slane %v335, 2
        %v1121 = vsel %vm1088, %v1119, %v1120
        %v1122 = vrot.slane %v336, 2
        %v1123 = vsel %vm1088, %v1120, %v1122
        %v1124 = vrot.slane %v337, 2
        %v1125 = vrot.slane %v338, 2
        %v1126 = vsel %vm1088, %v1124, %v1125
        %v1127 = vrot.slane %v339, 2
        %v1128 = vsel %vm1088, %v1125, %v1127
        %v1129 = vrot.slane %v340, 2
        %v1130 = vrot.slane %v341, 2
        %v1131 = vsel %vm1088, %v1129, %v1130
        %v1132 = vrot.slane %v342, 2
        %v1133 = vsel %vm1088, %v1130, %v1132
        %v1134 = vrot.slane %v343, 2
        %v1135 = vrot.slane %v344, 2
        %v1136 = vsel %vm1088, %v1134, %v1135
        %v1137 = vrot.slane %v345, 2
        %v1138 = vsel %vm1088, %v1135, %v1137
        %v1139 = vrot.slane %v346, 2
        %v1140 = vrot.slane %v347, 2
        %v1141 = vsel %vm1088, %v1139, %v1140
        %v1142 = vrot.slane %v348, 2
        %v1143 = vsel %vm1088, %v1140, %v1142
        %v1144 = vrot.slane %v349, 2
        %v1145 = vrot.slane %v350, 2
        %v1146 = vsel %vm1088, %v1144, %v1145
        %v1147 = vrot.slane %v351, 2
        %v1148 = vsel %vm1088, %v1145, %v1147
        %v1149 = vrot.slane %v352, 2
        %v1150 = vrot.slane %v353, 2
        %v1151 = vsel %vm1088, %v1149, %v1150
        %v1152 = vrot.slane %v354, 2
        %v1153 = vsel %vm1088, %v1150, %v1152
        %v1154 = vrot.slane %v355, 2
        %v1155 = vrot.slane %v356, 2
        %v1156 = vsel %vm1088, %v1154, %v1155
        %v1157 = vrot.slane %v357, 2
        %v1158 = vsel %vm1088, %v1155, %v1157
        %v1159 = vrot.slane %v358, 2
        %v1160 = vrot.slane %v359, 2
        %v1161 = vsel %vm1088, %v1159, %v1160
        %v1162 = vrot.slane %v360, 2
        %v1163 = vsel %vm1088, %v1160, %v1162
        %v1164 = vrot.slane %v361, 2
        %v1165 = vrot.slane %v362, 2
        %v1166 = vsel %vm1088, %v1164, %v1165
        %v1167 = vrot.slane %v363, 2
        %v1168 = vsel %vm1088, %v1165, %v1167
        %s1169 = scalar_lea.vmem %s1, 8
        %v1170 = vld [vmem:[%s1169] sm:$0xf]
        %v1171 = vsel %vm502, %v1091, 0
        %v1173 = vsel %vm502, %v1093, 0
        %v1175 = vsel %vm502, %v1096, 0
        %v1177 = vsel %vm502, %v1098, 0
        %v1179 = vsel %vm502, %v1101, 0
        %v1181 = vsel %vm502, %v1103, 0
        %v1183 = vsel %vm502, %v1106, 0
        %v1185 = vsel %vm502, %v1108, 0
        %v1187 = vsel %vm502, %v1111, 0
        %v1189 = vsel %vm502, %v1113, 0
        %v1191 = vsel %vm502, %v1116, 0
        %v1193 = vsel %vm502, %v1118, 0
        %v1195 = vsel %vm502, %v1121, 0
        %v1197 = vsel %vm502, %v1123, 0
        %v1199 = vsel %vm502, %v1126, 0
        %v1201 = vsel %vm502, %v1128, 0
        %v1203 = vsel %vm502, %v1131, 0
        %v1205 = vsel %vm502, %v1133, 0
        %v1207 = vsel %vm502, %v1136, 0
        %v1209 = vsel %vm502, %v1138, 0
        %v1211 = vsel %vm502, %v1141, 0
        %v1213 = vsel %vm502, %v1143, 0
        %v1215 = vsel %vm502, %v1146, 0
        %v1217 = vsel %vm502, %v1148, 0
        %v1219 = vsel %vm502, %v1151, 0
        %v1221 = vsel %vm502, %v1153, 0
        %v1223 = vsel %vm502, %v1156, 0
        %v1225 = vsel %vm502, %v1158, 0
        %v1227 = vsel %vm502, %v1161, 0
        %v1229 = vsel %vm502, %v1163, 0
        %v1231 = vsel %vm502, %v1166, 0
        %v1233 = vsel %vm502, %v1168, 0
        %v1236 = vsel %vm567, %v1170, 0
        %1238 = vmatprep.subr.mxu0 0.0
        %1239 = vmatpush1.msra.mxu0 %v1236
        %1240 = vmatprep.subr.mxu0 0.0
        %1241 = vmatpush1.msra.mxu0 0.0
        %1242 = vmatprep.subr.mxu0 0.0
        %1243 = vmatpush1.msra.mxu0 0.0
        %1244 = vmatprep.subr.mxu0 0.0
        %1245 = vmatpush1.msra.mxu0 0.0
        %1246 = vmatprep.subr.mxu0 0.0
        %1247 = vmatpush1.msra.mxu0 0.0
        %1248 = vmatprep.subr.mxu0 0.0
        %1249 = vmatpush1.msra.mxu0 0.0
        %1250 = vmatprep.subr.mxu0 0.0
        %1251 = vmatpush1.msra.mxu0 0.0
        %1252 = vmatprep.subr.mxu0 0.0
        %1253 = vmatpush1.msra.mxu0 0.0
        %1254 = vmatprep.subr.mxu0 0.0
        %1255 = vmatpush1.msra.mxu0 0.0
        %1256 = vmatprep.subr.mxu0 0.0
        %1257 = vmatpush1.msra.mxu0 0.0
        %1258 = vmatprep.subr.mxu0 0.0
        %1259 = vmatpush1.msra.mxu0 0.0
        %1260 = vmatprep.subr.mxu0 0.0
        %1261 = vmatpush1.msra.mxu0 0.0
        %1262 = vmatprep.subr.mxu0 0.0
        %1263 = vmatpush1.msra.mxu0 0.0
        %1264 = vmatprep.subr.mxu0 0.0
        %1265 = vmatpush1.msra.mxu0 0.0
        %1266 = vmatprep.subr.mxu0 0.0
        %1267 = vmatpush1.msra.mxu0 0.0
        %1268 = vmatprep.subr.mxu0 0.0
        %1269 = vmatpush1.msra.mxu0 0.0
        %1270 = vmatprep.subr.mxu0 0.0
        %1271 = vmatpush1.msra.mxu0 0.0
        %1272 = vmatprep.subr.mxu0 0.0
        %1273 = vmatpush1.msra.mxu0 0.0
        %1274 = vmatprep.subr.mxu0 0.0
        %1275 = vmatpush1.msra.mxu0 0.0
        %1276 = vmatprep.subr.mxu0 0.0
        %1277 = vmatpush1.msra.mxu0 0.0
        %1278 = vmatprep.subr.mxu0 0.0
        %1279 = vmatpush1.msra.mxu0 0.0
        %1280 = vmatprep.subr.mxu0 0.0
        %1281 = vmatpush1.msra.mxu0 0.0
        %1282 = vmatprep.subr.mxu0 0.0
        %1283 = vmatpush1.msra.mxu0 0.0
        %1284 = vmatprep.subr.mxu0 0.0
        %1285 = vmatpush1.msra.mxu0 0.0
        %1286 = vmatprep.subr.mxu0 0.0
        %1287 = vmatpush1.msra.mxu0 0.0
        %1288 = vmatprep.subr.mxu0 0.0
        %1289 = vmatpush1.msra.mxu0 0.0
        %1290 = vmatprep.subr.mxu0 0.0
        %1291 = vmatpush1.msra.mxu0 0.0
        %1292 = vmatprep.subr.mxu0 0.0
        %1293 = vmatpush1.msra.mxu0 0.0
        %1294 = vmatprep.subr.mxu0 0.0
        %1295 = vmatpush1.msra.mxu0 0.0
        %1296 = vmatprep.subr.mxu0 0.0
        %1297 = vmatpush1.msra.mxu0 0.0
        %1298 = vmatprep.subr.mxu0 0.0
        %1299 = vmatpush1.msra.mxu0 0.0
        %1300 = vmatprep.subr.mxu0 0.0
        %1301 = vmatpush1.msra.mxu0 0.0
        %1302 = vmatprep.mubr.f32.mxu0 0.0
        %1303 = vmatmul.mubr.f32.gmra.mrb[0].mxu0 %v1171
        %v1304 = vpop.f32.mrb[0].mxu0
        %v1305 = vadd.f32 0.0, %v1304
        %v1306 = vpop.f32.mrb[0].mxu0
        %1307 = vmatprep.mubr.f32.mxu0 0.0
        %1308 = vmatmul.mubr.f32.gmra.mrb[0].mxu0 %v1173
        %v1309 = vpop.f32.mrb[0].mxu0
        %v1310 = vadd.f32 0.0, %v1309
        %v1311 = vpop.f32.mrb[0].mxu0
        %1312 = vmatprep.mubr.f32.mxu0 0.0
        %1313 = vmatmul.mubr.f32.gmra.mrb[0].mxu0 %v1175
        %v1314 = vpop.f32.mrb[0].mxu0
        %v1315 = vadd.f32 0.0, %v1314
        %v1316 = vpop.f32.mrb[0].mxu0
        %1317 = vmatprep.mubr.f32.mxu0 0.0
        %1318 = vmatmul.mubr.f32.gmra.mrb[0].mxu0 %v1177
        %v1319 = vpop.f32.mrb[0].mxu0
        %v1320 = vadd.f32 0.0, %v1319
        %v1321 = vpop.f32.mrb[0].mxu0
        %1322 = vmatprep.mubr.f32.mxu0 0.0
        %1323 = vmatmul.mubr.f32.gmra.mrb[0].mxu0 %v1179
        %v1324 = vpop.f32.mrb[0].mxu0
        %v1325 = vadd.f32 0.0, %v1324
        %v1326 = vpop.f32.mrb[0].mxu0
        %1327 = vmatprep.mubr.f32.mxu0 0.0
        %1328 = vmatmul.mubr.f32.gmra.mrb[0].mxu0 %v1181
        %v1329 = vpop.f32.mrb[0].mxu0
        %v1330 = vadd.f32 0.0, %v1329
        %v1331 = vpop.f32.mrb[0].mxu0
        %1332 = vmatprep.mubr.f32.mxu0 0.0
        %1333 = vmatmul.mubr.f32.gmra.mrb[0].mxu0 %v1183
        %v1334 = vpop.f32.mrb[0].mxu0
        %v1335 = vadd.f32 0.0, %v1334
        %v1336 = vpop.f32.mrb[0].mxu0
        %1337 = vmatprep.mubr.f32.mxu0 0.0
        %1338 = vmatmul.mubr.f32.gmra.mrb[0].mxu0 %v1185
        %v1339 = vpop.f32.mrb[0].mxu0
        %v1340 = vadd.f32 0.0, %v1339
        %v1341 = vpop.f32.mrb[0].mxu0
        %1342 = vmatprep.mubr.f32.mxu0 0.0
        %1343 = vmatmul.mubr.f32.gmra.mrb[0].mxu0 %v1187
        %v1344 = vpop.f32.mrb[0].mxu0
        %v1345 = vadd.f32 0.0, %v1344
        %v1346 = vpop.f32.mrb[0].mxu0
        %1347 = vmatprep.mubr.f32.mxu0 0.0
        %1348 = vmatmul.mubr.f32.gmra.mrb[0].mxu0 %v1189
        %v1349 = vpop.f32.mrb[0].mxu0
        %v1350 = vadd.f32 0.0, %v1349
        %v1351 = vpop.f32.mrb[0].mxu0
        %1352 = vmatprep.mubr.f32.mxu0 0.0
        %1353 = vmatmul.mubr.f32.gmra.mrb[0].mxu0 %v1191
        %v1354 = vpop.f32.mrb[0].mxu0
        %v1355 = vadd.f32 0.0, %v1354
        %v1356 = vpop.f32.mrb[0].mxu0
        %1357 = vmatprep.mubr.f32.mxu0 0.0
        %1358 = vmatmul.mubr.f32.gmra.mrb[0].mxu0 %v1193
        %v1359 = vpop.f32.mrb[0].mxu0
        %v1360 = vadd.f32 0.0, %v1359
        %v1361 = vpop.f32.mrb[0].mxu0
        %1362 = vmatprep.mubr.f32.mxu0 0.0
        %1363 = vmatmul.mubr.f32.gmra.mrb[0].mxu0 %v1195
        %v1364 = vpop.f32.mrb[0].mxu0
        %v1365 = vadd.f32 0.0, %v1364
        %v1366 = vpop.f32.mrb[0].mxu0
        %1367 = vmatprep.mubr.f32.mxu0 0.0
        %1368 = vmatmul.mubr.f32.gmra.mrb[0].mxu0 %v1197
        %v1369 = vpop.f32.mrb[0].mxu0
        %v1370 = vadd.f32 0.0, %v1369
        %v1371 = vpop.f32.mrb[0].mxu0
        %1372 = vmatprep.mubr.f32.mxu0 0.0
        %1373 = vmatmul.mubr.f32.gmra.mrb[0].mxu0 %v1199
        %v1374 = vpop.f32.mrb[0].mxu0
        %v1375 = vadd.f32 0.0, %v1374
        %v1376 = vpop.f32.mrb[0].mxu0
        %1377 = vmatprep.mubr.f32.mxu0 0.0
        %1378 = vmatmul.mubr.f32.gmra.mrb[0].mxu0 %v1201
        %v1379 = vpop.f32.mrb[0].mxu0
        %v1380 = vadd.f32 0.0, %v1379
        %v1381 = vpop.f32.mrb[0].mxu0
        %1382 = vmatprep.mubr.f32.mxu0 0.0
        %1383 = vmatmul.mubr.f32.gmra.mrb[0].mxu0 %v1203
        %v1384 = vpop.f32.mrb[0].mxu0
        %v1385 = vadd.f32 0.0, %v1384
        %v1386 = vpop.f32.mrb[0].mxu0
        %1387 = vmatprep.mubr.f32.mxu0 0.0
        %1388 = vmatmul.mubr.f32.gmra.mrb[0].mxu0 %v1205
        %v1389 = vpop.f32.mrb[0].mxu0
        %v1390 = vadd.f32 0.0, %v1389
        %v1391 = vpop.f32.mrb[0].mxu0
        %1392 = vmatprep.mubr.f32.mxu0 0.0
        %1393 = vmatmul.mubr.f32.gmra.mrb[0].mxu0 %v1207
        %v1394 = vpop.f32.mrb[0].mxu0
        %v1395 = vadd.f32 0.0, %v1394
        %v1396 = vpop.f32.mrb[0].mxu0
        %1397 = vmatprep.mubr.f32.mxu0 0.0
        %1398 = vmatmul.mubr.f32.gmra.mrb[0].mxu0 %v1209
        %v1399 = vpop.f32.mrb[0].mxu0
        %v1400 = vadd.f32 0.0, %v1399
        %v1401 = vpop.f32.mrb[0].mxu0
        %1402 = vmatprep.mubr.f32.mxu0 0.0
        %1403 = vmatmul.mubr.f32.gmra.mrb[0].mxu0 %v1211
        %v1404 = vpop.f32.mrb[0].mxu0
        %v1405 = vadd.f32 0.0, %v1404
        %v1406 = vpop.f32.mrb[0].mxu0
        %1407 = vmatprep.mubr.f32.mxu0 0.0
        %1408 = vmatmul.mubr.f32.gmra.mrb[0].mxu0 %v1213
        %v1409 = vpop.f32.mrb[0].mxu0
        %v1410 = vadd.f32 0.0, %v1409
        %v1411 = vpop.f32.mrb[0].mxu0
        %1412 = vmatprep.mubr.f32.mxu0 0.0
        %1413 = vmatmul.mubr.f32.gmra.mrb[0].mxu0 %v1215
        %v1414 = vpop.f32.mrb[0].mxu0
        %v1415 = vadd.f32 0.0, %v1414
        %v1416 = vpop.f32.mrb[0].mxu0
        %1417 = vmatprep.mubr.f32.mxu0 0.0
        %1418 = vmatmul.mubr.f32.gmra.mrb[0].mxu0 %v1217
        %v1419 = vpop.f32.mrb[0].mxu0
        %v1420 = vadd.f32 0.0, %v1419
        %v1421 = vpop.f32.mrb[0].mxu0
        %1422 = vmatprep.mubr.f32.mxu0 0.0
        %1423 = vmatmul.mubr.f32.gmra.mrb[0].mxu0 %v1219
        %v1424 = vpop.f32.mrb[0].mxu0
        %v1425 = vadd.f32 0.0, %v1424
        %v1426 = vpop.f32.mrb[0].mxu0
        %1427 = vmatprep.mubr.f32.mxu0 0.0
        %1428 = vmatmul.mubr.f32.gmra.mrb[0].mxu0 %v1221
        %v1429 = vpop.f32.mrb[0].mxu0
        %v1430 = vadd.f32 0.0, %v1429
        %v1431 = vpop.f32.mrb[0].mxu0
        %1432 = vmatprep.mubr.f32.mxu0 0.0
        %1433 = vmatmul.mubr.f32.gmra.mrb[0].mxu0 %v1223
        %v1434 = vpop.f32.mrb[0].mxu0
        %v1435 = vadd.f32 0.0, %v1434
        %v1436 = vpop.f32.mrb[0].mxu0
        %1437 = vmatprep.mubr.f32.mxu0 0.0
        %1438 = vmatmul.mubr.f32.gmra.mrb[0].mxu0 %v1225
        %v1439 = vpop.f32.mrb[0].mxu0
        %v1440 = vadd.f32 0.0, %v1439
        %v1441 = vpop.f32.mrb[0].mxu0
        %1442 = vmatprep.mubr.f32.mxu0 0.0
        %1443 = vmatmul.mubr.f32.gmra.mrb[0].mxu0 %v1227
        %v1444 = vpop.f32.mrb[0].mxu0
        %v1445 = vadd.f32 0.0, %v1444
        %v1446 = vpop.f32.mrb[0].mxu0
        %1447 = vmatprep.mubr.f32.mxu0 0.0
        %1448 = vmatmul.mubr.f32.gmra.mrb[0].mxu0 %v1229
        %v1449 = vpop.f32.mrb[0].mxu0
        %v1450 = vadd.f32 0.0, %v1449
        %v1451 = vpop.f32.mrb[0].mxu0
        %1452 = vmatprep.mubr.f32.mxu0 0.0
        %1453 = vmatmul.mubr.f32.gmra.mrb[0].mxu0 %v1231
        %v1454 = vpop.f32.mrb[0].mxu0
        %v1455 = vadd.f32 0.0, %v1454
        %v1456 = vpop.f32.mrb[0].mxu0
        %1457 = vmatprep.mubr.f32.mxu0 0.0
        %1458 = vmatmul.mubr.f32.gmra.mrb[0].mxu0 %v1233
        %v1459 = vpop.f32.mrb[0].mxu0
        %v1460 = vadd.f32 0.0, %v1459
        %v1461 = vpop.f32.mrb[0].mxu0
        %1462 = vdwg.mxu0
        %v1463 = vadd.f32 %v930, %v1305
        %v1464 = vadd.f32 %v935, %v1310
        %v1465 = vadd.f32 %v940, %v1315
        %v1466 = vadd.f32 %v945, %v1320
        %v1467 = vadd.f32 %v950, %v1325
        %v1468 = vadd.f32 %v955, %v1330
        %v1469 = vadd.f32 %v960, %v1335
        %v1470 = vadd.f32 %v965, %v1340
        %v1471 = vadd.f32 %v970, %v1345
        %v1472 = vadd.f32 %v975, %v1350
        %v1473 = vadd.f32 %v980, %v1355
        %v1474 = vadd.f32 %v985, %v1360
        %v1475 = vadd.f32 %v990, %v1365
        %v1476 = vadd.f32 %v995, %v1370
        %v1477 = vadd.f32 %v1000, %v1375
        %v1478 = vadd.f32 %v1005, %v1380
        %v1479 = vadd.f32 %v1010, %v1385
        %v1480 = vadd.f32 %v1015, %v1390
        %v1481 = vadd.f32 %v1020, %v1395
        %v1482 = vadd.f32 %v1025, %v1400
        %v1483 = vadd.f32 %v1030, %v1405
        %v1484 = vadd.f32 %v1035, %v1410
        %v1485 = vadd.f32 %v1040, %v1415
        %v1486 = vadd.f32 %v1045, %v1420
        %v1487 = vadd.f32 %v1050, %v1425
        %v1488 = vadd.f32 %v1055, %v1430
        %v1489 = vadd.f32 %v1060, %v1435
        %v1490 = vadd.f32 %v1065, %v1440
        %v1491 = vadd.f32 %v1070, %v1445
        %v1492 = vadd.f32 %v1075, %v1450
        %v1493 = vadd.f32 %v1080, %v1455
        %v1494 = vadd.f32 %v1085, %v1460
        %s1495 = scalar_lea.vmem %s1, 12
        %v1496 = vld [vmem:[%s1495] sm:$0xf]
        %v1498 = vsel %vm502, %v364, 0
        %v1501 = vsel %vm502, %v365, 0
        %v1504 = vsel %vm567, %v1496, 0
        %1506 = vmatprep.subr.mxu0 0.0
        %1507 = vmatpush1.msra.mxu0 %v1504
        %1508 = vmatprep.subr.mxu0 0.0
        %1509 = vmatpush1.msra.mxu0 0.0
        %1510 = vmatprep.subr.mxu0 0.0
        %1511 = vmatpush1.msra.mxu0 0.0
        %1512 = vmatprep.subr.mxu0 0.0
        %1513 = vmatpush1.msra.mxu0 0.0
        %1514 = vmatprep.subr.mxu0 0.0
        %1515 = vmatpush1.msra.mxu0 0.0
        %1516 = vmatprep.subr.mxu0 0.0
        %1517 = vmatpush1.msra.mxu0 0.0
        %1518 = vmatprep.subr.mxu0 0.0
        %1519 = vmatpush1.msra.mxu0 0.0
        %1520 = vmatprep.subr.mxu0 0.0
        %1521 = vmatpush1.msra.mxu0 0.0
        %1522 = vmatprep.subr.mxu0 0.0
        %1523 = vmatpush1.msra.mxu0 0.0
        %1524 = vmatprep.subr.mxu0 0.0
        %1525 = vmatpush1.msra.mxu0 0.0
        %1526 = vmatprep.subr.mxu0 0.0
        %1527 = vmatpush1.msra.mxu0 0.0
        %1528 = vmatprep.subr.mxu0 0.0
        %1529 = vmatpush1.msra.mxu0 0.0
        %1530 = vmatprep.subr.mxu0 0.0
        %1531 = vmatpush1.msra.mxu0 0.0
        %1532 = vmatprep.subr.mxu0 0.0
        %1533 = vmatpush1.msra.mxu0 0.0
        %1534 = vmatprep.subr.mxu0 0.0
        %1535 = vmatpush1.msra.mxu0 0.0
        %1536 = vmatprep.subr.mxu0 0.0
        %1537 = vmatpush1.msra.mxu0 0.0
        %1538 = vmatprep.subr.mxu0 0.0
        %1539 = vmatpush1.msra.mxu0 0.0
        %1540 = vmatprep.subr.mxu0 0.0
        %1541 = vmatpush1.msra.mxu0 0.0
        %1542 = vmatprep.subr.mxu0 0.0
        %1543 = vmatpush1.msra.mxu0 0.0
        %1544 = vmatprep.subr.mxu0 0.0
        %1545 = vmatpush1.msra.mxu0 0.0
        %1546 = vmatprep.subr.mxu0 0.0
        %1547 = vmatpush1.msra.mxu0 0.0
        %1548 = vmatprep.subr.mxu0 0.0
        %1549 = vmatpush1.msra.mxu0 0.0
        %1550 = vmatprep.subr.mxu0 0.0
        %1551 = vmatpush1.msra.mxu0 0.0
        %1552 = vmatprep.subr.mxu0 0.0
        %1553 = vmatpush1.msra.mxu0 0.0
        %1554 = vmatprep.subr.mxu0 0.0
        %1555 = vmatpush1.msra.mxu0 0.0
        %1556 = vmatprep.subr.mxu0 0.0
        %1557 = vmatpush1.msra.mxu0 0.0
        %1558 = vmatprep.subr.mxu0 0.0
        %1559 = vmatpush1.msra.mxu0 0.0
        %1560 = vmatprep.subr.mxu0 0.0
        %1561 = vmatpush1.msra.mxu0 0.0
        %1562 = vmatprep.subr.mxu0 0.0
        %1563 = vmatpush1.msra.mxu0 0.0
        %1564 = vmatprep.subr.mxu0 0.0
        %1565 = vmatpush1.msra.mxu0 0.0
        %1566 = vmatprep.subr.mxu0 0.0
        %1567 = vmatpush1.msra.mxu0 0.0
        %1568 = vmatprep.subr.mxu0 0.0
        %1569 = vmatpush1.msra.mxu0 0.0
        %1570 = vmatprep.mubr.f32.mxu0 0.0
        %1571 = vmatmul.mubr.f32.gmra.mrb[0].mxu0 %v800
        %v1572 = vpop.f32.mrb[0].mxu0
        %v1573 = vadd.f32 0.0, %v1572
        %v1574 = vpop.f32.mrb[0].mxu0
        %1575 = vmatprep.mubr.f32.mxu0 0.0
        %1576 = vmatmul.mubr.f32.gmra.mrb[0].mxu0 %v802
        %v1577 = vpop.f32.mrb[0].mxu0
        %v1578 = vadd.f32 0.0, %v1577
        %v1579 = vpop.f32.mrb[0].mxu0
        %1580 = vmatprep.mubr.f32.mxu0 0.0
        %1581 = vmatmul.mubr.f32.gmra.mrb[0].mxu0 %v804
        %v1582 = vpop.f32.mrb[0].mxu0
        %v1583 = vadd.f32 0.0, %v1582
        %v1584 = vpop.f32.mrb[0].mxu0
        %1585 = vmatprep.mubr.f32.mxu0 0.0
        %1586 = vmatmul.mubr.f32.gmra.mrb[0].mxu0 %v806
        %v1587 = vpop.f32.mrb[0].mxu0
        %v1588 = vadd.f32 0.0, %v1587
        %v1589 = vpop.f32.mrb[0].mxu0
        %1590 = vmatprep.mubr.f32.mxu0 0.0
        %1591 = vmatmul.mubr.f32.gmra.mrb[0].mxu0 %v808
        %v1592 = vpop.f32.mrb[0].mxu0
        %v1593 = vadd.f32 0.0, %v1592
        %v1594 = vpop.f32.mrb[0].mxu0
        %1595 = vmatprep.mubr.f32.mxu0 0.0
        %1596 = vmatmul.mubr.f32.gmra.mrb[0].mxu0 %v810
        %v1597 = vpop.f32.mrb[0].mxu0
        %v1598 = vadd.f32 0.0, %v1597
        %v1599 = vpop.f32.mrb[0].mxu0
        %1600 = vmatprep.mubr.f32.mxu0 0.0
        %1601 = vmatmul.mubr.f32.gmra.mrb[0].mxu0 %v812
        %v1602 = vpop.f32.mrb[0].mxu0
        %v1603 = vadd.f32 0.0, %v1602
        %v1604 = vpop.f32.mrb[0].mxu0
        %1605 = vmatprep.mubr.f32.mxu0 0.0
        %1606 = vmatmul.mubr.f32.gmra.mrb[0].mxu0 %v814
        %v1607 = vpop.f32.mrb[0].mxu0
        %v1608 = vadd.f32 0.0, %v1607
        %v1609 = vpop.f32.mrb[0].mxu0
        %1610 = vmatprep.mubr.f32.mxu0 0.0
        %1611 = vmatmul.mubr.f32.gmra.mrb[0].mxu0 %v816
        %v1612 = vpop.f32.mrb[0].mxu0
        %v1613 = vadd.f32 0.0, %v1612
        %v1614 = vpop.f32.mrb[0].mxu0
        %1615 = vmatprep.mubr.f32.mxu0 0.0
        %1616 = vmatmul.mubr.f32.gmra.mrb[0].mxu0 %v818
        %v1617 = vpop.f32.mrb[0].mxu0
        %v1618 = vadd.f32 0.0, %v1617
        %v1619 = vpop.f32.mrb[0].mxu0
        %1620 = vmatprep.mubr.f32.mxu0 0.0
        %1621 = vmatmul.mubr.f32.gmra.mrb[0].mxu0 %v820
        %v1622 = vpop.f32.mrb[0].mxu0
        %v1623 = vadd.f32 0.0, %v1622
        %v1624 = vpop.f32.mrb[0].mxu0
        %1625 = vmatprep.mubr.f32.mxu0 0.0
        %1626 = vmatmul.mubr.f32.gmra.mrb[0].mxu0 %v822
        %v1627 = vpop.f32.mrb[0].mxu0
        %v1628 = vadd.f32 0.0, %v1627
        %v1629 = vpop.f32.mrb[0].mxu0
        %1630 = vmatprep.mubr.f32.mxu0 0.0
        %1631 = vmatmul.mubr.f32.gmra.mrb[0].mxu0 %v824
        %v1632 = vpop.f32.mrb[0].mxu0
        %v1633 = vadd.f32 0.0, %v1632
        %v1634 = vpop.f32.mrb[0].mxu0
        %1635 = vmatprep.mubr.f32.mxu0 0.0
        %1636 = vmatmul.mubr.f32.gmra.mrb[0].mxu0 %v826
        %v1637 = vpop.f32.mrb[0].mxu0
        %v1638 = vadd.f32 0.0, %v1637
        %v1639 = vpop.f32.mrb[0].mxu0
        %1640 = vmatprep.mubr.f32.mxu0 0.0
        %1641 = vmatmul.mubr.f32.gmra.mrb[0].mxu0 %v828
        %v1642 = vpop.f32.mrb[0].mxu0
        %v1643 = vadd.f32 0.0, %v1642
        %v1644 = vpop.f32.mrb[0].mxu0
        %1645 = vmatprep.mubr.f32.mxu0 0.0
        %1646 = vmatmul.mubr.f32.gmra.mrb[0].mxu0 %v830
        %v1647 = vpop.f32.mrb[0].mxu0
        %v1648 = vadd.f32 0.0, %v1647
        %v1649 = vpop.f32.mrb[0].mxu0
        %1650 = vmatprep.mubr.f32.mxu0 0.0
        %1651 = vmatmul.mubr.f32.gmra.mrb[0].mxu0 %v832
        %v1652 = vpop.f32.mrb[0].mxu0
        %v1653 = vadd.f32 0.0, %v1652
        %v1654 = vpop.f32.mrb[0].mxu0
        %1655 = vmatprep.mubr.f32.mxu0 0.0
        %1656 = vmatmul.mubr.f32.gmra.mrb[0].mxu0 %v834
        %v1657 = vpop.f32.mrb[0].mxu0
        %v1658 = vadd.f32 0.0, %v1657
        %v1659 = vpop.f32.mrb[0].mxu0
        %1660 = vmatprep.mubr.f32.mxu0 0.0
        %1661 = vmatmul.mubr.f32.gmra.mrb[0].mxu0 %v836
        %v1662 = vpop.f32.mrb[0].mxu0
        %v1663 = vadd.f32 0.0, %v1662
        %v1664 = vpop.f32.mrb[0].mxu0
        %1665 = vmatprep.mubr.f32.mxu0 0.0
        %1666 = vmatmul.mubr.f32.gmra.mrb[0].mxu0 %v838
        %v1667 = vpop.f32.mrb[0].mxu0
        %v1668 = vadd.f32 0.0, %v1667
        %v1669 = vpop.f32.mrb[0].mxu0
        %1670 = vmatprep.mubr.f32.mxu0 0.0
        %1671 = vmatmul.mubr.f32.gmra.mrb[0].mxu0 %v840
        %v1672 = vpop.f32.mrb[0].mxu0
        %v1673 = vadd.f32 0.0, %v1672
        %v1674 = vpop.f32.mrb[0].mxu0
        %1675 = vmatprep.mubr.f32.mxu0 0.0
        %1676 = vmatmul.mubr.f32.gmra.mrb[0].mxu0 %v842
        %v1677 = vpop.f32.mrb[0].mxu0
        %v1678 = vadd.f32 0.0, %v1677
        %v1679 = vpop.f32.mrb[0].mxu0
        %1680 = vmatprep.mubr.f32.mxu0 0.0
        %1681 = vmatmul.mubr.f32.gmra.mrb[0].mxu0 %v844
        %v1682 = vpop.f32.mrb[0].mxu0
        %v1683 = vadd.f32 0.0, %v1682
        %v1684 = vpop.f32.mrb[0].mxu0
        %1685 = vmatprep.mubr.f32.mxu0 0.0
        %1686 = vmatmul.mubr.f32.gmra.mrb[0].mxu0 %v846
        %v1687 = vpop.f32.mrb[0].mxu0
        %v1688 = vadd.f32 0.0, %v1687
        %v1689 = vpop.f32.mrb[0].mxu0
        %1690 = vmatprep.mubr.f32.mxu0 0.0
        %1691 = vmatmul.mubr.f32.gmra.mrb[0].mxu0 %v848
        %v1692 = vpop.f32.mrb[0].mxu0
        %v1693 = vadd.f32 0.0, %v1692
        %v1694 = vpop.f32.mrb[0].mxu0
        %1695 = vmatprep.mubr.f32.mxu0 0.0
        %1696 = vmatmul.mubr.f32.gmra.mrb[0].mxu0 %v850
        %v1697 = vpop.f32.mrb[0].mxu0
        %v1698 = vadd.f32 0.0, %v1697
        %v1699 = vpop.f32.mrb[0].mxu0
        %1700 = vmatprep.mubr.f32.mxu0 0.0
        %1701 = vmatmul.mubr.f32.gmra.mrb[0].mxu0 %v852
        %v1702 = vpop.f32.mrb[0].mxu0
        %v1703 = vadd.f32 0.0, %v1702
        %v1704 = vpop.f32.mrb[0].mxu0
        %1705 = vmatprep.mubr.f32.mxu0 0.0
        %1706 = vmatmul.mubr.f32.gmra.mrb[0].mxu0 %v854
        %v1707 = vpop.f32.mrb[0].mxu0
        %v1708 = vadd.f32 0.0, %v1707
        %v1709 = vpop.f32.mrb[0].mxu0
        %1710 = vmatprep.mubr.f32.mxu0 0.0
        %1711 = vmatmul.mubr.f32.gmra.mrb[0].mxu0 %v856
        %v1712 = vpop.f32.mrb[0].mxu0
        %v1713 = vadd.f32 0.0, %v1712
        %v1714 = vpop.f32.mrb[0].mxu0
        %1715 = vmatprep.mubr.f32.mxu0 0.0
        %1716 = vmatmul.mubr.f32.gmra.mrb[0].mxu0 %v858
        %v1717 = vpop.f32.mrb[0].mxu0
        %v1718 = vadd.f32 0.0, %v1717
        %v1719 = vpop.f32.mrb[0].mxu0
        %1720 = vmatprep.mubr.f32.mxu0 0.0
        %1721 = vmatmul.mubr.f32.gmra.mrb[0].mxu0 %v1498
        %v1722 = vpop.f32.mrb[0].mxu0
        %v1723 = vadd.f32 0.0, %v1722
        %v1724 = vpop.f32.mrb[0].mxu0
        %1725 = vmatprep.mubr.f32.mxu0 0.0
        %1726 = vmatmul.mubr.f32.gmra.mrb[0].mxu0 %v1501
        %v1727 = vpop.f32.mrb[0].mxu0
        %v1728 = vadd.f32 0.0, %v1727
        %v1729 = vpop.f32.mrb[0].mxu0
        %1730 = vdwg.mxu0
        %v1731 = vadd.f32 %v1463, %v1573
        %v1732 = vadd.f32 %v1464, %v1578
        %v1733 = vadd.f32 %v1465, %v1583
        %v1734 = vadd.f32 %v1466, %v1588
        %v1735 = vadd.f32 %v1467, %v1593
        %v1736 = vadd.f32 %v1468, %v1598
        %v1737 = vadd.f32 %v1469, %v1603
        %v1738 = vadd.f32 %v1470, %v1608
        %v1739 = vadd.f32 %v1471, %v1613
        %v1740 = vadd.f32 %v1472, %v1618
        %v1741 = vadd.f32 %v1473, %v1623
        %v1742 = vadd.f32 %v1474, %v1628
        %v1743 = vadd.f32 %v1475, %v1633
        %v1744 = vadd.f32 %v1476, %v1638
        %v1745 = vadd.f32 %v1477, %v1643
        %v1746 = vadd.f32 %v1478, %v1648
        %v1747 = vadd.f32 %v1479, %v1653
        %v1748 = vadd.f32 %v1480, %v1658
        %v1749 = vadd.f32 %v1481, %v1663
        %v1750 = vadd.f32 %v1482, %v1668
        %v1751 = vadd.f32 %v1483, %v1673
        %v1752 = vadd.f32 %v1484, %v1678
        %v1753 = vadd.f32 %v1485, %v1683
        %v1754 = vadd.f32 %v1486, %v1688
        %v1755 = vadd.f32 %v1487, %v1693
        %v1756 = vadd.f32 %v1488, %v1698
        %v1757 = vadd.f32 %v1489, %v1703
        %v1758 = vadd.f32 %v1490, %v1708
        %v1759 = vadd.f32 %v1491, %v1713
        %v1760 = vadd.f32 %v1492, %v1718
        %v1761 = vadd.f32 %v1493, %v1723
        %v1762 = vadd.f32 %v1494, %v1728
        %v1764 = vrot.slane %v364, 1
        %v1765 = vrot.slane %v365, 1
        %v1766 = vsel %vm419, %v1764, %v1765
        %v1767 = vrot.slane %v366, 1
        %v1768 = vsel %vm419, %v1765, %v1767
        %s1769 = scalar_lea.vmem %s1, 16
        %v1770 = vld [vmem:[%s1769] sm:$0xf]
        %v1771 = vsel %vm502, %v1766, 0
        %v1773 = vsel %vm502, %v1768, 0
        %v1776 = vsel %vm567, %v1770, 0
        %1778 = vmatprep.subr.mxu0 0.0
        %1779 = vmatpush1.msra.mxu0 %v1776
        %1780 = vmatprep.subr.mxu0 0.0
        %1781 = vmatpush1.msra.mxu0 0.0
        %1782 = vmatprep.subr.mxu0 0.0
        %1783 = vmatpush1.msra.mxu0 0.0
        %1784 = vmatprep.subr.mxu0 0.0
        %1785 = vmatpush1.msra.mxu0 0.0
        %1786 = vmatprep.subr.mxu0 0.0
        %1787 = vmatpush1.msra.mxu0 0.0
        %1788 = vmatprep.subr.mxu0 0.0
        %1789 = vmatpush1.msra.mxu0 0.0
        %1790 = vmatprep.subr.mxu0 0.0
        %1791 = vmatpush1.msra.mxu0 0.0
        %1792 = vmatprep.subr.mxu0 0.0
        %1793 = vmatpush1.msra.mxu0 0.0
        %1794 = vmatprep.subr.mxu0 0.0
        %1795 = vmatpush1.msra.mxu0 0.0
        %1796 = vmatprep.subr.mxu0 0.0
        %1797 = vmatpush1.msra.mxu0 0.0
        %1798 = vmatprep.subr.mxu0 0.0
        %1799 = vmatpush1.msra.mxu0 0.0
        %1800 = vmatprep.subr.mxu0 0.0
        %1801 = vmatpush1.msra.mxu0 0.0
        %1802 = vmatprep.subr.mxu0 0.0
        %1803 = vmatpush1.msra.mxu0 0.0
        %1804 = vmatprep.subr.mxu0 0.0
        %1805 = vmatpush1.msra.mxu0 0.0
        %1806 = vmatprep.subr.mxu0 0.0
        %1807 = vmatpush1.msra.mxu0 0.0
        %1808 = vmatprep.subr.mxu0 0.0
        %1809 = vmatpush1.msra.mxu0 0.0
        %1810 = vmatprep.subr.mxu0 0.0
        %1811 = vmatpush1.msra.mxu0 0.0
        %1812 = vmatprep.subr.mxu0 0.0
        %1813 = vmatpush1.msra.mxu0 0.0
        %1814 = vmatprep.subr.mxu0 0.0
        %1815 = vmatpush1.msra.mxu0 0.0
        %1816 = vmatprep.subr.mxu0 0.0
        %1817 = vmatpush1.msra.mxu0 0.0
        %1818 = vmatprep.subr.mxu0 0.0
        %1819 = vmatpush1.msra.mxu0 0.0
        %1820 = vmatprep.subr.mxu0 0.0
        %1821 = vmatpush1.msra.mxu0 0.0
        %1822 = vmatprep.subr.mxu0 0.0
        %1823 = vmatpush1.msra.mxu0 0.0
        %1824 = vmatprep.subr.mxu0 0.0
        %1825 = vmatpush1.msra.mxu0 0.0
        %1826 = vmatprep.subr.mxu0 0.0
        %1827 = vmatpush1.msra.mxu0 0.0
        %1828 = vmatprep.subr.mxu0 0.0
        %1829 = vmatpush1.msra.mxu0 0.0
        %1830 = vmatprep.subr.mxu0 0.0
        %1831 = vmatpush1.msra.mxu0 0.0
        %1832 = vmatprep.subr.mxu0 0.0
        %1833 = vmatpush1.msra.mxu0 0.0
        %1834 = vmatprep.subr.mxu0 0.0
        %1835 = vmatpush1.msra.mxu0 0.0
        %1836 = vmatprep.subr.mxu0 0.0
        %1837 = vmatpush1.msra.mxu0 0.0
        %1838 = vmatprep.subr.mxu0 0.0
        %1839 = vmatpush1.msra.mxu0 0.0
        %1840 = vmatprep.subr.mxu0 0.0
        %1841 = vmatpush1.msra.mxu0 0.0
        %1842 = vmatprep.mubr.f32.mxu0 0.0
        %1843 = vmatmul.mubr.f32.gmra.mrb[0].mxu0 %v507
        %v1844 = vpop.f32.mrb[0].mxu0
        %v1845 = vadd.f32 0.0, %v1844
        %v1846 = vpop.f32.mrb[0].mxu0
        %1847 = vmatprep.mubr.f32.mxu0 0.0
        %1848 = vmatmul.mubr.f32.gmra.mrb[0].mxu0 %v509
        %v1849 = vpop.f32.mrb[0].mxu0
        %v1850 = vadd.f32 0.0, %v1849
        %v1851 = vpop.f32.mrb[0].mxu0
        %1852 = vmatprep.mubr.f32.mxu0 0.0
        %1853 = vmatmul.mubr.f32.gmra.mrb[0].mxu0 %v511
        %v1854 = vpop.f32.mrb[0].mxu0
        %v1855 = vadd.f32 0.0, %v1854
        %v1856 = vpop.f32.mrb[0].mxu0
        %1857 = vmatprep.mubr.f32.mxu0 0.0
        %1858 = vmatmul.mubr.f32.gmra.mrb[0].mxu0 %v513
        %v1859 = vpop.f32.mrb[0].mxu0
        %v1860 = vadd.f32 0.0, %v1859
        %v1861 = vpop.f32.mrb[0].mxu0
        %1862 = vmatprep.mubr.f32.mxu0 0.0
        %1863 = vmatmul.mubr.f32.gmra.mrb[0].mxu0 %v515
        %v1864 = vpop.f32.mrb[0].mxu0
        %v1865 = vadd.f32 0.0, %v1864
        %v1866 = vpop.f32.mrb[0].mxu0
        %1867 = vmatprep.mubr.f32.mxu0 0.0
        %1868 = vmatmul.mubr.f32.gmra.mrb[0].mxu0 %v517
        %v1869 = vpop.f32.mrb[0].mxu0
        %v1870 = vadd.f32 0.0, %v1869
        %v1871 = vpop.f32.mrb[0].mxu0
        %1872 = vmatprep.mubr.f32.mxu0 0.0
        %1873 = vmatmul.mubr.f32.gmra.mrb[0].mxu0 %v519
        %v1874 = vpop.f32.mrb[0].mxu0
        %v1875 = vadd.f32 0.0, %v1874
        %v1876 = vpop.f32.mrb[0].mxu0
        %1877 = vmatprep.mubr.f32.mxu0 0.0
        %1878 = vmatmul.mubr.f32.gmra.mrb[0].mxu0 %v521
        %v1879 = vpop.f32.mrb[0].mxu0
        %v1880 = vadd.f32 0.0, %v1879
        %v1881 = vpop.f32.mrb[0].mxu0
        %1882 = vmatprep.mubr.f32.mxu0 0.0
        %1883 = vmatmul.mubr.f32.gmra.mrb[0].mxu0 %v523
        %v1884 = vpop.f32.mrb[0].mxu0
        %v1885 = vadd.f32 0.0, %v1884
        %v1886 = vpop.f32.mrb[0].mxu0
        %1887 = vmatprep.mubr.f32.mxu0 0.0
        %1888 = vmatmul.mubr.f32.gmra.mrb[0].mxu0 %v525
        %v1889 = vpop.f32.mrb[0].mxu0
        %v1890 = vadd.f32 0.0, %v1889
        %v1891 = vpop.f32.mrb[0].mxu0
        %1892 = vmatprep.mubr.f32.mxu0 0.0
        %1893 = vmatmul.mubr.f32.gmra.mrb[0].mxu0 %v527
        %v1894 = vpop.f32.mrb[0].mxu0
        %v1895 = vadd.f32 0.0, %v1894
        %v1896 = vpop.f32.mrb[0].mxu0
        %1897 = vmatprep.mubr.f32.mxu0 0.0
        %1898 = vmatmul.mubr.f32.gmra.mrb[0].mxu0 %v529
        %v1899 = vpop.f32.mrb[0].mxu0
        %v1900 = vadd.f32 0.0, %v1899
        %v1901 = vpop.f32.mrb[0].mxu0
        %1902 = vmatprep.mubr.f32.mxu0 0.0
        %1903 = vmatmul.mubr.f32.gmra.mrb[0].mxu0 %v531
        %v1904 = vpop.f32.mrb[0].mxu0
        %v1905 = vadd.f32 0.0, %v1904
        %v1906 = vpop.f32.mrb[0].mxu0
        %1907 = vmatprep.mubr.f32.mxu0 0.0
        %1908 = vmatmul.mubr.f32.gmra.mrb[0].mxu0 %v533
        %v1909 = vpop.f32.mrb[0].mxu0
        %v1910 = vadd.f32 0.0, %v1909
        %v1911 = vpop.f32.mrb[0].mxu0
        %1912 = vmatprep.mubr.f32.mxu0 0.0
        %1913 = vmatmul.mubr.f32.gmra.mrb[0].mxu0 %v535
        %v1914 = vpop.f32.mrb[0].mxu0
        %v1915 = vadd.f32 0.0, %v1914
        %v1916 = vpop.f32.mrb[0].mxu0
        %1917 = vmatprep.mubr.f32.mxu0 0.0
        %1918 = vmatmul.mubr.f32.gmra.mrb[0].mxu0 %v537
        %v1919 = vpop.f32.mrb[0].mxu0
        %v1920 = vadd.f32 0.0, %v1919
        %v1921 = vpop.f32.mrb[0].mxu0
        %1922 = vmatprep.mubr.f32.mxu0 0.0
        %1923 = vmatmul.mubr.f32.gmra.mrb[0].mxu0 %v539
        %v1924 = vpop.f32.mrb[0].mxu0
        %v1925 = vadd.f32 0.0, %v1924
        %v1926 = vpop.f32.mrb[0].mxu0
        %1927 = vmatprep.mubr.f32.mxu0 0.0
        %1928 = vmatmul.mubr.f32.gmra.mrb[0].mxu0 %v541
        %v1929 = vpop.f32.mrb[0].mxu0
        %v1930 = vadd.f32 0.0, %v1929
        %v1931 = vpop.f32.mrb[0].mxu0
        %1932 = vmatprep.mubr.f32.mxu0 0.0
        %1933 = vmatmul.mubr.f32.gmra.mrb[0].mxu0 %v543
        %v1934 = vpop.f32.mrb[0].mxu0
        %v1935 = vadd.f32 0.0, %v1934
        %v1936 = vpop.f32.mrb[0].mxu0
        %1937 = vmatprep.mubr.f32.mxu0 0.0
        %1938 = vmatmul.mubr.f32.gmra.mrb[0].mxu0 %v545
        %v1939 = vpop.f32.mrb[0].mxu0
        %v1940 = vadd.f32 0.0, %v1939
        %v1941 = vpop.f32.mrb[0].mxu0
        %1942 = vmatprep.mubr.f32.mxu0 0.0
        %1943 = vmatmul.mubr.f32.gmra.mrb[0].mxu0 %v547
        %v1944 = vpop.f32.mrb[0].mxu0
        %v1945 = vadd.f32 0.0, %v1944
        %v1946 = vpop.f32.mrb[0].mxu0
        %1947 = vmatprep.mubr.f32.mxu0 0.0
        %1948 = vmatmul.mubr.f32.gmra.mrb[0].mxu0 %v549
        %v1949 = vpop.f32.mrb[0].mxu0
        %v1950 = vadd.f32 0.0, %v1949
        %v1951 = vpop.f32.mrb[0].mxu0
        %1952 = vmatprep.mubr.f32.mxu0 0.0
        %1953 = vmatmul.mubr.f32.gmra.mrb[0].mxu0 %v551
        %v1954 = vpop.f32.mrb[0].mxu0
        %v1955 = vadd.f32 0.0, %v1954
        %v1956 = vpop.f32.mrb[0].mxu0
        %1957 = vmatprep.mubr.f32.mxu0 0.0
        %1958 = vmatmul.mubr.f32.gmra.mrb[0].mxu0 %v553
        %v1959 = vpop.f32.mrb[0].mxu0
        %v1960 = vadd.f32 0.0, %v1959
        %v1961 = vpop.f32.mrb[0].mxu0
        %1962 = vmatprep.mubr.f32.mxu0 0.0
        %1963 = vmatmul.mubr.f32.gmra.mrb[0].mxu0 %v555
        %v1964 = vpop.f32.mrb[0].mxu0
        %v1965 = vadd.f32 0.0, %v1964
        %v1966 = vpop.f32.mrb[0].mxu0
        %1967 = vmatprep.mubr.f32.mxu0 0.0
        %1968 = vmatmul.mubr.f32.gmra.mrb[0].mxu0 %v557
        %v1969 = vpop.f32.mrb[0].mxu0
        %v1970 = vadd.f32 0.0, %v1969
        %v1971 = vpop.f32.mrb[0].mxu0
        %1972 = vmatprep.mubr.f32.mxu0 0.0
        %1973 = vmatmul.mubr.f32.gmra.mrb[0].mxu0 %v559
        %v1974 = vpop.f32.mrb[0].mxu0
        %v1975 = vadd.f32 0.0, %v1974
        %v1976 = vpop.f32.mrb[0].mxu0
        %1977 = vmatprep.mubr.f32.mxu0 0.0
        %1978 = vmatmul.mubr.f32.gmra.mrb[0].mxu0 %v561
        %v1979 = vpop.f32.mrb[0].mxu0
        %v1980 = vadd.f32 0.0, %v1979
        %v1981 = vpop.f32.mrb[0].mxu0
        %1982 = vmatprep.mubr.f32.mxu0 0.0
        %1983 = vmatmul.mubr.f32.gmra.mrb[0].mxu0 %v563
        %v1984 = vpop.f32.mrb[0].mxu0
        %v1985 = vadd.f32 0.0, %v1984
        %v1986 = vpop.f32.mrb[0].mxu0
        %1987 = vmatprep.mubr.f32.mxu0 0.0
        %1988 = vmatmul.mubr.f32.gmra.mrb[0].mxu0 %v565
        %v1989 = vpop.f32.mrb[0].mxu0
        %v1990 = vadd.f32 0.0, %v1989
        %v1991 = vpop.f32.mrb[0].mxu0
        %1992 = vmatprep.mubr.f32.mxu0 0.0
        %1993 = vmatmul.mubr.f32.gmra.mrb[0].mxu0 %v1771
        %v1994 = vpop.f32.mrb[0].mxu0
        %v1995 = vadd.f32 0.0, %v1994
        %v1996 = vpop.f32.mrb[0].mxu0
        %1997 = vmatprep.mubr.f32.mxu0 0.0
        %1998 = vmatmul.mubr.f32.gmra.mrb[0].mxu0 %v1773
        %v1999 = vpop.f32.mrb[0].mxu0
        %v2000 = vadd.f32 0.0, %v1999
        %v2001 = vpop.f32.mrb[0].mxu0
        %2002 = vdwg.mxu0
        %v2003 = vadd.f32 %v1731, %v1845
        %v2004 = vadd.f32 %v1732, %v1850
        %v2005 = vadd.f32 %v1733, %v1855
        %v2006 = vadd.f32 %v1734, %v1860
        %v2007 = vadd.f32 %v1735, %v1865
        %v2008 = vadd.f32 %v1736, %v1870
        %v2009 = vadd.f32 %v1737, %v1875
        %v2010 = vadd.f32 %v1738, %v1880
        %v2011 = vadd.f32 %v1739, %v1885
        %v2012 = vadd.f32 %v1740, %v1890
        %v2013 = vadd.f32 %v1741, %v1895
        %v2014 = vadd.f32 %v1742, %v1900
        %v2015 = vadd.f32 %v1743, %v1905
        %v2016 = vadd.f32 %v1744, %v1910
        %v2017 = vadd.f32 %v1745, %v1915
        %v2018 = vadd.f32 %v1746, %v1920
        %v2019 = vadd.f32 %v1747, %v1925
        %v2020 = vadd.f32 %v1748, %v1930
        %v2021 = vadd.f32 %v1749, %v1935
        %v2022 = vadd.f32 %v1750, %v1940
        %v2023 = vadd.f32 %v1751, %v1945
        %v2024 = vadd.f32 %v1752, %v1950
        %v2025 = vadd.f32 %v1753, %v1955
        %v2026 = vadd.f32 %v1754, %v1960
        %v2027 = vadd.f32 %v1755, %v1965
        %v2028 = vadd.f32 %v1756, %v1970
        %v2029 = vadd.f32 %v1757, %v1975
        %v2030 = vadd.f32 %v1758, %v1980
        %v2031 = vadd.f32 %v1759, %v1985
        %v2032 = vadd.f32 %v1760, %v1990
        %v2033 = vadd.f32 %v1761, %v1995
        %v2034 = vadd.f32 %v1762, %v2000
        %v2035 = vrot.slane %v364, 2
        %v2036 = vrot.slane %v365, 2
        %v2037 = vsel %vm1088, %v2035, %v2036
        %v2038 = vrot.slane %v366, 2
        %v2039 = vsel %vm1088, %v2036, %v2038
        %s2040 = scalar_lea.vmem %s1, 20
        %v2041 = vld [vmem:[%s2040] sm:$0xf]
        %v2042 = vsel %vm502, %v2037, 0
        %v2044 = vsel %vm502, %v2039, 0
        %v2047 = vsel %vm567, %v2041, 0
        %2049 = vmatprep.subr.mxu0 0.0
        %2050 = vmatpush1.msra.mxu0 %v2047
        %2051 = vmatprep.subr.mxu0 0.0
        %2052 = vmatpush1.msra.mxu0 0.0
        %2053 = vmatprep.subr.mxu0 0.0
        %2054 = vmatpush1.msra.mxu0 0.0
        %2055 = vmatprep.subr.mxu0 0.0
        %2056 = vmatpush1.msra.mxu0 0.0
        %2057 = vmatprep.subr.mxu0 0.0
        %2058 = vmatpush1.msra.mxu0 0.0
        %2059 = vmatprep.subr.mxu0 0.0
        %2060 = vmatpush1.msra.mxu0 0.0
        %2061 = vmatprep.subr.mxu0 0.0
        %2062 = vmatpush1.msra.mxu0 0.0
        %2063 = vmatprep.subr.mxu0 0.0
        %2064 = vmatpush1.msra.mxu0 0.0
        %2065 = vmatprep.subr.mxu0 0.0
        %2066 = vmatpush1.msra.mxu0 0.0
        %2067 = vmatprep.subr.mxu0 0.0
        %2068 = vmatpush1.msra.mxu0 0.0
        %2069 = vmatprep.subr.mxu0 0.0
        %2070 = vmatpush1.msra.mxu0 0.0
        %2071 = vmatprep.subr.mxu0 0.0
        %2072 = vmatpush1.msra.mxu0 0.0
        %2073 = vmatprep.subr.mxu0 0.0
        %2074 = vmatpush1.msra.mxu0 0.0
        %2075 = vmatprep.subr.mxu0 0.0
        %2076 = vmatpush1.msra.mxu0 0.0
        %2077 = vmatprep.subr.mxu0 0.0
        %2078 = vmatpush1.msra.mxu0 0.0
        %2079 = vmatprep.subr.mxu0 0.0
        %2080 = vmatpush1.msra.mxu0 0.0
        %2081 = vmatprep.subr.mxu0 0.0
        %2082 = vmatpush1.msra.mxu0 0.0
        %2083 = vmatprep.subr.mxu0 0.0
        %2084 = vmatpush1.msra.mxu0 0.0
        %2085 = vmatprep.subr.mxu0 0.0
        %2086 = vmatpush1.msra.mxu0 0.0
        %2087 = vmatprep.subr.mxu0 0.0
        %2088 = vmatpush1.msra.mxu0 0.0
        %2089 = vmatprep.subr.mxu0 0.0
        %2090 = vmatpush1.msra.mxu0 0.0
        %2091 = vmatprep.subr.mxu0 0.0
        %2092 = vmatpush1.msra.mxu0 0.0
        %2093 = vmatprep.subr.mxu0 0.0
        %2094 = vmatpush1.msra.mxu0 0.0
        %2095 = vmatprep.subr.mxu0 0.0
        %2096 = vmatpush1.msra.mxu0 0.0
        %2097 = vmatprep.subr.mxu0 0.0
        %2098 = vmatpush1.msra.mxu0 0.0
        %2099 = vmatprep.subr.mxu0 0.0
        %2100 = vmatpush1.msra.mxu0 0.0
        %2101 = vmatprep.subr.mxu0 0.0
        %2102 = vmatpush1.msra.mxu0 0.0
        %2103 = vmatprep.subr.mxu0 0.0
        %2104 = vmatpush1.msra.mxu0 0.0
        %2105 = vmatprep.subr.mxu0 0.0
        %2106 = vmatpush1.msra.mxu0 0.0
        %2107 = vmatprep.subr.mxu0 0.0
        %2108 = vmatpush1.msra.mxu0 0.0
        %2109 = vmatprep.subr.mxu0 0.0
        %2110 = vmatpush1.msra.mxu0 0.0
        %2111 = vmatprep.subr.mxu0 0.0
        %2112 = vmatpush1.msra.mxu0 0.0
        %2113 = vmatprep.mubr.f32.mxu0 0.0
        %2114 = vmatmul.mubr.f32.gmra.mrb[0].mxu0 %v1175
        %v2115 = vpop.f32.mrb[0].mxu0
        %v2116 = vadd.f32 0.0, %v2115
        %v2117 = vpop.f32.mrb[0].mxu0
        %2118 = vmatprep.mubr.f32.mxu0 0.0
        %2119 = vmatmul.mubr.f32.gmra.mrb[0].mxu0 %v1177
        %v2120 = vpop.f32.mrb[0].mxu0
        %v2121 = vadd.f32 0.0, %v2120
        %v2122 = vpop.f32.mrb[0].mxu0
        %2123 = vmatprep.mubr.f32.mxu0 0.0
        %2124 = vmatmul.mubr.f32.gmra.mrb[0].mxu0 %v1179
        %v2125 = vpop.f32.mrb[0].mxu0
        %v2126 = vadd.f32 0.0, %v2125
        %v2127 = vpop.f32.mrb[0].mxu0
        %2128 = vmatprep.mubr.f32.mxu0 0.0
        %2129 = vmatmul.mubr.f32.gmra.mrb[0].mxu0 %v1181
        %v2130 = vpop.f32.mrb[0].mxu0
        %v2131 = vadd.f32 0.0, %v2130
        %v2132 = vpop.f32.mrb[0].mxu0
        %2133 = vmatprep.mubr.f32.mxu0 0.0
        %2134 = vmatmul.mubr.f32.gmra.mrb[0].mxu0 %v1183
        %v2135 = vpop.f32.mrb[0].mxu0
        %v2136 = vadd.f32 0.0, %v2135
        %v2137 = vpop.f32.mrb[0].mxu0
        %2138 = vmatprep.mubr.f32.mxu0 0.0
        %2139 = vmatmul.mubr.f32.gmra.mrb[0].mxu0 %v1185
        %v2140 = vpop.f32.mrb[0].mxu0
        %v2141 = vadd.f32 0.0, %v2140
        %v2142 = vpop.f32.mrb[0].mxu0
        %2143 = vmatprep.mubr.f32.mxu0 0.0
        %2144 = vmatmul.mubr.f32.gmra.mrb[0].mxu0 %v1187
        %v2145 = vpop.f32.mrb[0].mxu0
        %v2146 = vadd.f32 0.0, %v2145
        %v2147 = vpop.f32.mrb[0].mxu0
        %2148 = vmatprep.mubr.f32.mxu0 0.0
        %2149 = vmatmul.mubr.f32.gmra.mrb[0].mxu0 %v1189
        %v2150 = vpop.f32.mrb[0].mxu0
        %v2151 = vadd.f32 0.0, %v2150
        %v2152 = vpop.f32.mrb[0].mxu0
        %2153 = vmatprep.mubr.f32.mxu0 0.0
        %2154 = vmatmul.mubr.f32.gmra.mrb[0].mxu0 %v1191
        %v2155 = vpop.f32.mrb[0].mxu0
        %v2156 = vadd.f32 0.0, %v2155
        %v2157 = vpop.f32.mrb[0].mxu0
        %2158 = vmatprep.mubr.f32.mxu0 0.0
        %2159 = vmatmul.mubr.f32.gmra.mrb[0].mxu0 %v1193
        %v2160 = vpop.f32.mrb[0].mxu0
        %v2161 = vadd.f32 0.0, %v2160
        %v2162 = vpop.f32.mrb[0].mxu0
        %2163 = vmatprep.mubr.f32.mxu0 0.0
        %2164 = vmatmul.mubr.f32.gmra.mrb[0].mxu0 %v1195
        %v2165 = vpop.f32.mrb[0].mxu0
        %v2166 = vadd.f32 0.0, %v2165
        %v2167 = vpop.f32.mrb[0].mxu0
        %2168 = vmatprep.mubr.f32.mxu0 0.0
        %2169 = vmatmul.mubr.f32.gmra.mrb[0].mxu0 %v1197
        %v2170 = vpop.f32.mrb[0].mxu0
        %v2171 = vadd.f32 0.0, %v2170
        %v2172 = vpop.f32.mrb[0].mxu0
        %2173 = vmatprep.mubr.f32.mxu0 0.0
        %2174 = vmatmul.mubr.f32.gmra.mrb[0].mxu0 %v1199
        %v2175 = vpop.f32.mrb[0].mxu0
        %v2176 = vadd.f32 0.0, %v2175
        %v2177 = vpop.f32.mrb[0].mxu0
        %2178 = vmatprep.mubr.f32.mxu0 0.0
        %2179 = vmatmul.mubr.f32.gmra.mrb[0].mxu0 %v1201
        %v2180 = vpop.f32.mrb[0].mxu0
        %v2181 = vadd.f32 0.0, %v2180
        %v2182 = vpop.f32.mrb[0].mxu0
        %2183 = vmatprep.mubr.f32.mxu0 0.0
        %2184 = vmatmul.mubr.f32.gmra.mrb[0].mxu0 %v1203
        %v2185 = vpop.f32.mrb[0].mxu0
        %v2186 = vadd.f32 0.0, %v2185
        %v2187 = vpop.f32.mrb[0].mxu0
        %2188 = vmatprep.mubr.f32.mxu0 0.0
        %2189 = vmatmul.mubr.f32.gmra.mrb[0].mxu0 %v1205
        %v2190 = vpop.f32.mrb[0].mxu0
        %v2191 = vadd.f32 0.0, %v2190
        %v2192 = vpop.f32.mrb[0].mxu0
        %2193 = vmatprep.mubr.f32.mxu0 0.0
        %2194 = vmatmul.mubr.f32.gmra.mrb[0].mxu0 %v1207
        %v2195 = vpop.f32.mrb[0].mxu0
        %v2196 = vadd.f32 0.0, %v2195
        %v2197 = vpop.f32.mrb[0].mxu0
        %2198 = vmatprep.mubr.f32.mxu0 0.0
        %2199 = vmatmul.mubr.f32.gmra.mrb[0].mxu0 %v1209
        %v2200 = vpop.f32.mrb[0].mxu0
        %v2201 = vadd.f32 0.0, %v2200
        %v2202 = vpop.f32.mrb[0].mxu0
        %2203 = vmatprep.mubr.f32.mxu0 0.0
        %2204 = vmatmul.mubr.f32.gmra.mrb[0].mxu0 %v1211
        %v2205 = vpop.f32.mrb[0].mxu0
        %v2206 = vadd.f32 0.0, %v2205
        %v2207 = vpop.f32.mrb[0].mxu0
        %2208 = vmatprep.mubr.f32.mxu0 0.0
        %2209 = vmatmul.mubr.f32.gmra.mrb[0].mxu0 %v1213
        %v2210 = vpop.f32.mrb[0].mxu0
        %v2211 = vadd.f32 0.0, %v2210
        %v2212 = vpop.f32.mrb[0].mxu0
        %2213 = vmatprep.mubr.f32.mxu0 0.0
        %2214 = vmatmul.mubr.f32.gmra.mrb[0].mxu0 %v1215
        %v2215 = vpop.f32.mrb[0].mxu0
        %v2216 = vadd.f32 0.0, %v2215
        %v2217 = vpop.f32.mrb[0].mxu0
        %2218 = vmatprep.mubr.f32.mxu0 0.0
        %2219 = vmatmul.mubr.f32.gmra.mrb[0].mxu0 %v1217
        %v2220 = vpop.f32.mrb[0].mxu0
        %v2221 = vadd.f32 0.0, %v2220
        %v2222 = vpop.f32.mrb[0].mxu0
        %2223 = vmatprep.mubr.f32.mxu0 0.0
        %2224 = vmatmul.mubr.f32.gmra.mrb[0].mxu0 %v1219
        %v2225 = vpop.f32.mrb[0].mxu0
        %v2226 = vadd.f32 0.0, %v2225
        %v2227 = vpop.f32.mrb[0].mxu0
        %2228 = vmatprep.mubr.f32.mxu0 0.0
        %2229 = vmatmul.mubr.f32.gmra.mrb[0].mxu0 %v1221
        %v2230 = vpop.f32.mrb[0].mxu0
        %v2231 = vadd.f32 0.0, %v2230
        %v2232 = vpop.f32.mrb[0].mxu0
        %2233 = vmatprep.mubr.f32.mxu0 0.0
        %2234 = vmatmul.mubr.f32.gmra.mrb[0].mxu0 %v1223
        %v2235 = vpop.f32.mrb[0].mxu0
        %v2236 = vadd.f32 0.0, %v2235
        %v2237 = vpop.f32.mrb[0].mxu0
        %2238 = vmatprep.mubr.f32.mxu0 0.0
        %2239 = vmatmul.mubr.f32.gmra.mrb[0].mxu0 %v1225
        %v2240 = vpop.f32.mrb[0].mxu0
        %v2241 = vadd.f32 0.0, %v2240
        %v2242 = vpop.f32.mrb[0].mxu0
        %2243 = vmatprep.mubr.f32.mxu0 0.0
        %2244 = vmatmul.mubr.f32.gmra.mrb[0].mxu0 %v1227
        %v2245 = vpop.f32.mrb[0].mxu0
        %v2246 = vadd.f32 0.0, %v2245
        %v2247 = vpop.f32.mrb[0].mxu0
        %2248 = vmatprep.mubr.f32.mxu0 0.0
        %2249 = vmatmul.mubr.f32.gmra.mrb[0].mxu0 %v1229
        %v2250 = vpop.f32.mrb[0].mxu0
        %v2251 = vadd.f32 0.0, %v2250
        %v2252 = vpop.f32.mrb[0].mxu0
        %2253 = vmatprep.mubr.f32.mxu0 0.0
        %2254 = vmatmul.mubr.f32.gmra.mrb[0].mxu0 %v1231
        %v2255 = vpop.f32.mrb[0].mxu0
        %v2256 = vadd.f32 0.0, %v2255
        %v2257 = vpop.f32.mrb[0].mxu0
        %2258 = vmatprep.mubr.f32.mxu0 0.0
        %2259 = vmatmul.mubr.f32.gmra.mrb[0].mxu0 %v1233
        %v2260 = vpop.f32.mrb[0].mxu0
        %v2261 = vadd.f32 0.0, %v2260
        %v2262 = vpop.f32.mrb[0].mxu0
        %2263 = vmatprep.mubr.f32.mxu0 0.0
        %2264 = vmatmul.mubr.f32.gmra.mrb[0].mxu0 %v2042
        %v2265 = vpop.f32.mrb[0].mxu0
        %v2266 = vadd.f32 0.0, %v2265
        %v2267 = vpop.f32.mrb[0].mxu0
        %2268 = vmatprep.mubr.f32.mxu0 0.0
        %2269 = vmatmul.mubr.f32.gmra.mrb[0].mxu0 %v2044
        %v2270 = vpop.f32.mrb[0].mxu0
        %v2271 = vadd.f32 0.0, %v2270
        %v2272 = vpop.f32.mrb[0].mxu0
        %2273 = vdwg.mxu0
        %v2274 = vadd.f32 %v2003, %v2116
        %v2275 = vadd.f32 %v2004, %v2121
        %v2276 = vadd.f32 %v2005, %v2126
        %v2277 = vadd.f32 %v2006, %v2131
        %v2278 = vadd.f32 %v2007, %v2136
        %v2279 = vadd.f32 %v2008, %v2141
        %v2280 = vadd.f32 %v2009, %v2146
        %v2281 = vadd.f32 %v2010, %v2151
        %v2282 = vadd.f32 %v2011, %v2156
        %v2283 = vadd.f32 %v2012, %v2161
        %v2284 = vadd.f32 %v2013, %v2166
        %v2285 = vadd.f32 %v2014, %v2171
        %v2286 = vadd.f32 %v2015, %v2176
        %v2287 = vadd.f32 %v2016, %v2181
        %v2288 = vadd.f32 %v2017, %v2186
        %v2289 = vadd.f32 %v2018, %v2191
        %v2290 = vadd.f32 %v2019, %v2196
        %v2291 = vadd.f32 %v2020, %v2201
        %v2292 = vadd.f32 %v2021, %v2206
        %v2293 = vadd.f32 %v2022, %v2211
        %v2294 = vadd.f32 %v2023, %v2216
        %v2295 = vadd.f32 %v2024, %v2221
        %v2296 = vadd.f32 %v2025, %v2226
        %v2297 = vadd.f32 %v2026, %v2231
        %v2298 = vadd.f32 %v2027, %v2236
        %v2299 = vadd.f32 %v2028, %v2241
        %v2300 = vadd.f32 %v2029, %v2246
        %v2301 = vadd.f32 %v2030, %v2251
        %v2302 = vadd.f32 %v2031, %v2256
        %v2303 = vadd.f32 %v2032, %v2261
        %v2304 = vadd.f32 %v2033, %v2266
        %v2305 = vadd.f32 %v2034, %v2271
        %s2306 = scalar_lea.vmem %s1, 24
        %v2307 = vld [vmem:[%s2306] sm:$0xf]
        %v2309 = vsel %vm502, %v367, 0
        %v2312 = vsel %vm502, %v368, 0
        %v2315 = vsel %vm567, %v2307, 0
        %2317 = vmatprep.subr.mxu0 0.0
        %2318 = vmatpush1.msra.mxu0 %v2315
        %2319 = vmatprep.subr.mxu0 0.0
        %2320 = vmatpush1.msra.mxu0 0.0
        %2321 = vmatprep.subr.mxu0 0.0
        %2322 = vmatpush1.msra.mxu0 0.0
        %2323 = vmatprep.subr.mxu0 0.0
        %2324 = vmatpush1.msra.mxu0 0.0
        %2325 = vmatprep.subr.mxu0 0.0
        %2326 = vmatpush1.msra.mxu0 0.0
        %2327 = vmatprep.subr.mxu0 0.0
        %2328 = vmatpush1.msra.mxu0 0.0
        %2329 = vmatprep.subr.mxu0 0.0
        %2330 = vmatpush1.msra.mxu0 0.0
        %2331 = vmatprep.subr.mxu0 0.0
        %2332 = vmatpush1.msra.mxu0 0.0
        %2333 = vmatprep.subr.mxu0 0.0
        %2334 = vmatpush1.msra.mxu0 0.0
        %2335 = vmatprep.subr.mxu0 0.0
        %2336 = vmatpush1.msra.mxu0 0.0
        %2337 = vmatprep.subr.mxu0 0.0
        %2338 = vmatpush1.msra.mxu0 0.0
        %2339 = vmatprep.subr.mxu0 0.0
        %2340 = vmatpush1.msra.mxu0 0.0
        %2341 = vmatprep.subr.mxu0 0.0
        %2342 = vmatpush1.msra.mxu0 0.0
        %2343 = vmatprep.subr.mxu0 0.0
        %2344 = vmatpush1.msra.mxu0 0.0
        %2345 = vmatprep.subr.mxu0 0.0
        %2346 = vmatpush1.msra.mxu0 0.0
        %2347 = vmatprep.subr.mxu0 0.0
        %2348 = vmatpush1.msra.mxu0 0.0
        %2349 = vmatprep.subr.mxu0 0.0
        %2350 = vmatpush1.msra.mxu0 0.0
        %2351 = vmatprep.subr.mxu0 0.0
        %2352 = vmatpush1.msra.mxu0 0.0
        %2353 = vmatprep.subr.mxu0 0.0
        %2354 = vmatpush1.msra.mxu0 0.0
        %2355 = vmatprep.subr.mxu0 0.0
        %2356 = vmatpush1.msra.mxu0 0.0
        %2357 = vmatprep.subr.mxu0 0.0
        %2358 = vmatpush1.msra.mxu0 0.0
        %2359 = vmatprep.subr.mxu0 0.0
        %2360 = vmatpush1.msra.mxu0 0.0
        %2361 = vmatprep.subr.mxu0 0.0
        %2362 = vmatpush1.msra.mxu0 0.0
        %2363 = vmatprep.subr.mxu0 0.0
        %2364 = vmatpush1.msra.mxu0 0.0
        %2365 = vmatprep.subr.mxu0 0.0
        %2366 = vmatpush1.msra.mxu0 0.0
        %2367 = vmatprep.subr.mxu0 0.0
        %2368 = vmatpush1.msra.mxu0 0.0
        %2369 = vmatprep.subr.mxu0 0.0
        %2370 = vmatpush1.msra.mxu0 0.0
        %2371 = vmatprep.subr.mxu0 0.0
        %2372 = vmatpush1.msra.mxu0 0.0
        %2373 = vmatprep.subr.mxu0 0.0
        %2374 = vmatpush1.msra.mxu0 0.0
        %2375 = vmatprep.subr.mxu0 0.0
        %2376 = vmatpush1.msra.mxu0 0.0
        %2377 = vmatprep.subr.mxu0 0.0
        %2378 = vmatpush1.msra.mxu0 0.0
        %2379 = vmatprep.subr.mxu0 0.0
        %2380 = vmatpush1.msra.mxu0 0.0
        %2381 = vmatprep.mubr.f32.mxu0 0.0
        %2382 = vmatmul.mubr.f32.gmra.mrb[0].mxu0 %v804
        %v2383 = vpop.f32.mrb[0].mxu0
        %v2384 = vadd.f32 0.0, %v2383
        %v2385 = vpop.f32.mrb[0].mxu0
        %2386 = vmatprep.mubr.f32.mxu0 0.0
        %2387 = vmatmul.mubr.f32.gmra.mrb[0].mxu0 %v806
        %v2388 = vpop.f32.mrb[0].mxu0
        %v2389 = vadd.f32 0.0, %v2388
        %v2390 = vpop.f32.mrb[0].mxu0
        %2391 = vmatprep.mubr.f32.mxu0 0.0
        %2392 = vmatmul.mubr.f32.gmra.mrb[0].mxu0 %v808
        %v2393 = vpop.f32.mrb[0].mxu0
        %v2394 = vadd.f32 0.0, %v2393
        %v2395 = vpop.f32.mrb[0].mxu0
        %2396 = vmatprep.mubr.f32.mxu0 0.0
        %2397 = vmatmul.mubr.f32.gmra.mrb[0].mxu0 %v810
        %v2398 = vpop.f32.mrb[0].mxu0
        %v2399 = vadd.f32 0.0, %v2398
        %v2400 = vpop.f32.mrb[0].mxu0
        %2401 = vmatprep.mubr.f32.mxu0 0.0
        %2402 = vmatmul.mubr.f32.gmra.mrb[0].mxu0 %v812
        %v2403 = vpop.f32.mrb[0].mxu0
        %v2404 = vadd.f32 0.0, %v2403
        %v2405 = vpop.f32.mrb[0].mxu0
        %2406 = vmatprep.mubr.f32.mxu0 0.0
        %2407 = vmatmul.mubr.f32.gmra.mrb[0].mxu0 %v814
        %v2408 = vpop.f32.mrb[0].mxu0
        %v2409 = vadd.f32 0.0, %v2408
        %v2410 = vpop.f32.mrb[0].mxu0
        %2411 = vmatprep.mubr.f32.mxu0 0.0
        %2412 = vmatmul.mubr.f32.gmra.mrb[0].mxu0 %v816
        %v2413 = vpop.f32.mrb[0].mxu0
        %v2414 = vadd.f32 0.0, %v2413
        %v2415 = vpop.f32.mrb[0].mxu0
        %2416 = vmatprep.mubr.f32.mxu0 0.0
        %2417 = vmatmul.mubr.f32.gmra.mrb[0].mxu0 %v818
        %v2418 = vpop.f32.mrb[0].mxu0
        %v2419 = vadd.f32 0.0, %v2418
        %v2420 = vpop.f32.mrb[0].mxu0
        %2421 = vmatprep.mubr.f32.mxu0 0.0
        %2422 = vmatmul.mubr.f32.gmra.mrb[0].mxu0 %v820
        %v2423 = vpop.f32.mrb[0].mxu0
        %v2424 = vadd.f32 0.0, %v2423
        %v2425 = vpop.f32.mrb[0].mxu0
        %2426 = vmatprep.mubr.f32.mxu0 0.0
        %2427 = vmatmul.mubr.f32.gmra.mrb[0].mxu0 %v822
        %v2428 = vpop.f32.mrb[0].mxu0
        %v2429 = vadd.f32 0.0, %v2428
        %v2430 = vpop.f32.mrb[0].mxu0
        %2431 = vmatprep.mubr.f32.mxu0 0.0
        %2432 = vmatmul.mubr.f32.gmra.mrb[0].mxu0 %v824
        %v2433 = vpop.f32.mrb[0].mxu0
        %v2434 = vadd.f32 0.0, %v2433
        %v2435 = vpop.f32.mrb[0].mxu0
        %2436 = vmatprep.mubr.f32.mxu0 0.0
        %2437 = vmatmul.mubr.f32.gmra.mrb[0].mxu0 %v826
        %v2438 = vpop.f32.mrb[0].mxu0
        %v2439 = vadd.f32 0.0, %v2438
        %v2440 = vpop.f32.mrb[0].mxu0
        %2441 = vmatprep.mubr.f32.mxu0 0.0
        %2442 = vmatmul.mubr.f32.gmra.mrb[0].mxu0 %v828
        %v2443 = vpop.f32.mrb[0].mxu0
        %v2444 = vadd.f32 0.0, %v2443
        %v2445 = vpop.f32.mrb[0].mxu0
        %2446 = vmatprep.mubr.f32.mxu0 0.0
        %2447 = vmatmul.mubr.f32.gmra.mrb[0].mxu0 %v830
        %v2448 = vpop.f32.mrb[0].mxu0
        %v2449 = vadd.f32 0.0, %v2448
        %v2450 = vpop.f32.mrb[0].mxu0
        %2451 = vmatprep.mubr.f32.mxu0 0.0
        %2452 = vmatmul.mubr.f32.gmra.mrb[0].mxu0 %v832
        %v2453 = vpop.f32.mrb[0].mxu0
        %v2454 = vadd.f32 0.0, %v2453
        %v2455 = vpop.f32.mrb[0].mxu0
        %2456 = vmatprep.mubr.f32.mxu0 0.0
        %2457 = vmatmul.mubr.f32.gmra.mrb[0].mxu0 %v834
        %v2458 = vpop.f32.mrb[0].mxu0
        %v2459 = vadd.f32 0.0, %v2458
        %v2460 = vpop.f32.mrb[0].mxu0
        %2461 = vmatprep.mubr.f32.mxu0 0.0
        %2462 = vmatmul.mubr.f32.gmra.mrb[0].mxu0 %v836
        %v2463 = vpop.f32.mrb[0].mxu0
        %v2464 = vadd.f32 0.0, %v2463
        %v2465 = vpop.f32.mrb[0].mxu0
        %2466 = vmatprep.mubr.f32.mxu0 0.0
        %2467 = vmatmul.mubr.f32.gmra.mrb[0].mxu0 %v838
        %v2468 = vpop.f32.mrb[0].mxu0
        %v2469 = vadd.f32 0.0, %v2468
        %v2470 = vpop.f32.mrb[0].mxu0
        %2471 = vmatprep.mubr.f32.mxu0 0.0
        %2472 = vmatmul.mubr.f32.gmra.mrb[0].mxu0 %v840
        %v2473 = vpop.f32.mrb[0].mxu0
        %v2474 = vadd.f32 0.0, %v2473
        %v2475 = vpop.f32.mrb[0].mxu0
        %2476 = vmatprep.mubr.f32.mxu0 0.0
        %2477 = vmatmul.mubr.f32.gmra.mrb[0].mxu0 %v842
        %v2478 = vpop.f32.mrb[0].mxu0
        %v2479 = vadd.f32 0.0, %v2478
        %v2480 = vpop.f32.mrb[0].mxu0
        %2481 = vmatprep.mubr.f32.mxu0 0.0
        %2482 = vmatmul.mubr.f32.gmra.mrb[0].mxu0 %v844
        %v2483 = vpop.f32.mrb[0].mxu0
        %v2484 = vadd.f32 0.0, %v2483
        %v2485 = vpop.f32.mrb[0].mxu0
        %2486 = vmatprep.mubr.f32.mxu0 0.0
        %2487 = vmatmul.mubr.f32.gmra.mrb[0].mxu0 %v846
        %v2488 = vpop.f32.mrb[0].mxu0
        %v2489 = vadd.f32 0.0, %v2488
        %v2490 = vpop.f32.mrb[0].mxu0
        %2491 = vmatprep.mubr.f32.mxu0 0.0
        %2492 = vmatmul.mubr.f32.gmra.mrb[0].mxu0 %v848
        %v2493 = vpop.f32.mrb[0].mxu0
        %v2494 = vadd.f32 0.0, %v2493
        %v2495 = vpop.f32.mrb[0].mxu0
        %2496 = vmatprep.mubr.f32.mxu0 0.0
        %2497 = vmatmul.mubr.f32.gmra.mrb[0].mxu0 %v850
        %v2498 = vpop.f32.mrb[0].mxu0
        %v2499 = vadd.f32 0.0, %v2498
        %v2500 = vpop.f32.mrb[0].mxu0
        %2501 = vmatprep.mubr.f32.mxu0 0.0
        %2502 = vmatmul.mubr.f32.gmra.mrb[0].mxu0 %v852
        %v2503 = vpop.f32.mrb[0].mxu0
        %v2504 = vadd.f32 0.0, %v2503
        %v2505 = vpop.f32.mrb[0].mxu0
        %2506 = vmatprep.mubr.f32.mxu0 0.0
        %2507 = vmatmul.mubr.f32.gmra.mrb[0].mxu0 %v854
        %v2508 = vpop.f32.mrb[0].mxu0
        %v2509 = vadd.f32 0.0, %v2508
        %v2510 = vpop.f32.mrb[0].mxu0
        %2511 = vmatprep.mubr.f32.mxu0 0.0
        %2512 = vmatmul.mubr.f32.gmra.mrb[0].mxu0 %v856
        %v2513 = vpop.f32.mrb[0].mxu0
        %v2514 = vadd.f32 0.0, %v2513
        %v2515 = vpop.f32.mrb[0].mxu0
        %2516 = vmatprep.mubr.f32.mxu0 0.0
        %2517 = vmatmul.mubr.f32.gmra.mrb[0].mxu0 %v858
        %v2518 = vpop.f32.mrb[0].mxu0
        %v2519 = vadd.f32 0.0, %v2518
        %v2520 = vpop.f32.mrb[0].mxu0
        %2521 = vmatprep.mubr.f32.mxu0 0.0
        %2522 = vmatmul.mubr.f32.gmra.mrb[0].mxu0 %v1498
        %v2523 = vpop.f32.mrb[0].mxu0
        %v2524 = vadd.f32 0.0, %v2523
        %v2525 = vpop.f32.mrb[0].mxu0
        %2526 = vmatprep.mubr.f32.mxu0 0.0
        %2527 = vmatmul.mubr.f32.gmra.mrb[0].mxu0 %v1501
        %v2528 = vpop.f32.mrb[0].mxu0
        %v2529 = vadd.f32 0.0, %v2528
        %v2530 = vpop.f32.mrb[0].mxu0
        %2531 = vmatprep.mubr.f32.mxu0 0.0
        %2532 = vmatmul.mubr.f32.gmra.mrb[0].mxu0 %v2309
        %v2533 = vpop.f32.mrb[0].mxu0
        %v2534 = vadd.f32 0.0, %v2533
        %v2535 = vpop.f32.mrb[0].mxu0
        %2536 = vmatprep.mubr.f32.mxu0 0.0
        %2537 = vmatmul.mubr.f32.gmra.mrb[0].mxu0 %v2312
        %v2538 = vpop.f32.mrb[0].mxu0
        %v2539 = vadd.f32 0.0, %v2538
        %v2540 = vpop.f32.mrb[0].mxu0
        %2541 = vdwg.mxu0
        %v2542 = vadd.f32 %v2274, %v2384
        %v2543 = vadd.f32 %v2275, %v2389
        %v2544 = vadd.f32 %v2276, %v2394
        %v2545 = vadd.f32 %v2277, %v2399
        %v2546 = vadd.f32 %v2278, %v2404
        %v2547 = vadd.f32 %v2279, %v2409
        %v2548 = vadd.f32 %v2280, %v2414
        %v2549 = vadd.f32 %v2281, %v2419
        %v2550 = vadd.f32 %v2282, %v2424
        %v2551 = vadd.f32 %v2283, %v2429
        %v2552 = vadd.f32 %v2284, %v2434
        %v2553 = vadd.f32 %v2285, %v2439
        %v2554 = vadd.f32 %v2286, %v2444
        %v2555 = vadd.f32 %v2287, %v2449
        %v2556 = vadd.f32 %v2288, %v2454
        %v2557 = vadd.f32 %v2289, %v2459
        %v2558 = vadd.f32 %v2290, %v2464
        %v2559 = vadd.f32 %v2291, %v2469
        %v2560 = vadd.f32 %v2292, %v2474
        %v2561 = vadd.f32 %v2293, %v2479
        %v2562 = vadd.f32 %v2294, %v2484
        %v2563 = vadd.f32 %v2295, %v2489
        %v2564 = vadd.f32 %v2296, %v2494
        %v2565 = vadd.f32 %v2297, %v2499
        %v2566 = vadd.f32 %v2298, %v2504
        %v2567 = vadd.f32 %v2299, %v2509
        %v2568 = vadd.f32 %v2300, %v2514
        %v2569 = vadd.f32 %v2301, %v2519
        %v2570 = vadd.f32 %v2302, %v2524
        %v2571 = vadd.f32 %v2303, %v2529
        %v2572 = vadd.f32 %v2304, %v2534
        %v2573 = vadd.f32 %v2305, %v2539
        %v2575 = vrot.slane %v367, 1
        %v2576 = vrot.slane %v368, 1
        %v2577 = vsel %vm419, %v2575, %v2576
        %v2578 = vrot.slane %v369, 1
        %v2579 = vsel %vm419, %v2576, %v2578
        %s2580 = scalar_lea.vmem %s1, 28
        %v2581 = vld [vmem:[%s2580] sm:$0xf]
        %v2582 = vsel %vm502, %v2577, 0
        %v2584 = vsel %vm502, %v2579, 0
        %v2587 = vsel %vm567, %v2581, 0
        %2589 = vmatprep.subr.mxu0 0.0
        %2590 = vmatpush1.msra.mxu0 %v2587
        %2591 = vmatprep.subr.mxu0 0.0
        %2592 = vmatpush1.msra.mxu0 0.0
        %2593 = vmatprep.subr.mxu0 0.0
        %2594 = vmatpush1.msra.mxu0 0.0
        %2595 = vmatprep.subr.mxu0 0.0
        %2596 = vmatpush1.msra.mxu0 0.0
        %2597 = vmatprep.subr.mxu0 0.0
        %2598 = vmatpush1.msra.mxu0 0.0
        %2599 = vmatprep.subr.mxu0 0.0
        %2600 = vmatpush1.msra.mxu0 0.0
        %2601 = vmatprep.subr.mxu0 0.0
        %2602 = vmatpush1.msra.mxu0 0.0
        %2603 = vmatprep.subr.mxu0 0.0
        %2604 = vmatpush1.msra.mxu0 0.0
        %2605 = vmatprep.subr.mxu0 0.0
        %2606 = vmatpush1.msra.mxu0 0.0
        %2607 = vmatprep.subr.mxu0 0.0
        %2608 = vmatpush1.msra.mxu0 0.0
        %2609 = vmatprep.subr.mxu0 0.0
        %2610 = vmatpush1.msra.mxu0 0.0
        %2611 = vmatprep.subr.mxu0 0.0
        %2612 = vmatpush1.msra.mxu0 0.0
        %2613 = vmatprep.subr.mxu0 0.0
        %2614 = vmatpush1.msra.mxu0 0.0
        %2615 = vmatprep.subr.mxu0 0.0
        %2616 = vmatpush1.msra.mxu0 0.0
        %2617 = vmatprep.subr.mxu0 0.0
        %2618 = vmatpush1.msra.mxu0 0.0
        %2619 = vmatprep.subr.mxu0 0.0
        %2620 = vmatpush1.msra.mxu0 0.0
        %2621 = vmatprep.subr.mxu0 0.0
        %2622 = vmatpush1.msra.mxu0 0.0
        %2623 = vmatprep.subr.mxu0 0.0
        %2624 = vmatpush1.msra.mxu0 0.0
        %2625 = vmatprep.subr.mxu0 0.0
        %2626 = vmatpush1.msra.mxu0 0.0
        %2627 = vmatprep.subr.mxu0 0.0
        %2628 = vmatpush1.msra.mxu0 0.0
        %2629 = vmatprep.subr.mxu0 0.0
        %2630 = vmatpush1.msra.mxu0 0.0
        %2631 = vmatprep.subr.mxu0 0.0
        %2632 = vmatpush1.msra.mxu0 0.0
        %2633 = vmatprep.subr.mxu0 0.0
        %2634 = vmatpush1.msra.mxu0 0.0
        %2635 = vmatprep.subr.mxu0 0.0
        %2636 = vmatpush1.msra.mxu0 0.0
        %2637 = vmatprep.subr.mxu0 0.0
        %2638 = vmatpush1.msra.mxu0 0.0
        %2639 = vmatprep.subr.mxu0 0.0
        %2640 = vmatpush1.msra.mxu0 0.0
        %2641 = vmatprep.subr.mxu0 0.0
        %2642 = vmatpush1.msra.mxu0 0.0
        %2643 = vmatprep.subr.mxu0 0.0
        %2644 = vmatpush1.msra.mxu0 0.0
        %2645 = vmatprep.subr.mxu0 0.0
        %2646 = vmatpush1.msra.mxu0 0.0
        %2647 = vmatprep.subr.mxu0 0.0
        %2648 = vmatpush1.msra.mxu0 0.0
        %2649 = vmatprep.subr.mxu0 0.0
        %2650 = vmatpush1.msra.mxu0 0.0
        %2651 = vmatprep.subr.mxu0 0.0
        %2652 = vmatpush1.msra.mxu0 0.0
        %2653 = vmatprep.mubr.f32.mxu0 0.0
        %2654 = vmatmul.mubr.f32.gmra.mrb[0].mxu0 %v511
        %v2655 = vpop.f32.mrb[0].mxu0
        %v2656 = vadd.f32 0.0, %v2655
        %v2657 = vpop.f32.mrb[0].mxu0
        %2658 = vmatprep.mubr.f32.mxu0 0.0
        %2659 = vmatmul.mubr.f32.gmra.mrb[0].mxu0 %v513
        %v2660 = vpop.f32.mrb[0].mxu0
        %v2661 = vadd.f32 0.0, %v2660
        %v2662 = vpop.f32.mrb[0].mxu0
        %2663 = vmatprep.mubr.f32.mxu0 0.0
        %2664 = vmatmul.mubr.f32.gmra.mrb[0].mxu0 %v515
        %v2665 = vpop.f32.mrb[0].mxu0
        %v2666 = vadd.f32 0.0, %v2665
        %v2667 = vpop.f32.mrb[0].mxu0
        %2668 = vmatprep.mubr.f32.mxu0 0.0
        %2669 = vmatmul.mubr.f32.gmra.mrb[0].mxu0 %v517
        %v2670 = vpop.f32.mrb[0].mxu0
        %v2671 = vadd.f32 0.0, %v2670
        %v2672 = vpop.f32.mrb[0].mxu0
        %2673 = vmatprep.mubr.f32.mxu0 0.0
        %2674 = vmatmul.mubr.f32.gmra.mrb[0].mxu0 %v519
        %v2675 = vpop.f32.mrb[0].mxu0
        %v2676 = vadd.f32 0.0, %v2675
        %v2677 = vpop.f32.mrb[0].mxu0
        %2678 = vmatprep.mubr.f32.mxu0 0.0
        %2679 = vmatmul.mubr.f32.gmra.mrb[0].mxu0 %v521
        %v2680 = vpop.f32.mrb[0].mxu0
        %v2681 = vadd.f32 0.0, %v2680
        %v2682 = vpop.f32.mrb[0].mxu0
        %2683 = vmatprep.mubr.f32.mxu0 0.0
        %2684 = vmatmul.mubr.f32.gmra.mrb[0].mxu0 %v523
        %v2685 = vpop.f32.mrb[0].mxu0
        %v2686 = vadd.f32 0.0, %v2685
        %v2687 = vpop.f32.mrb[0].mxu0
        %2688 = vmatprep.mubr.f32.mxu0 0.0
        %2689 = vmatmul.mubr.f32.gmra.mrb[0].mxu0 %v525
        %v2690 = vpop.f32.mrb[0].mxu0
        %v2691 = vadd.f32 0.0, %v2690
        %v2692 = vpop.f32.mrb[0].mxu0
        %2693 = vmatprep.mubr.f32.mxu0 0.0
        %2694 = vmatmul.mubr.f32.gmra.mrb[0].mxu0 %v527
        %v2695 = vpop.f32.mrb[0].mxu0
        %v2696 = vadd.f32 0.0, %v2695
        %v2697 = vpop.f32.mrb[0].mxu0
        %2698 = vmatprep.mubr.f32.mxu0 0.0
        %2699 = vmatmul.mubr.f32.gmra.mrb[0].mxu0 %v529
        %v2700 = vpop.f32.mrb[0].mxu0
        %v2701 = vadd.f32 0.0, %v2700
        %v2702 = vpop.f32.mrb[0].mxu0
        %2703 = vmatprep.mubr.f32.mxu0 0.0
        %2704 = vmatmul.mubr.f32.gmra.mrb[0].mxu0 %v531
        %v2705 = vpop.f32.mrb[0].mxu0
        %v2706 = vadd.f32 0.0, %v2705
        %v2707 = vpop.f32.mrb[0].mxu0
        %2708 = vmatprep.mubr.f32.mxu0 0.0
        %2709 = vmatmul.mubr.f32.gmra.mrb[0].mxu0 %v533
        %v2710 = vpop.f32.mrb[0].mxu0
        %v2711 = vadd.f32 0.0, %v2710
        %v2712 = vpop.f32.mrb[0].mxu0
        %2713 = vmatprep.mubr.f32.mxu0 0.0
        %2714 = vmatmul.mubr.f32.gmra.mrb[0].mxu0 %v535
        %v2715 = vpop.f32.mrb[0].mxu0
        %v2716 = vadd.f32 0.0, %v2715
        %v2717 = vpop.f32.mrb[0].mxu0
        %2718 = vmatprep.mubr.f32.mxu0 0.0
        %2719 = vmatmul.mubr.f32.gmra.mrb[0].mxu0 %v537
        %v2720 = vpop.f32.mrb[0].mxu0
        %v2721 = vadd.f32 0.0, %v2720
        %v2722 = vpop.f32.mrb[0].mxu0
        %2723 = vmatprep.mubr.f32.mxu0 0.0
        %2724 = vmatmul.mubr.f32.gmra.mrb[0].mxu0 %v539
        %v2725 = vpop.f32.mrb[0].mxu0
        %v2726 = vadd.f32 0.0, %v2725
        %v2727 = vpop.f32.mrb[0].mxu0
        %2728 = vmatprep.mubr.f32.mxu0 0.0
        %2729 = vmatmul.mubr.f32.gmra.mrb[0].mxu0 %v541
        %v2730 = vpop.f32.mrb[0].mxu0
        %v2731 = vadd.f32 0.0, %v2730
        %v2732 = vpop.f32.mrb[0].mxu0
        %2733 = vmatprep.mubr.f32.mxu0 0.0
        %2734 = vmatmul.mubr.f32.gmra.mrb[0].mxu0 %v543
        %v2735 = vpop.f32.mrb[0].mxu0
        %v2736 = vadd.f32 0.0, %v2735
        %v2737 = vpop.f32.mrb[0].mxu0
        %2738 = vmatprep.mubr.f32.mxu0 0.0
        %2739 = vmatmul.mubr.f32.gmra.mrb[0].mxu0 %v545
        %v2740 = vpop.f32.mrb[0].mxu0
        %v2741 = vadd.f32 0.0, %v2740
        %v2742 = vpop.f32.mrb[0].mxu0
        %2743 = vmatprep.mubr.f32.mxu0 0.0
        %2744 = vmatmul.mubr.f32.gmra.mrb[0].mxu0 %v547
        %v2745 = vpop.f32.mrb[0].mxu0
        %v2746 = vadd.f32 0.0, %v2745
        %v2747 = vpop.f32.mrb[0].mxu0
        %2748 = vmatprep.mubr.f32.mxu0 0.0
        %2749 = vmatmul.mubr.f32.gmra.mrb[0].mxu0 %v549
        %v2750 = vpop.f32.mrb[0].mxu0
        %v2751 = vadd.f32 0.0, %v2750
        %v2752 = vpop.f32.mrb[0].mxu0
        %2753 = vmatprep.mubr.f32.mxu0 0.0
        %2754 = vmatmul.mubr.f32.gmra.mrb[0].mxu0 %v551
        %v2755 = vpop.f32.mrb[0].mxu0
        %v2756 = vadd.f32 0.0, %v2755
        %v2757 = vpop.f32.mrb[0].mxu0
        %2758 = vmatprep.mubr.f32.mxu0 0.0
        %2759 = vmatmul.mubr.f32.gmra.mrb[0].mxu0 %v553
        %v2760 = vpop.f32.mrb[0].mxu0
        %v2761 = vadd.f32 0.0, %v2760
        %v2762 = vpop.f32.mrb[0].mxu0
        %2763 = vmatprep.mubr.f32.mxu0 0.0
        %2764 = vmatmul.mubr.f32.gmra.mrb[0].mxu0 %v555
        %v2765 = vpop.f32.mrb[0].mxu0
        %v2766 = vadd.f32 0.0, %v2765
        %v2767 = vpop.f32.mrb[0].mxu0
        %2768 = vmatprep.mubr.f32.mxu0 0.0
        %2769 = vmatmul.mubr.f32.gmra.mrb[0].mxu0 %v557
        %v2770 = vpop.f32.mrb[0].mxu0
        %v2771 = vadd.f32 0.0, %v2770
        %v2772 = vpop.f32.mrb[0].mxu0
        %2773 = vmatprep.mubr.f32.mxu0 0.0
        %2774 = vmatmul.mubr.f32.gmra.mrb[0].mxu0 %v559
        %v2775 = vpop.f32.mrb[0].mxu0
        %v2776 = vadd.f32 0.0, %v2775
        %v2777 = vpop.f32.mrb[0].mxu0
        %2778 = vmatprep.mubr.f32.mxu0 0.0
        %2779 = vmatmul.mubr.f32.gmra.mrb[0].mxu0 %v561
        %v2780 = vpop.f32.mrb[0].mxu0
        %v2781 = vadd.f32 0.0, %v2780
        %v2782 = vpop.f32.mrb[0].mxu0
        %2783 = vmatprep.mubr.f32.mxu0 0.0
        %2784 = vmatmul.mubr.f32.gmra.mrb[0].mxu0 %v563
        %v2785 = vpop.f32.mrb[0].mxu0
        %v2786 = vadd.f32 0.0, %v2785
        %v2787 = vpop.f32.mrb[0].mxu0
        %2788 = vmatprep.mubr.f32.mxu0 0.0
        %2789 = vmatmul.mubr.f32.gmra.mrb[0].mxu0 %v565
        %v2790 = vpop.f32.mrb[0].mxu0
        %v2791 = vadd.f32 0.0, %v2790
        %v2792 = vpop.f32.mrb[0].mxu0
        %2793 = vmatprep.mubr.f32.mxu0 0.0
        %2794 = vmatmul.mubr.f32.gmra.mrb[0].mxu0 %v1771
        %v2795 = vpop.f32.mrb[0].mxu0
        %v2796 = vadd.f32 0.0, %v2795
        %v2797 = vpop.f32.mrb[0].mxu0
        %2798 = vmatprep.mubr.f32.mxu0 0.0
        %2799 = vmatmul.mubr.f32.gmra.mrb[0].mxu0 %v1773
        %v2800 = vpop.f32.mrb[0].mxu0
        %v2801 = vadd.f32 0.0, %v2800
        %v2802 = vpop.f32.mrb[0].mxu0
        %2803 = vmatprep.mubr.f32.mxu0 0.0
        %2804 = vmatmul.mubr.f32.gmra.mrb[0].mxu0 %v2582
        %v2805 = vpop.f32.mrb[0].mxu0
        %v2806 = vadd.f32 0.0, %v2805
        %v2807 = vpop.f32.mrb[0].mxu0
        %2808 = vmatprep.mubr.f32.mxu0 0.0
        %2809 = vmatmul.mubr.f32.gmra.mrb[0].mxu0 %v2584
        %v2810 = vpop.f32.mrb[0].mxu0
        %v2811 = vadd.f32 0.0, %v2810
        %v2812 = vpop.f32.mrb[0].mxu0
        %2813 = vdwg.mxu0
        %v2814 = vadd.f32 %v2542, %v2656
        %v2815 = vadd.f32 %v2543, %v2661
        %v2816 = vadd.f32 %v2544, %v2666
        %v2817 = vadd.f32 %v2545, %v2671
        %v2818 = vadd.f32 %v2546, %v2676
        %v2819 = vadd.f32 %v2547, %v2681
        %v2820 = vadd.f32 %v2548, %v2686
        %v2821 = vadd.f32 %v2549, %v2691
        %v2822 = vadd.f32 %v2550, %v2696
        %v2823 = vadd.f32 %v2551, %v2701
        %v2824 = vadd.f32 %v2552, %v2706
        %v2825 = vadd.f32 %v2553, %v2711
        %v2826 = vadd.f32 %v2554, %v2716
        %v2827 = vadd.f32 %v2555, %v2721
        %v2828 = vadd.f32 %v2556, %v2726
        %v2829 = vadd.f32 %v2557, %v2731
        %v2830 = vadd.f32 %v2558, %v2736
        %v2831 = vadd.f32 %v2559, %v2741
        %v2832 = vadd.f32 %v2560, %v2746
        %v2833 = vadd.f32 %v2561, %v2751
        %v2834 = vadd.f32 %v2562, %v2756
        %v2835 = vadd.f32 %v2563, %v2761
        %v2836 = vadd.f32 %v2564, %v2766
        %v2837 = vadd.f32 %v2565, %v2771
        %v2838 = vadd.f32 %v2566, %v2776
        %v2839 = vadd.f32 %v2567, %v2781
        %v2840 = vadd.f32 %v2568, %v2786
        %v2841 = vadd.f32 %v2569, %v2791
        %v2842 = vadd.f32 %v2570, %v2796
        %v2843 = vadd.f32 %v2571, %v2801
        %v2844 = vadd.f32 %v2572, %v2806
        %v2845 = vadd.f32 %v2573, %v2811
        %v2846 = vrot.slane %v367, 2
        %v2847 = vrot.slane %v368, 2
        %v2848 = vsel %vm1088, %v2846, %v2847
        %v2849 = vrot.slane %v369, 2
        %v2850 = vsel %vm1088, %v2847, %v2849
        %s2851 = scalar_lea.vmem %s1, 32
        %v2852 = vld [vmem:[%s2851] sm:$0xf]
        %v2853 = vsel %vm502, %v2848, 0
        %v2855 = vsel %vm502, %v2850, 0
        %v2858 = vsel %vm567, %v2852, 0
        %2860 = vmatprep.subr.mxu0 0.0
        %2861 = vmatpush1.msra.mxu0 %v2858
        %2862 = vmatprep.subr.mxu0 0.0
        %2863 = vmatpush1.msra.mxu0 0.0
        %2864 = vmatprep.subr.mxu0 0.0
        %2865 = vmatpush1.msra.mxu0 0.0
        %2866 = vmatprep.subr.mxu0 0.0
        %2867 = vmatpush1.msra.mxu0 0.0
        %2868 = vmatprep.subr.mxu0 0.0
        %2869 = vmatpush1.msra.mxu0 0.0
        %2870 = vmatprep.subr.mxu0 0.0
        %2871 = vmatpush1.msra.mxu0 0.0
        %2872 = vmatprep.subr.mxu0 0.0
        %2873 = vmatpush1.msra.mxu0 0.0
        %2874 = vmatprep.subr.mxu0 0.0
        %2875 = vmatpush1.msra.mxu0 0.0
        %2876 = vmatprep.subr.mxu0 0.0
        %2877 = vmatpush1.msra.mxu0 0.0
        %2878 = vmatprep.subr.mxu0 0.0
        %2879 = vmatpush1.msra.mxu0 0.0
        %2880 = vmatprep.subr.mxu0 0.0
        %2881 = vmatpush1.msra.mxu0 0.0
        %2882 = vmatprep.subr.mxu0 0.0
        %2883 = vmatpush1.msra.mxu0 0.0
        %2884 = vmatprep.subr.mxu0 0.0
        %2885 = vmatpush1.msra.mxu0 0.0
        %2886 = vmatprep.subr.mxu0 0.0
        %2887 = vmatpush1.msra.mxu0 0.0
        %2888 = vmatprep.subr.mxu0 0.0
        %2889 = vmatpush1.msra.mxu0 0.0
        %2890 = vmatprep.subr.mxu0 0.0
        %2891 = vmatpush1.msra.mxu0 0.0
        %2892 = vmatprep.subr.mxu0 0.0
        %2893 = vmatpush1.msra.mxu0 0.0
        %2894 = vmatprep.subr.mxu0 0.0
        %2895 = vmatpush1.msra.mxu0 0.0
        %2896 = vmatprep.subr.mxu0 0.0
        %2897 = vmatpush1.msra.mxu0 0.0
        %2898 = vmatprep.subr.mxu0 0.0
        %2899 = vmatpush1.msra.mxu0 0.0
        %2900 = vmatprep.subr.mxu0 0.0
        %2901 = vmatpush1.msra.mxu0 0.0
        %2902 = vmatprep.subr.mxu0 0.0
        %2903 = vmatpush1.msra.mxu0 0.0
        %2904 = vmatprep.subr.mxu0 0.0
        %2905 = vmatpush1.msra.mxu0 0.0
        %2906 = vmatprep.subr.mxu0 0.0
        %2907 = vmatpush1.msra.mxu0 0.0
        %2908 = vmatprep.subr.mxu0 0.0
        %2909 = vmatpush1.msra.mxu0 0.0
        %2910 = vmatprep.subr.mxu0 0.0
        %2911 = vmatpush1.msra.mxu0 0.0
        %2912 = vmatprep.subr.mxu0 0.0
        %2913 = vmatpush1.msra.mxu0 0.0
        %2914 = vmatprep.subr.mxu0 0.0
        %2915 = vmatpush1.msra.mxu0 0.0
        %2916 = vmatprep.subr.mxu0 0.0
        %2917 = vmatpush1.msra.mxu0 0.0
        %2918 = vmatprep.subr.mxu0 0.0
        %2919 = vmatpush1.msra.mxu0 0.0
        %2920 = vmatprep.subr.mxu0 0.0
        %2921 = vmatpush1.msra.mxu0 0.0
        %2922 = vmatprep.subr.mxu0 0.0
        %2923 = vmatpush1.msra.mxu0 0.0
        %2924 = vmatprep.mubr.f32.mxu0 0.0
        %2925 = vmatmul.mubr.f32.gmra.mrb[0].mxu0 %v1179
        %v2926 = vpop.f32.mrb[0].mxu0
        %v2927 = vadd.f32 0.0, %v2926
        %v2928 = vpop.f32.mrb[0].mxu0
        %2929 = vmatprep.mubr.f32.mxu0 0.0
        %2930 = vmatmul.mubr.f32.gmra.mrb[0].mxu0 %v1181
        %v2931 = vpop.f32.mrb[0].mxu0
        %v2932 = vadd.f32 0.0, %v2931
        %v2933 = vpop.f32.mrb[0].mxu0
        %2934 = vmatprep.mubr.f32.mxu0 0.0
        %2935 = vmatmul.mubr.f32.gmra.mrb[0].mxu0 %v1183
        %v2936 = vpop.f32.mrb[0].mxu0
        %v2937 = vadd.f32 0.0, %v2936
        %v2938 = vpop.f32.mrb[0].mxu0
        %2939 = vmatprep.mubr.f32.mxu0 0.0
        %2940 = vmatmul.mubr.f32.gmra.mrb[0].mxu0 %v1185
        %v2941 = vpop.f32.mrb[0].mxu0
        %v2942 = vadd.f32 0.0, %v2941
        %v2943 = vpop.f32.mrb[0].mxu0
        %2944 = vmatprep.mubr.f32.mxu0 0.0
        %2945 = vmatmul.mubr.f32.gmra.mrb[0].mxu0 %v1187
        %v2946 = vpop.f32.mrb[0].mxu0
        %v2947 = vadd.f32 0.0, %v2946
        %v2948 = vpop.f32.mrb[0].mxu0
        %2949 = vmatprep.mubr.f32.mxu0 0.0
        %2950 = vmatmul.mubr.f32.gmra.mrb[0].mxu0 %v1189
        %v2951 = vpop.f32.mrb[0].mxu0
        %v2952 = vadd.f32 0.0, %v2951
        %v2953 = vpop.f32.mrb[0].mxu0
        %2954 = vmatprep.mubr.f32.mxu0 0.0
        %2955 = vmatmul.mubr.f32.gmra.mrb[0].mxu0 %v1191
        %v2956 = vpop.f32.mrb[0].mxu0
        %v2957 = vadd.f32 0.0, %v2956
        %v2958 = vpop.f32.mrb[0].mxu0
        %2959 = vmatprep.mubr.f32.mxu0 0.0
        %2960 = vmatmul.mubr.f32.gmra.mrb[0].mxu0 %v1193
        %v2961 = vpop.f32.mrb[0].mxu0
        %v2962 = vadd.f32 0.0, %v2961
        %v2963 = vpop.f32.mrb[0].mxu0
        %2964 = vmatprep.mubr.f32.mxu0 0.0
        %2965 = vmatmul.mubr.f32.gmra.mrb[0].mxu0 %v1195
        %v2966 = vpop.f32.mrb[0].mxu0
        %v2967 = vadd.f32 0.0, %v2966
        %v2968 = vpop.f32.mrb[0].mxu0
        %2969 = vmatprep.mubr.f32.mxu0 0.0
        %2970 = vmatmul.mubr.f32.gmra.mrb[0].mxu0 %v1197
        %v2971 = vpop.f32.mrb[0].mxu0
        %v2972 = vadd.f32 0.0, %v2971
        %v2973 = vpop.f32.mrb[0].mxu0
        %2974 = vmatprep.mubr.f32.mxu0 0.0
        %2975 = vmatmul.mubr.f32.gmra.mrb[0].mxu0 %v1199
        %v2976 = vpop.f32.mrb[0].mxu0
        %v2977 = vadd.f32 0.0, %v2976
        %v2978 = vpop.f32.mrb[0].mxu0
        %2979 = vmatprep.mubr.f32.mxu0 0.0
        %2980 = vmatmul.mubr.f32.gmra.mrb[0].mxu0 %v1201
        %v2981 = vpop.f32.mrb[0].mxu0
        %v2982 = vadd.f32 0.0, %v2981
        %v2983 = vpop.f32.mrb[0].mxu0
        %2984 = vmatprep.mubr.f32.mxu0 0.0
        %2985 = vmatmul.mubr.f32.gmra.mrb[0].mxu0 %v1203
        %v2986 = vpop.f32.mrb[0].mxu0
        %v2987 = vadd.f32 0.0, %v2986
        %v2988 = vpop.f32.mrb[0].mxu0
        %2989 = vmatprep.mubr.f32.mxu0 0.0
        %2990 = vmatmul.mubr.f32.gmra.mrb[0].mxu0 %v1205
        %v2991 = vpop.f32.mrb[0].mxu0
        %v2992 = vadd.f32 0.0, %v2991
        %v2993 = vpop.f32.mrb[0].mxu0
        %2994 = vmatprep.mubr.f32.mxu0 0.0
        %2995 = vmatmul.mubr.f32.gmra.mrb[0].mxu0 %v1207
        %v2996 = vpop.f32.mrb[0].mxu0
        %v2997 = vadd.f32 0.0, %v2996
        %v2998 = vpop.f32.mrb[0].mxu0
        %2999 = vmatprep.mubr.f32.mxu0 0.0
        %3000 = vmatmul.mubr.f32.gmra.mrb[0].mxu0 %v1209
        %v3001 = vpop.f32.mrb[0].mxu0
        %v3002 = vadd.f32 0.0, %v3001
        %v3003 = vpop.f32.mrb[0].mxu0
        %3004 = vmatprep.mubr.f32.mxu0 0.0
        %3005 = vmatmul.mubr.f32.gmra.mrb[0].mxu0 %v1211
        %v3006 = vpop.f32.mrb[0].mxu0
        %v3007 = vadd.f32 0.0, %v3006
        %v3008 = vpop.f32.mrb[0].mxu0
        %3009 = vmatprep.mubr.f32.mxu0 0.0
        %3010 = vmatmul.mubr.f32.gmra.mrb[0].mxu0 %v1213
        %v3011 = vpop.f32.mrb[0].mxu0
        %v3012 = vadd.f32 0.0, %v3011
        %v3013 = vpop.f32.mrb[0].mxu0
        %3014 = vmatprep.mubr.f32.mxu0 0.0
        %3015 = vmatmul.mubr.f32.gmra.mrb[0].mxu0 %v1215
        %v3016 = vpop.f32.mrb[0].mxu0
        %v3017 = vadd.f32 0.0, %v3016
        %v3018 = vpop.f32.mrb[0].mxu0
        %3019 = vmatprep.mubr.f32.mxu0 0.0
        %3020 = vmatmul.mubr.f32.gmra.mrb[0].mxu0 %v1217
        %v3021 = vpop.f32.mrb[0].mxu0
        %v3022 = vadd.f32 0.0, %v3021
        %v3023 = vpop.f32.mrb[0].mxu0
        %3024 = vmatprep.mubr.f32.mxu0 0.0
        %3025 = vmatmul.mubr.f32.gmra.mrb[0].mxu0 %v1219
        %v3026 = vpop.f32.mrb[0].mxu0
        %v3027 = vadd.f32 0.0, %v3026
        %v3028 = vpop.f32.mrb[0].mxu0
        %3029 = vmatprep.mubr.f32.mxu0 0.0
        %3030 = vmatmul.mubr.f32.gmra.mrb[0].mxu0 %v1221
        %v3031 = vpop.f32.mrb[0].mxu0
        %v3032 = vadd.f32 0.0, %v3031
        %v3033 = vpop.f32.mrb[0].mxu0
        %3034 = vmatprep.mubr.f32.mxu0 0.0
        %3035 = vmatmul.mubr.f32.gmra.mrb[0].mxu0 %v1223
        %v3036 = vpop.f32.mrb[0].mxu0
        %v3037 = vadd.f32 0.0, %v3036
        %v3038 = vpop.f32.mrb[0].mxu0
        %3039 = vmatprep.mubr.f32.mxu0 0.0
        %3040 = vmatmul.mubr.f32.gmra.mrb[0].mxu0 %v1225
        %v3041 = vpop.f32.mrb[0].mxu0
        %v3042 = vadd.f32 0.0, %v3041
        %v3043 = vpop.f32.mrb[0].mxu0
        %3044 = vmatprep.mubr.f32.mxu0 0.0
        %3045 = vmatmul.mubr.f32.gmra.mrb[0].mxu0 %v1227
        %v3046 = vpop.f32.mrb[0].mxu0
        %v3047 = vadd.f32 0.0, %v3046
        %v3048 = vpop.f32.mrb[0].mxu0
        %3049 = vmatprep.mubr.f32.mxu0 0.0
        %3050 = vmatmul.mubr.f32.gmra.mrb[0].mxu0 %v1229
        %v3051 = vpop.f32.mrb[0].mxu0
        %v3052 = vadd.f32 0.0, %v3051
        %v3053 = vpop.f32.mrb[0].mxu0
        %3054 = vmatprep.mubr.f32.mxu0 0.0
        %3055 = vmatmul.mubr.f32.gmra.mrb[0].mxu0 %v1231
        %v3056 = vpop.f32.mrb[0].mxu0
        %v3057 = vadd.f32 0.0, %v3056
        %v3058 = vpop.f32.mrb[0].mxu0
        %3059 = vmatprep.mubr.f32.mxu0 0.0
        %3060 = vmatmul.mubr.f32.gmra.mrb[0].mxu0 %v1233
        %v3061 = vpop.f32.mrb[0].mxu0
        %v3062 = vadd.f32 0.0, %v3061
        %v3063 = vpop.f32.mrb[0].mxu0
        %3064 = vmatprep.mubr.f32.mxu0 0.0
        %3065 = vmatmul.mubr.f32.gmra.mrb[0].mxu0 %v2042
        %v3066 = vpop.f32.mrb[0].mxu0
        %v3067 = vadd.f32 0.0, %v3066
        %v3068 = vpop.f32.mrb[0].mxu0
        %3069 = vmatprep.mubr.f32.mxu0 0.0
        %3070 = vmatmul.mubr.f32.gmra.mrb[0].mxu0 %v2044
        %v3071 = vpop.f32.mrb[0].mxu0
        %v3072 = vadd.f32 0.0, %v3071
        %v3073 = vpop.f32.mrb[0].mxu0
        %3074 = vmatprep.mubr.f32.mxu0 0.0
        %3075 = vmatmul.mubr.f32.gmra.mrb[0].mxu0 %v2853
        %v3076 = vpop.f32.mrb[0].mxu0
        %v3077 = vadd.f32 0.0, %v3076
        %v3078 = vpop.f32.mrb[0].mxu0
        %3079 = vmatprep.mubr.f32.mxu0 0.0
        %3080 = vmatmul.mubr.f32.gmra.mrb[0].mxu0 %v2855
        %v3081 = vpop.f32.mrb[0].mxu0
        %v3082 = vadd.f32 0.0, %v3081
        %v3083 = vpop.f32.mrb[0].mxu0
        %3084 = vdwg.mxu0
        %v3085 = vadd.f32 %v2814, %v2927
        %v3086 = vadd.f32 %v2815, %v2932
        %v3087 = vadd.f32 %v2816, %v2937
        %v3088 = vadd.f32 %v2817, %v2942
        %v3089 = vadd.f32 %v2818, %v2947
        %v3090 = vadd.f32 %v2819, %v2952
        %v3091 = vadd.f32 %v2820, %v2957
        %v3092 = vadd.f32 %v2821, %v2962
        %v3093 = vadd.f32 %v2822, %v2967
        %v3094 = vadd.f32 %v2823, %v2972
        %v3095 = vadd.f32 %v2824, %v2977
        %v3096 = vadd.f32 %v2825, %v2982
        %v3097 = vadd.f32 %v2826, %v2987
        %v3098 = vadd.f32 %v2827, %v2992
        %v3099 = vadd.f32 %v2828, %v2997
        %v3100 = vadd.f32 %v2829, %v3002
        %v3101 = vadd.f32 %v2830, %v3007
        %v3102 = vadd.f32 %v2831, %v3012
        %v3103 = vadd.f32 %v2832, %v3017
        %v3104 = vadd.f32 %v2833, %v3022
        %v3105 = vadd.f32 %v2834, %v3027
        %v3106 = vadd.f32 %v2835, %v3032
        %v3107 = vadd.f32 %v2836, %v3037
        %v3108 = vadd.f32 %v2837, %v3042
        %v3109 = vadd.f32 %v2838, %v3047
        %v3110 = vadd.f32 %v2839, %v3052
        %v3111 = vadd.f32 %v2840, %v3057
        %v3112 = vadd.f32 %v2841, %v3062
        %v3113 = vadd.f32 %v2842, %v3067
        %v3114 = vadd.f32 %v2843, %v3072
        %v3115 = vadd.f32 %v2844, %v3077
        %v3116 = vadd.f32 %v2845, %v3082
        %v3117 = vld [vmem:[%s2] sm:$0x1]
        %v3119 = vlaneseq
        %v3120 = vshrl.u32 %v3119, 7
        %v3121 = vsub.s32 0, %v3120
        %v3122 = vrot.slane %v3117, %v3121
        %v3124 = vadd.f32 %v3085, %v3122
        %v3125 = vadd.f32 %v3086, %v3122
        %v3126 = vadd.f32 %v3087, %v3122
        %v3127 = vadd.f32 %v3088, %v3122
        %v3128 = vadd.f32 %v3089, %v3122
        %v3129 = vadd.f32 %v3090, %v3122
        %v3130 = vadd.f32 %v3091, %v3122
        %v3131 = vadd.f32 %v3092, %v3122
        %v3132 = vadd.f32 %v3093, %v3122
        %v3133 = vadd.f32 %v3094, %v3122
        %v3134 = vadd.f32 %v3095, %v3122
        %v3135 = vadd.f32 %v3096, %v3122
        %v3136 = vadd.f32 %v3097, %v3122
        %v3137 = vadd.f32 %v3098, %v3122
        %v3138 = vadd.f32 %v3099, %v3122
        %v3139 = vadd.f32 %v3100, %v3122
        %v3140 = vadd.f32 %v3101, %v3122
        %v3141 = vadd.f32 %v3102, %v3122
        %v3142 = vadd.f32 %v3103, %v3122
        %v3143 = vadd.f32 %v3104, %v3122
        %v3144 = vadd.f32 %v3105, %v3122
        %v3145 = vadd.f32 %v3106, %v3122
        %v3146 = vadd.f32 %v3107, %v3122
        %v3147 = vadd.f32 %v3108, %v3122
        %v3148 = vadd.f32 %v3109, %v3122
        %v3149 = vadd.f32 %v3110, %v3122
        %v3150 = vadd.f32 %v3111, %v3122
        %v3151 = vadd.f32 %v3112, %v3122
        %v3152 = vadd.f32 %v3113, %v3122
        %v3153 = vadd.f32 %v3114, %v3122
        %v3154 = vadd.f32 %v3115, %v3122
        %v3155 = vadd.f32 %v3116, %v3122
        %v3156 = vmax.f32 %v3124, 0.0
        %v3157 = vmax.f32 %v3125, 0.0
        %v3158 = vmax.f32 %v3126, 0.0
        %v3159 = vmax.f32 %v3127, 0.0
        %v3160 = vmax.f32 %v3128, 0.0
        %v3161 = vmax.f32 %v3129, 0.0
        %v3162 = vmax.f32 %v3130, 0.0
        %v3163 = vmax.f32 %v3131, 0.0
        %v3164 = vmax.f32 %v3132, 0.0
        %v3165 = vmax.f32 %v3133, 0.0
        %v3166 = vmax.f32 %v3134, 0.0
        %v3167 = vmax.f32 %v3135, 0.0
        %v3168 = vmax.f32 %v3136, 0.0
        %v3169 = vmax.f32 %v3137, 0.0
        %v3170 = vmax.f32 %v3138, 0.0
        %v3171 = vmax.f32 %v3139, 0.0
        %v3172 = vmax.f32 %v3140, 0.0
        %v3173 = vmax.f32 %v3141, 0.0
        %v3174 = vmax.f32 %v3142, 0.0
        %v3175 = vmax.f32 %v3143, 0.0
        %v3176 = vmax.f32 %v3144, 0.0
        %v3177 = vmax.f32 %v3145, 0.0
        %v3178 = vmax.f32 %v3146, 0.0
        %v3179 = vmax.f32 %v3147, 0.0
        %v3180 = vmax.f32 %v3148, 0.0
        %v3181 = vmax.f32 %v3149, 0.0
        %v3182 = vmax.f32 %v3150, 0.0
        %v3183 = vmax.f32 %v3151, 0.0
        %v3184 = vmax.f32 %v3152, 0.0
        %v3185 = vmax.f32 %v3153, 0.0
        %v3186 = vmax.f32 %v3154, 0.0
        %v3187 = vmax.f32 %v3155, 0.0
        %vm3188 = vcmask 523264
        %3189 = vst.msk [vmem:[%s261] sm:$0xff] %vm3188, %v3156
        %3190 = vst.msk [vmem:[%s261 + $0x8] sm:$0xff] %vm3188, %v3157
        %3191 = vst.msk [vmem:[%s261 + $0x10] sm:$0xff] %vm3188, %v3158
        %3192 = vst.msk [vmem:[%s261 + $0x18] sm:$0xff] %vm3188, %v3159
        %3193 = vst.msk [vmem:[%s261 + $0x20] sm:$0xff] %vm3188, %v3160
        %3194 = vst.msk [vmem:[%s261 + $0x28] sm:$0xff] %vm3188, %v3161
        %3195 = vst.msk [vmem:[%s261 + $0x30] sm:$0xff] %vm3188, %v3162
        %3196 = vst.msk [vmem:[%s261 + $0x38] sm:$0xff] %vm3188, %v3163
        %3197 = vst.msk [vmem:[%s261 + $0x40] sm:$0xff] %vm3188, %v3164
        %3198 = vst.msk [vmem:[%s261 + $0x48] sm:$0xff] %vm3188, %v3165
        %3199 = vst.msk [vmem:[%s261 + $0x50] sm:$0xff] %vm3188, %v3166
        %3200 = vst.msk [vmem:[%s261 + $0x58] sm:$0xff] %vm3188, %v3167
        %3201 = vst.msk [vmem:[%s261 + $0x60] sm:$0xff] %vm3188, %v3168
        %3202 = vst.msk [vmem:[%s261 + $0x68] sm:$0xff] %vm3188, %v3169
        %3203 = vst.msk [vmem:[%s261 + $0x70] sm:$0xff] %vm3188, %v3170
        %3204 = vst.msk [vmem:[%s261 + $0x78] sm:$0xff] %vm3188, %v3171
        %3205 = vst.msk [vmem:[%s261 + $0x80] sm:$0xff] %vm3188, %v3172
        %3206 = vst.msk [vmem:[%s261 + $0x88] sm:$0xff] %vm3188, %v3173
        %3207 = vst.msk [vmem:[%s261 + $0x90] sm:$0xff] %vm3188, %v3174
        %3208 = vst.msk [vmem:[%s261 + $0x98] sm:$0xff] %vm3188, %v3175
        %3209 = vst.msk [vmem:[%s261 + $0xa0] sm:$0xff] %vm3188, %v3176
        %3210 = vst.msk [vmem:[%s261 + $0xa8] sm:$0xff] %vm3188, %v3177
        %3211 = vst.msk [vmem:[%s261 + $0xb0] sm:$0xff] %vm3188, %v3178
        %3212 = vst.msk [vmem:[%s261 + $0xb8] sm:$0xff] %vm3188, %v3179
        %3213 = vst.msk [vmem:[%s261 + $0xc0] sm:$0xff] %vm3188, %v3180
        %3214 = vst.msk [vmem:[%s261 + $0xc8] sm:$0xff] %vm3188, %v3181
        %3215 = vst.msk [vmem:[%s261 + $0xd0] sm:$0xff] %vm3188, %v3182
        %3216 = vst.msk [vmem:[%s261 + $0xd8] sm:$0xff] %vm3188, %v3183
        %3217 = vst.msk [vmem:[%s261 + $0xe0] sm:$0xff] %vm3188, %v3184
        %3218 = vst.msk [vmem:[%s261 + $0xe8] sm:$0xff] %vm3188, %v3185
        %3219 = vst.msk [vmem:[%s261 + $0xf0] sm:$0xff] %vm3188, %v3186
        %3220 = vst.msk [vmem:[%s261 + $0xf8] sm:$0xff] %vm3188, %v3187
        %v3221 = vsel %vm3188, %v3156, 0.0
        %v3222 = vsel %vm3188, %v3157, 0.0
        %v3223 = vadd.f32 %v3221, %v3222
        %v3224 = vsel %vm3188, %v3158, 0.0
        %v3225 = vadd.f32 %v3223, %v3224
        %v3226 = vsel %vm3188, %v3159, 0.0
        %v3227 = vadd.f32 %v3225, %v3226
        %v3228 = vsel %vm3188, %v3160, 0.0
        %v3229 = vadd.f32 %v3227, %v3228
        %v3230 = vsel %vm3188, %v3161, 0.0
        %v3231 = vadd.f32 %v3229, %v3230
        %v3232 = vsel %vm3188, %v3162, 0.0
        %v3233 = vadd.f32 %v3231, %v3232
        %v3234 = vsel %vm3188, %v3163, 0.0
        %v3235 = vadd.f32 %v3233, %v3234
        %v3236 = vsel %vm3188, %v3164, 0.0
        %v3237 = vadd.f32 %v3235, %v3236
        %v3238 = vsel %vm3188, %v3165, 0.0
        %v3239 = vadd.f32 %v3237, %v3238
        %v3240 = vsel %vm3188, %v3166, 0.0
        %v3241 = vadd.f32 %v3239, %v3240
        %v3242 = vsel %vm3188, %v3167, 0.0
        %v3243 = vadd.f32 %v3241, %v3242
        %v3244 = vsel %vm3188, %v3168, 0.0
        %v3245 = vadd.f32 %v3243, %v3244
        %v3246 = vsel %vm3188, %v3169, 0.0
        %v3247 = vadd.f32 %v3245, %v3246
        %v3248 = vsel %vm3188, %v3170, 0.0
        %v3249 = vadd.f32 %v3247, %v3248
        %v3250 = vsel %vm3188, %v3171, 0.0
        %v3251 = vadd.f32 %v3249, %v3250
        %v3252 = vsel %vm3188, %v3172, 0.0
        %v3253 = vadd.f32 %v3251, %v3252
        %v3254 = vsel %vm3188, %v3173, 0.0
        %v3255 = vadd.f32 %v3253, %v3254
        %v3256 = vsel %vm3188, %v3174, 0.0
        %v3257 = vadd.f32 %v3255, %v3256
        %v3258 = vsel %vm3188, %v3175, 0.0
        %v3259 = vadd.f32 %v3257, %v3258
        %v3260 = vsel %vm3188, %v3176, 0.0
        %v3261 = vadd.f32 %v3259, %v3260
        %v3262 = vsel %vm3188, %v3177, 0.0
        %v3263 = vadd.f32 %v3261, %v3262
        %v3264 = vsel %vm3188, %v3178, 0.0
        %v3265 = vadd.f32 %v3263, %v3264
        %v3266 = vsel %vm3188, %v3179, 0.0
        %v3267 = vadd.f32 %v3265, %v3266
        %v3268 = vsel %vm3188, %v3180, 0.0
        %v3269 = vadd.f32 %v3267, %v3268
        %v3270 = vsel %vm3188, %v3181, 0.0
        %v3271 = vadd.f32 %v3269, %v3270
        %v3272 = vsel %vm3188, %v3182, 0.0
        %v3273 = vadd.f32 %v3271, %v3272
        %v3274 = vsel %vm3188, %v3183, 0.0
        %v3275 = vadd.f32 %v3273, %v3274
        %v3276 = vsel %vm3188, %v3184, 0.0
        %v3277 = vadd.f32 %v3275, %v3276
        %v3278 = vsel %vm3188, %v3185, 0.0
        %v3279 = vadd.f32 %v3277, %v3278
        %v3280 = vsel %vm3188, %v3186, 0.0
        %v3281 = vadd.f32 %v3279, %v3280
        %v3282 = vsel %vm3188, %v3187, 0.0
        %v3283 = vadd.f32 %v3281, %v3282
        %v3284 = vrot.slane %v3283, 4
        %v3285 = vadd.f32 %v3283, %v3284
        %v3286 = vrot.slane %v3285, 2
        %v3287 = vadd.f32 %v3285, %v3286
        %v3288 = vrot.slane %v3287, 1
        %v3289 = vadd.f32 %v3287, %v3288
        %v3290 = vmul.f32 %v3289, 0.00390625
        %v3291 = vld [vmem:[%s3] sm:$0xff]
        %v3292 = vld [vmem:[%s3 + $0x8] sm:$0xff]
        %v3293 = vld [vmem:[%s3 + $0x10] sm:$0xff]
        %v3294 = vld [vmem:[%s3 + $0x18] sm:$0xff]
        %v3295 = vld [vmem:[%s3 + $0x20] sm:$0xff]
        %v3296 = vld [vmem:[%s3 + $0x28] sm:$0xff]
        %v3297 = vld [vmem:[%s3 + $0x30] sm:$0xff]
        %v3298 = vld [vmem:[%s3 + $0x38] sm:$0xff]
        %v3299 = vld [vmem:[%s4] sm:$0x1]
        %v3301 = vsel %vm3188, %v3290, 0
        %3303 = vmatprep.subr.mxu0 0.0
        %3304 = vmatpush1.msra.mxu0 %v3291
        %3305 = vmatprep.subr.mxu0 0.0
        %3306 = vmatpush1.msra.mxu0 %v3292
        %3307 = vmatprep.subr.mxu0 0.0
        %3308 = vmatpush1.msra.mxu0 %v3293
        %3309 = vmatprep.subr.mxu0 0.0
        %3310 = vmatpush1.msra.mxu0 %v3294
        %3311 = vmatprep.subr.mxu0 0.0
        %3312 = vmatpush1.msra.mxu0 %v3295
        %3313 = vmatprep.subr.mxu0 0.0
        %3314 = vmatpush1.msra.mxu0 %v3296
        %3315 = vmatprep.subr.mxu0 0.0
        %3316 = vmatpush1.msra.mxu0 %v3297
        %3317 = vmatprep.subr.mxu0 0.0
        %3318 = vmatpush1.msra.mxu0 %v3298
        %3319 = vmatprep.subr.mxu0 0.0
        %3320 = vmatpush1.msra.mxu0 0.0
        %3321 = vmatprep.subr.mxu0 0.0
        %3322 = vmatpush1.msra.mxu0 0.0
        %3323 = vmatprep.subr.mxu0 0.0
        %3324 = vmatpush1.msra.mxu0 0.0
        %3325 = vmatprep.subr.mxu0 0.0
        %3326 = vmatpush1.msra.mxu0 0.0
        %3327 = vmatprep.subr.mxu0 0.0
        %3328 = vmatpush1.msra.mxu0 0.0
        %3329 = vmatprep.subr.mxu0 0.0
        %3330 = vmatpush1.msra.mxu0 0.0
        %3331 = vmatprep.subr.mxu0 0.0
        %3332 = vmatpush1.msra.mxu0 0.0
        %3333 = vmatprep.subr.mxu0 0.0
        %3334 = vmatpush1.msra.mxu0 0.0
        %3335 = vmatprep.subr.mxu0 0.0
        %3336 = vmatpush1.msra.mxu0 0.0
        %3337 = vmatprep.subr.mxu0 0.0
        %3338 = vmatpush1.msra.mxu0 0.0
        %3339 = vmatprep.subr.mxu0 0.0
        %3340 = vmatpush1.msra.mxu0 0.0
        %3341 = vmatprep.subr.mxu0 0.0
        %3342 = vmatpush1.msra.mxu0 0.0
        %3343 = vmatprep.subr.mxu0 0.0
        %3344 = vmatpush1.msra.mxu0 0.0
        %3345 = vmatprep.subr.mxu0 0.0
        %3346 = vmatpush1.msra.mxu0 0.0
        %3347 = vmatprep.subr.mxu0 0.0
        %3348 = vmatpush1.msra.mxu0 0.0
        %3349 = vmatprep.subr.mxu0 0.0
        %3350 = vmatpush1.msra.mxu0 0.0
        %3351 = vmatprep.subr.mxu0 0.0
        %3352 = vmatpush1.msra.mxu0 0.0
        %3353 = vmatprep.subr.mxu0 0.0
        %3354 = vmatpush1.msra.mxu0 0.0
        %3355 = vmatprep.subr.mxu0 0.0
        %3356 = vmatpush1.msra.mxu0 0.0
        %3357 = vmatprep.subr.mxu0 0.0
        %3358 = vmatpush1.msra.mxu0 0.0
        %3359 = vmatprep.subr.mxu0 0.0
        %3360 = vmatpush1.msra.mxu0 0.0
        %3361 = vmatprep.subr.mxu0 0.0
        %3362 = vmatpush1.msra.mxu0 0.0
        %3363 = vmatprep.subr.mxu0 0.0
        %3364 = vmatpush1.msra.mxu0 0.0
        %3365 = vmatprep.subr.mxu0 0.0
        %3366 = vmatpush1.msra.mxu0 0.0
        %3367 = vmatprep.mubr.f32.mxu0 0.0
        %3368 = vmatmul.mubr.f32.gmra.mrb[0].mxu0 %v3301
        %v3369 = vpop.f32.mrb[0].mxu0
        %v3370 = vadd.f32 %v3299, %v3369
        %v3371 = vpop.f32.mrb[0].mxu0
        %3372 = vdwg.mxu0
        %vm3373 = vcmask 122880
        %3374 = vst.msk [vmem:[%s251] sm:$0x1] %vm3373, %v3370
        %p3375 = scmp.lt.s32.totalorder %s21, 3
        %s3376 = scalar_select %p3375, %s21, 3
        %s3377 = smul.addr %s3376, 32
        %s3378 = smul.addr %s3377, 8
        %s3379 = scalar_lea.vmem %s5, %s3378
        %s3380 = sand.u32 %s165, 1
        %s3381 = scalar_lea.sflag [#allocation3], %s3380
        %s3382 = sand.u32 %s165, 1
        %s3383 = scalar_lea.vmem [#allocation2], %s3382
        // Predicated region
        $region41: #{tpu_custom_call.1} parent=39 // pred_check
          %p3384 = pneg %p149
        $region42: #{tpu_custom_call.1} parent=39 // pred_check_branch
          %3386 = sbr.rel (%p3384) target = $region44
        $region43: #{tpu_custom_call.1} parent=39 // pred_region
          _
        $region44: #{tpu_custom_call.1} parent=39 // pred_fallthru
          _
        // Predicated region
        $region45: #{tpu_custom_call.1} parent=39 // pred_check
          %p3387 = pneg %p175
        $region46: #{tpu_custom_call.1} parent=39 // pred_check_branch
          %3389 = sbr.rel (%p3387) target = $region48
        $region47: #{tpu_custom_call.1} parent=39 // pred_region
          %s3391 = ssub.s32 16, 16
          %3392 = vsyncadd %s3381, %s3391
          %s3393 = smul.addr %s21, 16
          %s3394 = scalar_lea.hbm %s6, %s3393
          %s3396 = sshll.u32 %s3383, 4
          %s3397 = int_to_ptr.vmem [resolvable:$true] %s3396
          %3399 = dma.vmem_to_hbm [thread:$0]  %s3397, 16, %s3394, %s3381
        $region48: #{tpu_custom_call.1} parent=39 // pred_fallthru
          _
      $region40: #{tpu_custom_call.1} parent=5 // pred_fallthru
        _
      %p3400 = scmp.le.s32.totalorder 2, %s16
      // Predicated region
      $region49: #{tpu_custom_call.1} parent=5 // pred_check
        %p3401 = pneg %p3400
      $region50: #{tpu_custom_call.1} parent=5 // pred_check_branch
        %3403 = sbr.rel (%p3401) target = $region52
      $region51: #{tpu_custom_call.1} parent=5 // pred_region
        %s3404 = ssub.s32 %s16, 2
        // Predicated region
        $region53: #{tpu_custom_call.1} parent=51 // pred_check
          %p3405 = pneg %p155
        $region54: #{tpu_custom_call.1} parent=51 // pred_check_branch
          %3407 = sbr.rel (%p3405) target = $region56
        $region55: #{tpu_custom_call.1} parent=51 // pred_region
          %p3408 = scmp.lt.s32.totalorder %s22, 3
          %s3409 = scalar_select %p3408, %s22, 3
          %s3410 = smul.addr %s3409, 32
          %s3411 = smul.addr %s3410, 8
          %s3412 = scalar_lea.vmem %s5, %s3411
        $region56: #{tpu_custom_call.1} parent=51 // pred_fallthru
          _
        // Predicated region
        $region57: #{tpu_custom_call.1} parent=51 // pred_check
          %p3413 = pneg %p181
        $region58: #{tpu_custom_call.1} parent=51 // pred_check_branch
          %3415 = sbr.rel (%p3413) target = $region60
        $region59: #{tpu_custom_call.1} parent=51 // pred_region
          %s3416 = sand.u32 %s166, 1
          %s3417 = scalar_lea.sflag [#allocation3], %s3416
          %s3418 = sand.u32 %s166, 1
          %s3419 = scalar_lea.vmem [#allocation2], %s3418
          %3420 = dma.done %s3417, 16
        $region60: #{tpu_custom_call.1} parent=51 // pred_fallthru
          _
      $region52: #{tpu_custom_call.1} parent=5 // pred_fallthru
        _
    $region6: #{tpu_custom_call.1} parent=1 // loop_footer
      %s20 = sadd.s32 1, %s16
    $region7: #{tpu_custom_call.1} parent=1 // loop_footer_branch
      %15 = sbr.rel target = $region3
    $region8: #{tpu_custom_call.1} parent=1 // loop_exit
      _
    %3421 = vsyncpa [#allocation3], 1
    %s3422 = scalar_lea.sflag [#allocation3], 1
    %3423 = vsyncpa %s3422, 1

</llo_original>
